<compile_context>
chip_gen: v7x
topology: tpu7x:2x2x1
jax: 0.10.0
libtpu: 0.0.40
codegen_flags: <defaults>
</compile_context>

<pallas_src>
import functools

import jax
import jax.numpy as jnp
from jax.experimental import pallas as pl
from jax.experimental.pallas import tpu as pltpu

LANE = 128      # TPU lane width
SUB = 8         # f32 sublane tile
HALO = 8        # zero rows kept above/below every activation slab (>= conv padding, sublane aligned)


def _round_up(n, m):
    return (n + m - 1) // m * m


# --------------------------------- fused kernel ---------------------------------
def fused_kernel(*refs, num_layers, K, L_in):
    """refs = [x, w0, b0, ..., w{n-1}, b{n-1}, wc, bc, out]

    x   : (B_tile, HALO + round_up8(L_in) + HALO, C_pad)  f32  zero halo rows / zero channel pad
    w_i : (K * C_pad_i, H_pad)                            bf16 taps folded into contraction, BN folded
    b_i : (1, H_pad)                                      f32  conv+BN folded bias
    wc  : (H_pad, N_pad)                                  bf16 classifier weight (padded cols = 0)
    bc  : (1, N_pad)                                      f32  classifier bias  (padded cols = -1e30)
    out : (1, B_tile, N_pad)                              f32  softmax probabilities
    """
    x_ref = refs[0]
    layer_refs = refs[1:1 + 2 * num_layers]
    wc_ref = refs[1 + 2 * num_layers]
    bc_ref = refs[2 + 2 * num_layers]
    o_ref = refs[3 + 2 * num_layers]

    B_tile = x_ref.shape[0]
    H_pad = layer_refs[1].shape[1]

    feats = jnp.zeros((B_tile, H_pad), jnp.float32)
    for bi in range(B_tile):                         # static unroll; each iteration is full MXU work
        act = x_ref[bi]                              # (HALO + R + HALO, C) f32, VMEM resident
        L_true = L_in
        for li in range(num_layers):
            w_ref = layer_refs[2 * li]
            b_ref = layer_refs[2 * li + 1]
            L_out = L_true + 2 - K + 1               # stride=1, padding=1, dilation=1
            R_out = _round_up(L_out, SUB)
            # im2col: piece k holds rows [t+k] of the (pad=1) sequence, which live at slab rows
            # HALO-1+k .. ; each piece is a lane multiple of 128 wide -> aligned lane concat.
            pieces = [act[HALO - 1 + k: HALO - 1 + k + R_out, :] for k in range(K)]
            patches = jnp.concatenate(pieces, axis=-1).astype(jnp.bfloat16)   # (R_out, K*C)
            y = jnp.dot(patches, w_ref[...], preferred_element_type=jnp.float32)
            y = jnp.maximum(y + b_ref[...], 0.0)     # folded conv+BN bias, ReLU (Dropout=identity)
            # Zero rows beyond the true output length: they serve as the next layer's padding and
            # must not leak into the final time-max.
            row = jax.lax.broadcasted_iota(jnp.int32, y.shape, 0)
            y = jnp.where(row < L_out, y, 0.0)
            if li + 1 < num_layers:
                halo = jnp.zeros((HALO, H_pad), jnp.float32)
                act = jnp.concatenate([halo, y, halo], axis=0)   # sublane-aligned (8 | R_out | 8)
            else:
                act = y
            L_true = L_out
        feat = jnp.max(act, axis=0, keepdims=True)               # (1, H_pad) max over time
        onehot = jax.lax.broadcasted_iota(jnp.int32, (B_tile, 1), 0) == bi
        feats = feats + onehot.astype(jnp.float32) * feat        # place row bi of the feature tile

    logits = jnp.dot(feats.astype(jnp.bfloat16), wc_ref[...],
                     preferred_element_type=jnp.float32) + bc_ref[...]
    m = jnp.max(logits, axis=-1, keepdims=True)
    e = jnp.exp(logits - m)                                      # padded cols: exp(-1e30 - m) == 0
    denom = jnp.sum(e, axis=-1, keepdims=True)
    o_ref[0] = (e * pl.reciprocal(denom, approx=True)).astype(o_ref.dtype)


# ----------------------------------- wrapper ------------------------------------
def _fold_bn_into_conv(w, b, gamma, beta, mean, var, c_in_pad, c_out_pad, eps):
    """Fold eval-mode BatchNorm into conv weight/bias and reshape the K taps into a single
    (K * C_in_pad, C_out_pad) contraction matrix (bf16)."""
    c_out, c_in, k_sz = w.shape
    scale = gamma * jax.lax.rsqrt(var + eps)                       # (c_out,)
    w_f = w * scale[:, None, None]
    b_f = (b - mean) * scale + beta
    w_p = jnp.zeros((c_out_pad, c_in_pad, k_sz), jnp.float32).at[:c_out, :c_in, :].set(w_f)
    b_p = jnp.zeros((c_out_pad,), jnp.float32).at[:c_out].set(b_f)
    # patches[t, k*C + c] = x_pad[t + k, c]  =>  weight[k*C + c, o] = w[o, c, k]
    w_mat = jnp.transpose(w_p, (2, 1, 0)).reshape(k_sz * c_in_pad, c_out_pad)
    return w_mat.astype(jnp.bfloat16), b_p.reshape(1, c_out_pad)


def fit_conv1d_classifier(x, params, *, b_tile=2, eps=1e-5):
    """x: (B, 1, C_in, L) as in the PyTorch module. Returns (B, num_class) softmax probs."""
    x = jnp.squeeze(x, axis=1)                  # (B, C_in, L)
    x = jnp.transpose(x, (0, 2, 1))             # (B, L, C_in) channels-last
    B, L, c_in = x.shape
    num_layers = len(params["blocks"])
    hidden, _, K = params["blocks"][0][0].shape
    num_class = params["wc"].shape[0]

    c_pad = _round_up(c_in, LANE)
    h_pad = _round_up(hidden, LANE)
    n_pad = _round_up(num_class, LANE)
    R0 = _round_up(L, SUB)

    assert B % b_tile == 0, "b_tile must divide the batch size"
    num_tiles = B // b_tile

    # One-time zero padding (not per layer): HALO rows above/below + channel pad to lane multiple.
    x_slab = jnp.pad(x, ((0, 0), (HALO, R0 - L + HALO), (0, c_pad - c_in)))

    inputs = [x_slab]
    in_specs = [pl.BlockSpec((b_tile, R0 + 2 * HALO, c_pad), lambda i: (i, 0, 0))]
    c_prev = c_pad
    for (w, b, gamma, beta, mean, var) in params["blocks"]:
        w_mat, b_row = _fold_bn_into_conv(w, b, gamma, beta, mean, var, c_prev, h_pad, eps)
        inputs += [w_mat, b_row]
        in_specs += [pl.BlockSpec(w_mat.shape, lambda i: (0, 0)),
                     pl.BlockSpec(b_row.shape, lambda i: (0, 0))]
        c_prev = h_pad

    # Lane-dense classifier slab: padded logit columns get weight 0 and bias -1e30 -> softmax-safe.
    wc_mat = (jnp.zeros((h_pad, n_pad), jnp.float32)
              .at[:hidden, :num_class].set(params["wc"].T).astype(jnp.bfloat16))
    bc_row = jnp.full((1, n_pad), -1e30, jnp.float32).at[0, :num_class].set(params["bc"])
    inputs += [wc_mat, bc_row]
    in_specs += [pl.BlockSpec((h_pad, n_pad), lambda i: (0, 0)),
                 pl.BlockSpec((1, n_pad), lambda i: (0, 0))]

    kern = functools.partial(fused_kernel, num_layers=num_layers, K=K, L_in=L)
    out = pl.pallas_call(
        kern,
        out_shape=jax.ShapeDtypeStruct((num_tiles, b_tile, n_pad), jnp.float32),
        grid=(num_tiles,),
        in_specs=in_specs,
        out_specs=pl.BlockSpec((1, b_tile, n_pad), lambda i: (i, 0, 0)),
        compiler_params=pltpu.CompilerParams(
            dimension_semantics=("parallel",),
            vmem_limit_bytes=32 * 1024 * 1024),
    )(*inputs)
    return out.reshape(B, n_pad)[:, :num_class]


# ----------------------------- params + f32 reference ----------------------------
def init_params(key, *, in_channels, hidden, kernel_size, num_layers, num_class):
    params = {"blocks": []}
    c_in = in_channels
    for _ in range(num_layers):
        key, k1, k2, k3, k4, k5, k6 = jax.random.split(key, 7)
        fan_in = c_in * kernel_size
        w = jax.random.normal(k1, (hidden, c_in, kernel_size), jnp.float32) / jnp.sqrt(fan_in)
        b = 0.05 * jax.random.normal(k2, (hidden,), jnp.float32)
        gamma = 1.0 + 0.1 * jax.random.normal(k3, (hidden,), jnp.float32)
        beta = 0.05 * jax.random.normal(k4, (hidden,), jnp.float32)
        mean = 0.05 * jax.random.normal(k5, (hidden,), jnp.float32)
        var = 1.0 + 0.1 * jax.random.uniform(k6, (hidden,), jnp.float32)
        params["blocks"].append((w, b, gamma, beta, mean, var))
        c_in = hidden
    key, kw, kb = jax.random.split(key, 3)
    params["wc"] = jax.random.normal(kw, (num_class, hidden), jnp.float32) / jnp.sqrt(hidden)
    params["bc"] = 0.05 * jax.random.normal(kb, (num_class,), jnp.float32)
    return params


def reference_forward(x, params, eps=1e-5):
    """Pure-JAX f32 reference of the PyTorch eval() forward (independent of the kernel path)."""
    act = jnp.transpose(jnp.squeeze(x, axis=1), (0, 2, 1))        # (B, L, C_in)
    for (w, b, gamma, beta, mean, var) in params["blocks"]:
        c_out, _, k_sz = w.shape
        xp = jnp.pad(act, ((0, 0), (1, 1), (0, 0)))
        l_out = act.shape[1] + 2 - k_sz + 1
        y = jnp.zeros((act.shape[0], l_out, c_out), jnp.float32) + b
        for k in range(k_sz):
            y = y + jnp.einsum("blc,oc->blo", xp[:, k:k + l_out, :], w[:, :, k],
                               precision=jax.lax.Precision.HIGHEST)
        y = (y - mean) * (gamma * jax.lax.rsqrt(var + eps)) + beta
        act = jnp.maximum(y, 0.0)
    feat = jnp.max(act, axis=1)                                   # max over time
    logits = jnp.einsum("bh,ch->bc", feat, params["wc"],
                        precision=jax.lax.Precision.HIGHEST) + params["bc"]
    return jax.nn.softmax(logits, axis=-1)


# ------------------------------------- main --------------------------------------
if __name__ == "__main__":
    # Small shapes consistent with the module structure (scaled down from 248/256/64/4).
    B, C_IN, L = 4, 16, 38
    HIDDEN, KSZ, NUM_LAYERS, NUM_CLASS = 128, 8, 4, 4

    key = jax.random.PRNGKey(0)
    key, kx = jax.random.split(key)
    x = jax.random.normal(kx, (B, 1, C_IN, L), jnp.float32)
    params = init_params(key, in_channels=C_IN, hidden=HIDDEN, kernel_size=KSZ,
                         num_layers=NUM_LAYERS, num_class=NUM_CLASS)

    out = jax.block_until_ready(fit_conv1d_classifier(x, params, b_tile=2))
    ref = jax.block_until_ready(reference_forward(x, params))

    assert out.shape == (B, NUM_CLASS)
    assert bool(jnp.all(jnp.isfinite(out)))
    assert bool(jnp.allclose(jnp.sum(out, axis=1), 1.0, atol=1e-2))       # softmax rows sum to 1
    max_err = float(jnp.max(jnp.abs(out - ref)))
    assert max_err < 5e-2, f"kernel vs f32 reference mismatch: {max_err}"  # bf16 matmul tolerance
    print("KERNEL_OK")
</pallas_src>

<mosaic_0001>
module attributes {stable_mosaic.version = 11 : i64} {
  func.func @fused_kernel(%arg0: i32, %arg1: memref<2x56x128xf32, #tpu.memory_space<vmem>>, %arg2: memref<1024x128xbf16, #tpu.memory_space<vmem>>, %arg3: memref<1x128xf32, #tpu.memory_space<vmem>>, %arg4: memref<1024x128xbf16, #tpu.memory_space<vmem>>, %arg5: memref<1x128xf32, #tpu.memory_space<vmem>>, %arg6: memref<1024x128xbf16, #tpu.memory_space<vmem>>, %arg7: memref<1x128xf32, #tpu.memory_space<vmem>>, %arg8: memref<1024x128xbf16, #tpu.memory_space<vmem>>, %arg9: memref<1x128xf32, #tpu.memory_space<vmem>>, %arg10: memref<128x128xbf16, #tpu.memory_space<vmem>>, %arg11: memref<1x128xf32, #tpu.memory_space<vmem>>, %arg12: memref<1x2x128xf32, #tpu.memory_space<vmem>>) attributes {dimension_semantics = [#tpu.dimension_semantics<parallel>], iteration_bounds = array<i64: 2>, scalar_prefetch = 0 : i64, scratch_operands = 0 : i64, tpu.core_type = #tpu.core_type<tc>, window_params = [{transform_indices = @transform_0, window_bounds = array<i64: 2, 56, 128>}, {pipeline_mode = #tpu.pipeline_mode<synchronous>, transform_indices = @transform_1, window_bounds = array<i64: 1024, 128>}, {pipeline_mode = #tpu.pipeline_mode<synchronous>, transform_indices = @transform_2, window_bounds = array<i64: 1, 128>}, {pipeline_mode = #tpu.pipeline_mode<synchronous>, transform_indices = @transform_3, window_bounds = array<i64: 1024, 128>}, {pipeline_mode = #tpu.pipeline_mode<synchronous>, transform_indices = @transform_4, window_bounds = array<i64: 1, 128>}, {pipeline_mode = #tpu.pipeline_mode<synchronous>, transform_indices = @transform_5, window_bounds = array<i64: 1024, 128>}, {pipeline_mode = #tpu.pipeline_mode<synchronous>, transform_indices = @transform_6, window_bounds = array<i64: 1, 128>}, {pipeline_mode = #tpu.pipeline_mode<synchronous>, transform_indices = @transform_7, window_bounds = array<i64: 1024, 128>}, {pipeline_mode = #tpu.pipeline_mode<synchronous>, transform_indices = @transform_8, window_bounds = array<i64: 1, 128>}, {pipeline_mode = #tpu.pipeline_mode<synchronous>, transform_indices = @transform_9, window_bounds = array<i64: 128, 128>}, {pipeline_mode = #tpu.pipeline_mode<synchronous>, transform_indices = @transform_10, window_bounds = array<i64: 1, 128>}, {transform_indices = @transform_11, window_bounds = array<i64: 1, 2, 128>}]} {
    %cst = arith.constant 0.000000e+00 : f32
    %0 = vector.broadcast %cst : f32 to vector<2x128xf32>
    %c0 = arith.constant 0 : index
    %c0_0 = arith.constant 0 : index
    %c0_1 = arith.constant 0 : index
    %1 = vector.load %arg1[%c0, %c0_0, %c0_1] : memref<2x56x128xf32, #tpu.memory_space<vmem>>, vector<1x56x128xf32>
    %2 = vector.shape_cast %1 : vector<1x56x128xf32> to vector<56x128xf32>
    %3 = vector.extract_strided_slice %2 {offsets = [7, 0], sizes = [40, 128], strides = [1, 1]} : vector<56x128xf32> to vector<40x128xf32>
    %4 = vector.extract_strided_slice %2 {offsets = [8, 0], sizes = [40, 128], strides = [1, 1]} : vector<56x128xf32> to vector<40x128xf32>
    %5 = vector.extract_strided_slice %2 {offsets = [9, 0], sizes = [40, 128], strides = [1, 1]} : vector<56x128xf32> to vector<40x128xf32>
    %6 = vector.extract_strided_slice %2 {offsets = [10, 0], sizes = [40, 128], strides = [1, 1]} : vector<56x128xf32> to vector<40x128xf32>
    %7 = vector.extract_strided_slice %2 {offsets = [11, 0], sizes = [40, 128], strides = [1, 1]} : vector<56x128xf32> to vector<40x128xf32>
    %8 = vector.extract_strided_slice %2 {offsets = [12, 0], sizes = [40, 128], strides = [1, 1]} : vector<56x128xf32> to vector<40x128xf32>
    %9 = vector.extract_strided_slice %2 {offsets = [13, 0], sizes = [40, 128], strides = [1, 1]} : vector<56x128xf32> to vector<40x128xf32>
    %10 = vector.extract_strided_slice %2 {offsets = [14, 0], sizes = [40, 128], strides = [1, 1]} : vector<56x128xf32> to vector<40x128xf32>
    %11 = tpu.concatenate %3, %4, %5, %6, %7, %8, %9, %10 in 1 : vector<40x128xf32>, vector<40x128xf32>, vector<40x128xf32>, vector<40x128xf32>, vector<40x128xf32>, vector<40x128xf32>, vector<40x128xf32>, vector<40x128xf32> -> vector<40x1024xf32>
    %12 = arith.truncf %11 : vector<40x1024xf32> to vector<40x1024xbf16>
    %c0_2 = arith.constant 0 : index
    %c0_3 = arith.constant 0 : index
    %13 = vector.load %arg2[%c0_2, %c0_3] : memref<1024x128xbf16, #tpu.memory_space<vmem>>, vector<1024x128xbf16>
    %cst_4 = arith.constant dense<0.000000e+00> : vector<40x128xf32>
    %14 = tpu.matmul %12, %13, %cst_4 {dimension_numbers = #tpu.dot_dimension_numbers<[1], [0], [0], [1], [0, 0, 1, 1], [], []>} : vector<40x1024xbf16>, vector<1024x128xbf16>, vector<40x128xf32> -> vector<40x128xf32>
    %c0_5 = arith.constant 0 : index
    %c0_6 = arith.constant 0 : index
    %15 = vector.load %arg3[%c0_5, %c0_6] : memref<1x128xf32, #tpu.memory_space<vmem>>, vector<1x128xf32>
    %16 = vector.broadcast %15 : vector<1x128xf32> to vector<40x128xf32>
    %17 = arith.addf %14, %16 : vector<40x128xf32>
    %cst_7 = arith.constant 0.000000e+00 : f32
    %18 = vector.broadcast %cst_7 : f32 to vector<40x128xf32>
    %19 = arith.maximumf %17, %18 : vector<40x128xf32>
    %20 = tpu.iota {dimensions = array<i32: 0>} : vector<40x128xi32>
    %c33_i32 = arith.constant 33 : i32
    %21 = vector.broadcast %c33_i32 : i32 to vector<40x128xi32>
    %22 = arith.cmpi slt, %20, %21 : vector<40x128xi32>
    %cst_8 = arith.constant 0.000000e+00 : f32
    %23 = vector.broadcast %cst_8 : f32 to vector<40x128xf32>
    %24 = arith.select %22, %19, %23 : vector<40x128xi1>, vector<40x128xf32>
    %cst_9 = arith.constant 0.000000e+00 : f32
    %25 = vector.broadcast %cst_9 : f32 to vector<8x128xf32>
    %26 = tpu.concatenate %25, %24, %25 in 0 : vector<8x128xf32>, vector<40x128xf32>, vector<8x128xf32> -> vector<56x128xf32>
    %27 = vector.extract_strided_slice %26 {offsets = [7, 0], sizes = [32, 128], strides = [1, 1]} : vector<56x128xf32> to vector<32x128xf32>
    %28 = vector.extract_strided_slice %26 {offsets = [8, 0], sizes = [32, 128], strides = [1, 1]} : vector<56x128xf32> to vector<32x128xf32>
    %29 = vector.extract_strided_slice %26 {offsets = [9, 0], sizes = [32, 128], strides = [1, 1]} : vector<56x128xf32> to vector<32x128xf32>
    %30 = vector.extract_strided_slice %26 {offsets = [10, 0], sizes = [32, 128], strides = [1, 1]} : vector<56x128xf32> to vector<32x128xf32>
    %31 = vector.extract_strided_slice %26 {offsets = [11, 0], sizes = [32, 128], strides = [1, 1]} : vector<56x128xf32> to vector<32x128xf32>
    %32 = vector.extract_strided_slice %26 {offsets = [12, 0], sizes = [32, 128], strides = [1, 1]} : vector<56x128xf32> to vector<32x128xf32>
    %33 = vector.extract_strided_slice %26 {offsets = [13, 0], sizes = [32, 128], strides = [1, 1]} : vector<56x128xf32> to vector<32x128xf32>
    %34 = vector.extract_strided_slice %26 {offsets = [14, 0], sizes = [32, 128], strides = [1, 1]} : vector<56x128xf32> to vector<32x128xf32>
    %35 = tpu.concatenate %27, %28, %29, %30, %31, %32, %33, %34 in 1 : vector<32x128xf32>, vector<32x128xf32>, vector<32x128xf32>, vector<32x128xf32>, vector<32x128xf32>, vector<32x128xf32>, vector<32x128xf32>, vector<32x128xf32> -> vector<32x1024xf32>
    %36 = arith.truncf %35 : vector<32x1024xf32> to vector<32x1024xbf16>
    %c0_10 = arith.constant 0 : index
    %c0_11 = arith.constant 0 : index
    %37 = vector.load %arg4[%c0_10, %c0_11] : memref<1024x128xbf16, #tpu.memory_space<vmem>>, vector<1024x128xbf16>
    %cst_12 = arith.constant dense<0.000000e+00> : vector<32x128xf32>
    %38 = tpu.matmul %36, %37, %cst_12 {dimension_numbers = #tpu.dot_dimension_numbers<[1], [0], [0], [1], [0, 0, 1, 1], [], []>} : vector<32x1024xbf16>, vector<1024x128xbf16>, vector<32x128xf32> -> vector<32x128xf32>
    %c0_13 = arith.constant 0 : index
    %c0_14 = arith.constant 0 : index
    %39 = vector.load %arg5[%c0_13, %c0_14] : memref<1x128xf32, #tpu.memory_space<vmem>>, vector<1x128xf32>
    %40 = vector.broadcast %39 : vector<1x128xf32> to vector<32x128xf32>
    %41 = arith.addf %38, %40 : vector<32x128xf32>
    %cst_15 = arith.constant 0.000000e+00 : f32
    %42 = vector.broadcast %cst_15 : f32 to vector<32x128xf32>
    %43 = arith.maximumf %41, %42 : vector<32x128xf32>
    %44 = tpu.iota {dimensions = array<i32: 0>} : vector<32x128xi32>
    %c28_i32 = arith.constant 28 : i32
    %45 = vector.broadcast %c28_i32 : i32 to vector<32x128xi32>
    %46 = arith.cmpi slt, %44, %45 : vector<32x128xi32>
    %cst_16 = arith.constant 0.000000e+00 : f32
    %47 = vector.broadcast %cst_16 : f32 to vector<32x128xf32>
    %48 = arith.select %46, %43, %47 : vector<32x128xi1>, vector<32x128xf32>
    %cst_17 = arith.constant 0.000000e+00 : f32
    %49 = vector.broadcast %cst_17 : f32 to vector<8x128xf32>
    %50 = tpu.concatenate %49, %48, %49 in 0 : vector<8x128xf32>, vector<32x128xf32>, vector<8x128xf32> -> vector<48x128xf32>
    %51 = vector.extract_strided_slice %50 {offsets = [7, 0], sizes = [24, 128], strides = [1, 1]} : vector<48x128xf32> to vector<24x128xf32>
    %52 = vector.extract_strided_slice %50 {offsets = [8, 0], sizes = [24, 128], strides = [1, 1]} : vector<48x128xf32> to vector<24x128xf32>
    %53 = vector.extract_strided_slice %50 {offsets = [9, 0], sizes = [24, 128], strides = [1, 1]} : vector<48x128xf32> to vector<24x128xf32>
    %54 = vector.extract_strided_slice %50 {offsets = [10, 0], sizes = [24, 128], strides = [1, 1]} : vector<48x128xf32> to vector<24x128xf32>
    %55 = vector.extract_strided_slice %50 {offsets = [11, 0], sizes = [24, 128], strides = [1, 1]} : vector<48x128xf32> to vector<24x128xf32>
    %56 = vector.extract_strided_slice %50 {offsets = [12, 0], sizes = [24, 128], strides = [1, 1]} : vector<48x128xf32> to vector<24x128xf32>
    %57 = vector.extract_strided_slice %50 {offsets = [13, 0], sizes = [24, 128], strides = [1, 1]} : vector<48x128xf32> to vector<24x128xf32>
    %58 = vector.extract_strided_slice %50 {offsets = [14, 0], sizes = [24, 128], strides = [1, 1]} : vector<48x128xf32> to vector<24x128xf32>
    %59 = tpu.concatenate %51, %52, %53, %54, %55, %56, %57, %58 in 1 : vector<24x128xf32>, vector<24x128xf32>, vector<24x128xf32>, vector<24x128xf32>, vector<24x128xf32>, vector<24x128xf32>, vector<24x128xf32>, vector<24x128xf32> -> vector<24x1024xf32>
    %60 = arith.truncf %59 : vector<24x1024xf32> to vector<24x1024xbf16>
    %c0_18 = arith.constant 0 : index
    %c0_19 = arith.constant 0 : index
    %61 = vector.load %arg6[%c0_18, %c0_19] : memref<1024x128xbf16, #tpu.memory_space<vmem>>, vector<1024x128xbf16>
    %cst_20 = arith.constant dense<0.000000e+00> : vector<24x128xf32>
    %62 = tpu.matmul %60, %61, %cst_20 {dimension_numbers = #tpu.dot_dimension_numbers<[1], [0], [0], [1], [0, 0, 1, 1], [], []>} : vector<24x1024xbf16>, vector<1024x128xbf16>, vector<24x128xf32> -> vector<24x128xf32>
    %c0_21 = arith.constant 0 : index
    %c0_22 = arith.constant 0 : index
    %63 = vector.load %arg7[%c0_21, %c0_22] : memref<1x128xf32, #tpu.memory_space<vmem>>, vector<1x128xf32>
    %64 = vector.broadcast %63 : vector<1x128xf32> to vector<24x128xf32>
    %65 = arith.addf %62, %64 : vector<24x128xf32>
    %cst_23 = arith.constant 0.000000e+00 : f32
    %66 = vector.broadcast %cst_23 : f32 to vector<24x128xf32>
    %67 = arith.maximumf %65, %66 : vector<24x128xf32>
    %68 = tpu.iota {dimensions = array<i32: 0>} : vector<24x128xi32>
    %c23_i32 = arith.constant 23 : i32
    %69 = vector.broadcast %c23_i32 : i32 to vector<24x128xi32>
    %70 = arith.cmpi slt, %68, %69 : vector<24x128xi32>
    %cst_24 = arith.constant 0.000000e+00 : f32
    %71 = vector.broadcast %cst_24 : f32 to vector<24x128xf32>
    %72 = arith.select %70, %67, %71 : vector<24x128xi1>, vector<24x128xf32>
    %cst_25 = arith.constant 0.000000e+00 : f32
    %73 = vector.broadcast %cst_25 : f32 to vector<8x128xf32>
    %74 = tpu.concatenate %73, %72, %73 in 0 : vector<8x128xf32>, vector<24x128xf32>, vector<8x128xf32> -> vector<40x128xf32>
    %75 = vector.extract_strided_slice %74 {offsets = [7, 0], sizes = [24, 128], strides = [1, 1]} : vector<40x128xf32> to vector<24x128xf32>
    %76 = vector.extract_strided_slice %74 {offsets = [8, 0], sizes = [24, 128], strides = [1, 1]} : vector<40x128xf32> to vector<24x128xf32>
    %77 = vector.extract_strided_slice %74 {offsets = [9, 0], sizes = [24, 128], strides = [1, 1]} : vector<40x128xf32> to vector<24x128xf32>
    %78 = vector.extract_strided_slice %74 {offsets = [10, 0], sizes = [24, 128], strides = [1, 1]} : vector<40x128xf32> to vector<24x128xf32>
    %79 = vector.extract_strided_slice %74 {offsets = [11, 0], sizes = [24, 128], strides = [1, 1]} : vector<40x128xf32> to vector<24x128xf32>
    %80 = vector.extract_strided_slice %74 {offsets = [12, 0], sizes = [24, 128], strides = [1, 1]} : vector<40x128xf32> to vector<24x128xf32>
    %81 = vector.extract_strided_slice %74 {offsets = [13, 0], sizes = [24, 128], strides = [1, 1]} : vector<40x128xf32> to vector<24x128xf32>
    %82 = vector.extract_strided_slice %74 {offsets = [14, 0], sizes = [24, 128], strides = [1, 1]} : vector<40x128xf32> to vector<24x128xf32>
    %83 = tpu.concatenate %75, %76, %77, %78, %79, %80, %81, %82 in 1 : vector<24x128xf32>, vector<24x128xf32>, vector<24x128xf32>, vector<24x128xf32>, vector<24x128xf32>, vector<24x128xf32>, vector<24x128xf32>, vector<24x128xf32> -> vector<24x1024xf32>
    %84 = arith.truncf %83 : vector<24x1024xf32> to vector<24x1024xbf16>
    %c0_26 = arith.constant 0 : index
    %c0_27 = arith.constant 0 : index
    %85 = vector.load %arg8[%c0_26, %c0_27] : memref<1024x128xbf16, #tpu.memory_space<vmem>>, vector<1024x128xbf16>
    %cst_28 = arith.constant dense<0.000000e+00> : vector<24x128xf32>
    %86 = tpu.matmul %84, %85, %cst_28 {dimension_numbers = #tpu.dot_dimension_numbers<[1], [0], [0], [1], [0, 0, 1, 1], [], []>} : vector<24x1024xbf16>, vector<1024x128xbf16>, vector<24x128xf32> -> vector<24x128xf32>
    %c0_29 = arith.constant 0 : index
    %c0_30 = arith.constant 0 : index
    %87 = vector.load %arg9[%c0_29, %c0_30] : memref<1x128xf32, #tpu.memory_space<vmem>>, vector<1x128xf32>
    %88 = vector.broadcast %87 : vector<1x128xf32> to vector<24x128xf32>
    %89 = arith.addf %86, %88 : vector<24x128xf32>
    %cst_31 = arith.constant 0.000000e+00 : f32
    %90 = vector.broadcast %cst_31 : f32 to vector<24x128xf32>
    %91 = arith.maximumf %89, %90 : vector<24x128xf32>
    %92 = tpu.iota {dimensions = array<i32: 0>} : vector<24x128xi32>
    %c18_i32 = arith.constant 18 : i32
    %93 = vector.broadcast %c18_i32 : i32 to vector<24x128xi32>
    %94 = arith.cmpi slt, %92, %93 : vector<24x128xi32>
    %cst_32 = arith.constant 0.000000e+00 : f32
    %95 = vector.broadcast %cst_32 : f32 to vector<24x128xf32>
    %96 = arith.select %94, %91, %95 : vector<24x128xi1>, vector<24x128xf32>
    %cst_33 = arith.constant dense<0xFF800000> : vector<128xf32>
    %97 = vector.multi_reduction <maximumf>, %96, %cst_33 [0] : vector<24x128xf32> to vector<128xf32>
    %98 = vector.shape_cast %97 : vector<128xf32> to vector<1x128xf32>
    %99 = tpu.iota {dimensions = array<i32: 0>} : vector<2x1xi32>
    %c0_i32 = arith.constant 0 : i32
    %100 = vector.broadcast %c0_i32 : i32 to vector<2x1xi32>
    %101 = arith.cmpi eq, %99, %100 : vector<2x1xi32>
    %102 = arith.extui %101 : vector<2x1xi1> to vector<2x1xi32>
    %103 = arith.sitofp %102 : vector<2x1xi32> to vector<2x1xf32>
    %104 = vector.broadcast %103 : vector<2x1xf32> to vector<2x128xf32>
    %105 = vector.broadcast %98 : vector<1x128xf32> to vector<2x128xf32>
    %106 = arith.mulf %104, %105 : vector<2x128xf32>
    %107 = arith.addf %0, %106 : vector<2x128xf32>
    %c1 = arith.constant 1 : index
    %c0_34 = arith.constant 0 : index
    %c0_35 = arith.constant 0 : index
    %108 = vector.load %arg1[%c1, %c0_34, %c0_35] : memref<2x56x128xf32, #tpu.memory_space<vmem>>, vector<1x56x128xf32>
    %109 = vector.shape_cast %108 : vector<1x56x128xf32> to vector<56x128xf32>
    %110 = vector.extract_strided_slice %109 {offsets = [7, 0], sizes = [40, 128], strides = [1, 1]} : vector<56x128xf32> to vector<40x128xf32>
    %111 = vector.extract_strided_slice %109 {offsets = [8, 0], sizes = [40, 128], strides = [1, 1]} : vector<56x128xf32> to vector<40x128xf32>
    %112 = vector.extract_strided_slice %109 {offsets = [9, 0], sizes = [40, 128], strides = [1, 1]} : vector<56x128xf32> to vector<40x128xf32>
    %113 = vector.extract_strided_slice %109 {offsets = [10, 0], sizes = [40, 128], strides = [1, 1]} : vector<56x128xf32> to vector<40x128xf32>
    %114 = vector.extract_strided_slice %109 {offsets = [11, 0], sizes = [40, 128], strides = [1, 1]} : vector<56x128xf32> to vector<40x128xf32>
    %115 = vector.extract_strided_slice %109 {offsets = [12, 0], sizes = [40, 128], strides = [1, 1]} : vector<56x128xf32> to vector<40x128xf32>
    %116 = vector.extract_strided_slice %109 {offsets = [13, 0], sizes = [40, 128], strides = [1, 1]} : vector<56x128xf32> to vector<40x128xf32>
    %117 = vector.extract_strided_slice %109 {offsets = [14, 0], sizes = [40, 128], strides = [1, 1]} : vector<56x128xf32> to vector<40x128xf32>
    %118 = tpu.concatenate %110, %111, %112, %113, %114, %115, %116, %117 in 1 : vector<40x128xf32>, vector<40x128xf32>, vector<40x128xf32>, vector<40x128xf32>, vector<40x128xf32>, vector<40x128xf32>, vector<40x128xf32>, vector<40x128xf32> -> vector<40x1024xf32>
    %119 = arith.truncf %118 : vector<40x1024xf32> to vector<40x1024xbf16>
    %c0_36 = arith.constant 0 : index
    %c0_37 = arith.constant 0 : index
    %120 = vector.load %arg2[%c0_36, %c0_37] : memref<1024x128xbf16, #tpu.memory_space<vmem>>, vector<1024x128xbf16>
    %cst_38 = arith.constant dense<0.000000e+00> : vector<40x128xf32>
    %121 = tpu.matmul %119, %120, %cst_38 {dimension_numbers = #tpu.dot_dimension_numbers<[1], [0], [0], [1], [0, 0, 1, 1], [], []>} : vector<40x1024xbf16>, vector<1024x128xbf16>, vector<40x128xf32> -> vector<40x128xf32>
    %c0_39 = arith.constant 0 : index
    %c0_40 = arith.constant 0 : index
    %122 = vector.load %arg3[%c0_39, %c0_40] : memref<1x128xf32, #tpu.memory_space<vmem>>, vector<1x128xf32>
    %123 = vector.broadcast %122 : vector<1x128xf32> to vector<40x128xf32>
    %124 = arith.addf %121, %123 : vector<40x128xf32>
    %cst_41 = arith.constant 0.000000e+00 : f32
    %125 = vector.broadcast %cst_41 : f32 to vector<40x128xf32>
    %126 = arith.maximumf %124, %125 : vector<40x128xf32>
    %127 = tpu.iota {dimensions = array<i32: 0>} : vector<40x128xi32>
    %c33_i32_42 = arith.constant 33 : i32
    %128 = vector.broadcast %c33_i32_42 : i32 to vector<40x128xi32>
    %129 = arith.cmpi slt, %127, %128 : vector<40x128xi32>
    %cst_43 = arith.constant 0.000000e+00 : f32
    %130 = vector.broadcast %cst_43 : f32 to vector<40x128xf32>
    %131 = arith.select %129, %126, %130 : vector<40x128xi1>, vector<40x128xf32>
    %cst_44 = arith.constant 0.000000e+00 : f32
    %132 = vector.broadcast %cst_44 : f32 to vector<8x128xf32>
    %133 = tpu.concatenate %132, %131, %132 in 0 : vector<8x128xf32>, vector<40x128xf32>, vector<8x128xf32> -> vector<56x128xf32>
    %134 = vector.extract_strided_slice %133 {offsets = [7, 0], sizes = [32, 128], strides = [1, 1]} : vector<56x128xf32> to vector<32x128xf32>
    %135 = vector.extract_strided_slice %133 {offsets = [8, 0], sizes = [32, 128], strides = [1, 1]} : vector<56x128xf32> to vector<32x128xf32>
    %136 = vector.extract_strided_slice %133 {offsets = [9, 0], sizes = [32, 128], strides = [1, 1]} : vector<56x128xf32> to vector<32x128xf32>
    %137 = vector.extract_strided_slice %133 {offsets = [10, 0], sizes = [32, 128], strides = [1, 1]} : vector<56x128xf32> to vector<32x128xf32>
    %138 = vector.extract_strided_slice %133 {offsets = [11, 0], sizes = [32, 128], strides = [1, 1]} : vector<56x128xf32> to vector<32x128xf32>
    %139 = vector.extract_strided_slice %133 {offsets = [12, 0], sizes = [32, 128], strides = [1, 1]} : vector<56x128xf32> to vector<32x128xf32>
    %140 = vector.extract_strided_slice %133 {offsets = [13, 0], sizes = [32, 128], strides = [1, 1]} : vector<56x128xf32> to vector<32x128xf32>
    %141 = vector.extract_strided_slice %133 {offsets = [14, 0], sizes = [32, 128], strides = [1, 1]} : vector<56x128xf32> to vector<32x128xf32>
    %142 = tpu.concatenate %134, %135, %136, %137, %138, %139, %140, %141 in 1 : vector<32x128xf32>, vector<32x128xf32>, vector<32x128xf32>, vector<32x128xf32>, vector<32x128xf32>, vector<32x128xf32>, vector<32x128xf32>, vector<32x128xf32> -> vector<32x1024xf32>
    %143 = arith.truncf %142 : vector<32x1024xf32> to vector<32x1024xbf16>
    %c0_45 = arith.constant 0 : index
    %c0_46 = arith.constant 0 : index
    %144 = vector.load %arg4[%c0_45, %c0_46] : memref<1024x128xbf16, #tpu.memory_space<vmem>>, vector<1024x128xbf16>
    %cst_47 = arith.constant dense<0.000000e+00> : vector<32x128xf32>
    %145 = tpu.matmul %143, %144, %cst_47 {dimension_numbers = #tpu.dot_dimension_numbers<[1], [0], [0], [1], [0, 0, 1, 1], [], []>} : vector<32x1024xbf16>, vector<1024x128xbf16>, vector<32x128xf32> -> vector<32x128xf32>
    %c0_48 = arith.constant 0 : index
    %c0_49 = arith.constant 0 : index
    %146 = vector.load %arg5[%c0_48, %c0_49] : memref<1x128xf32, #tpu.memory_space<vmem>>, vector<1x128xf32>
    %147 = vector.broadcast %146 : vector<1x128xf32> to vector<32x128xf32>
    %148 = arith.addf %145, %147 : vector<32x128xf32>
    %cst_50 = arith.constant 0.000000e+00 : f32
    %149 = vector.broadcast %cst_50 : f32 to vector<32x128xf32>
    %150 = arith.maximumf %148, %149 : vector<32x128xf32>
    %151 = tpu.iota {dimensions = array<i32: 0>} : vector<32x128xi32>
    %c28_i32_51 = arith.constant 28 : i32
    %152 = vector.broadcast %c28_i32_51 : i32 to vector<32x128xi32>
    %153 = arith.cmpi slt, %151, %152 : vector<32x128xi32>
    %cst_52 = arith.constant 0.000000e+00 : f32
    %154 = vector.broadcast %cst_52 : f32 to vector<32x128xf32>
    %155 = arith.select %153, %150, %154 : vector<32x128xi1>, vector<32x128xf32>
    %cst_53 = arith.constant 0.000000e+00 : f32
    %156 = vector.broadcast %cst_53 : f32 to vector<8x128xf32>
    %157 = tpu.concatenate %156, %155, %156 in 0 : vector<8x128xf32>, vector<32x128xf32>, vector<8x128xf32> -> vector<48x128xf32>
    %158 = vector.extract_strided_slice %157 {offsets = [7, 0], sizes = [24, 128], strides = [1, 1]} : vector<48x128xf32> to vector<24x128xf32>
    %159 = vector.extract_strided_slice %157 {offsets = [8, 0], sizes = [24, 128], strides = [1, 1]} : vector<48x128xf32> to vector<24x128xf32>
    %160 = vector.extract_strided_slice %157 {offsets = [9, 0], sizes = [24, 128], strides = [1, 1]} : vector<48x128xf32> to vector<24x128xf32>
    %161 = vector.extract_strided_slice %157 {offsets = [10, 0], sizes = [24, 128], strides = [1, 1]} : vector<48x128xf32> to vector<24x128xf32>
    %162 = vector.extract_strided_slice %157 {offsets = [11, 0], sizes = [24, 128], strides = [1, 1]} : vector<48x128xf32> to vector<24x128xf32>
    %163 = vector.extract_strided_slice %157 {offsets = [12, 0], sizes = [24, 128], strides = [1, 1]} : vector<48x128xf32> to vector<24x128xf32>
    %164 = vector.extract_strided_slice %157 {offsets = [13, 0], sizes = [24, 128], strides = [1, 1]} : vector<48x128xf32> to vector<24x128xf32>
    %165 = vector.extract_strided_slice %157 {offsets = [14, 0], sizes = [24, 128], strides = [1, 1]} : vector<48x128xf32> to vector<24x128xf32>
    %166 = tpu.concatenate %158, %159, %160, %161, %162, %163, %164, %165 in 1 : vector<24x128xf32>, vector<24x128xf32>, vector<24x128xf32>, vector<24x128xf32>, vector<24x128xf32>, vector<24x128xf32>, vector<24x128xf32>, vector<24x128xf32> -> vector<24x1024xf32>
    %167 = arith.truncf %166 : vector<24x1024xf32> to vector<24x1024xbf16>
    %c0_54 = arith.constant 0 : index
    %c0_55 = arith.constant 0 : index
    %168 = vector.load %arg6[%c0_54, %c0_55] : memref<1024x128xbf16, #tpu.memory_space<vmem>>, vector<1024x128xbf16>
    %cst_56 = arith.constant dense<0.000000e+00> : vector<24x128xf32>
    %169 = tpu.matmul %167, %168, %cst_56 {dimension_numbers = #tpu.dot_dimension_numbers<[1], [0], [0], [1], [0, 0, 1, 1], [], []>} : vector<24x1024xbf16>, vector<1024x128xbf16>, vector<24x128xf32> -> vector<24x128xf32>
    %c0_57 = arith.constant 0 : index
    %c0_58 = arith.constant 0 : index
    %170 = vector.load %arg7[%c0_57, %c0_58] : memref<1x128xf32, #tpu.memory_space<vmem>>, vector<1x128xf32>
    %171 = vector.broadcast %170 : vector<1x128xf32> to vector<24x128xf32>
    %172 = arith.addf %169, %171 : vector<24x128xf32>
    %cst_59 = arith.constant 0.000000e+00 : f32
    %173 = vector.broadcast %cst_59 : f32 to vector<24x128xf32>
    %174 = arith.maximumf %172, %173 : vector<24x128xf32>
    %175 = tpu.iota {dimensions = array<i32: 0>} : vector<24x128xi32>
    %c23_i32_60 = arith.constant 23 : i32
    %176 = vector.broadcast %c23_i32_60 : i32 to vector<24x128xi32>
    %177 = arith.cmpi slt, %175, %176 : vector<24x128xi32>
    %cst_61 = arith.constant 0.000000e+00 : f32
    %178 = vector.broadcast %cst_61 : f32 to vector<24x128xf32>
    %179 = arith.select %177, %174, %178 : vector<24x128xi1>, vector<24x128xf32>
    %cst_62 = arith.constant 0.000000e+00 : f32
    %180 = vector.broadcast %cst_62 : f32 to vector<8x128xf32>
    %181 = tpu.concatenate %180, %179, %180 in 0 : vector<8x128xf32>, vector<24x128xf32>, vector<8x128xf32> -> vector<40x128xf32>
    %182 = vector.extract_strided_slice %181 {offsets = [7, 0], sizes = [24, 128], strides = [1, 1]} : vector<40x128xf32> to vector<24x128xf32>
    %183 = vector.extract_strided_slice %181 {offsets = [8, 0], sizes = [24, 128], strides = [1, 1]} : vector<40x128xf32> to vector<24x128xf32>
    %184 = vector.extract_strided_slice %181 {offsets = [9, 0], sizes = [24, 128], strides = [1, 1]} : vector<40x128xf32> to vector<24x128xf32>
    %185 = vector.extract_strided_slice %181 {offsets = [10, 0], sizes = [24, 128], strides = [1, 1]} : vector<40x128xf32> to vector<24x128xf32>
    %186 = vector.extract_strided_slice %181 {offsets = [11, 0], sizes = [24, 128], strides = [1, 1]} : vector<40x128xf32> to vector<24x128xf32>
    %187 = vector.extract_strided_slice %181 {offsets = [12, 0], sizes = [24, 128], strides = [1, 1]} : vector<40x128xf32> to vector<24x128xf32>
    %188 = vector.extract_strided_slice %181 {offsets = [13, 0], sizes = [24, 128], strides = [1, 1]} : vector<40x128xf32> to vector<24x128xf32>
    %189 = vector.extract_strided_slice %181 {offsets = [14, 0], sizes = [24, 128], strides = [1, 1]} : vector<40x128xf32> to vector<24x128xf32>
    %190 = tpu.concatenate %182, %183, %184, %185, %186, %187, %188, %189 in 1 : vector<24x128xf32>, vector<24x128xf32>, vector<24x128xf32>, vector<24x128xf32>, vector<24x128xf32>, vector<24x128xf32>, vector<24x128xf32>, vector<24x128xf32> -> vector<24x1024xf32>
    %191 = arith.truncf %190 : vector<24x1024xf32> to vector<24x1024xbf16>
    %c0_63 = arith.constant 0 : index
    %c0_64 = arith.constant 0 : index
    %192 = vector.load %arg8[%c0_63, %c0_64] : memref<1024x128xbf16, #tpu.memory_space<vmem>>, vector<1024x128xbf16>
    %cst_65 = arith.constant dense<0.000000e+00> : vector<24x128xf32>
    %193 = tpu.matmul %191, %192, %cst_65 {dimension_numbers = #tpu.dot_dimension_numbers<[1], [0], [0], [1], [0, 0, 1, 1], [], []>} : vector<24x1024xbf16>, vector<1024x128xbf16>, vector<24x128xf32> -> vector<24x128xf32>
    %c0_66 = arith.constant 0 : index
    %c0_67 = arith.constant 0 : index
    %194 = vector.load %arg9[%c0_66, %c0_67] : memref<1x128xf32, #tpu.memory_space<vmem>>, vector<1x128xf32>
    %195 = vector.broadcast %194 : vector<1x128xf32> to vector<24x128xf32>
    %196 = arith.addf %193, %195 : vector<24x128xf32>
    %cst_68 = arith.constant 0.000000e+00 : f32
    %197 = vector.broadcast %cst_68 : f32 to vector<24x128xf32>
    %198 = arith.maximumf %196, %197 : vector<24x128xf32>
    %199 = tpu.iota {dimensions = array<i32: 0>} : vector<24x128xi32>
    %c18_i32_69 = arith.constant 18 : i32
    %200 = vector.broadcast %c18_i32_69 : i32 to vector<24x128xi32>
    %201 = arith.cmpi slt, %199, %200 : vector<24x128xi32>
    %cst_70 = arith.constant 0.000000e+00 : f32
    %202 = vector.broadcast %cst_70 : f32 to vector<24x128xf32>
    %203 = arith.select %201, %198, %202 : vector<24x128xi1>, vector<24x128xf32>
    %cst_71 = arith.constant dense<0xFF800000> : vector<128xf32>
    %204 = vector.multi_reduction <maximumf>, %203, %cst_71 [0] : vector<24x128xf32> to vector<128xf32>
    %205 = vector.shape_cast %204 : vector<128xf32> to vector<1x128xf32>
    %206 = tpu.iota {dimensions = array<i32: 0>} : vector<2x1xi32>
    %c1_i32 = arith.constant 1 : i32
    %207 = vector.broadcast %c1_i32 : i32 to vector<2x1xi32>
    %208 = arith.cmpi eq, %206, %207 : vector<2x1xi32>
    %209 = arith.extui %208 : vector<2x1xi1> to vector<2x1xi32>
    %210 = arith.sitofp %209 : vector<2x1xi32> to vector<2x1xf32>
    %211 = vector.broadcast %210 : vector<2x1xf32> to vector<2x128xf32>
    %212 = vector.broadcast %205 : vector<1x128xf32> to vector<2x128xf32>
    %213 = arith.mulf %211, %212 : vector<2x128xf32>
    %214 = arith.addf %107, %213 : vector<2x128xf32>
    %215 = arith.truncf %214 : vector<2x128xf32> to vector<2x128xbf16>
    %c0_72 = arith.constant 0 : index
    %c0_73 = arith.constant 0 : index
    %216 = vector.load %arg10[%c0_72, %c0_73] : memref<128x128xbf16, #tpu.memory_space<vmem>>, vector<128x128xbf16>
    %cst_74 = arith.constant dense<0.000000e+00> : vector<2x128xf32>
    %217 = tpu.matmul %215, %216, %cst_74 {dimension_numbers = #tpu.dot_dimension_numbers<[1], [0], [0], [1], [0, 0, 1, 1], [], []>} : vector<2x128xbf16>, vector<128x128xbf16>, vector<2x128xf32> -> vector<2x128xf32>
    %c0_75 = arith.constant 0 : index
    %c0_76 = arith.constant 0 : index
    %218 = vector.load %arg11[%c0_75, %c0_76] : memref<1x128xf32, #tpu.memory_space<vmem>>, vector<1x128xf32>
    %219 = vector.broadcast %218 : vector<1x128xf32> to vector<2x128xf32>
    %220 = arith.addf %217, %219 : vector<2x128xf32>
    %cst_77 = arith.constant dense<0xFF800000> : vector<2xf32>
    %221 = vector.multi_reduction <maximumf>, %220, %cst_77 [1] : vector<2x128xf32> to vector<2xf32>
    %222 = vector.shape_cast %221 : vector<2xf32> to vector<2x1xf32>
    %223 = vector.broadcast %222 : vector<2x1xf32> to vector<2x128xf32>
    %224 = arith.subf %220, %223 : vector<2x128xf32>
    %225 = math.exp %224 : vector<2x128xf32>
    %cst_78 = arith.constant dense<0.000000e+00> : vector<2xf32>
    %226 = vector.multi_reduction <add>, %225, %cst_78 [1] : vector<2x128xf32> to vector<2xf32>
    %227 = vector.shape_cast %226 : vector<2xf32> to vector<2x1xf32>
    %228 = tpu.reciprocal %227 {approx = true} : vector<2x1xf32> -> vector<2x1xf32>
    %229 = vector.broadcast %228 : vector<2x1xf32> to vector<2x128xf32>
    %230 = arith.mulf %225, %229 : vector<2x128xf32>
    %c0_79 = arith.constant 0 : index
    %c0_80 = arith.constant 0 : index
    %c0_81 = arith.constant 0 : index
    %231 = vector.load %arg12[%c0_79, %c0_80, %c0_81] : memref<1x2x128xf32, #tpu.memory_space<vmem>>, vector<1x2x128xf32>
    %232 = vector.shape_cast %231 : vector<1x2x128xf32> to vector<2x128xf32>
    %233 = vector.shape_cast %230 : vector<2x128xf32> to vector<1x2x128xf32>
    tpu.vector_store %arg12[%c0_79, %c0_80, %c0_81], %233 {strides = array<i32>} : memref<1x2x128xf32, #tpu.memory_space<vmem>>, vector<1x2x128xf32>,
    return
  }
  func.func @transform_0(%arg0: i32) -> (i32, i32, i32) {
    %c0_i32 = arith.constant 0 : i32
    %c0_i32_0 = arith.constant 0 : i32
    %c0_i32_1 = arith.constant 0 : i32
    return %arg0, %c0_i32, %c0_i32_0 : i32, i32, i32
  }
  func.func @transform_1(%arg0: i32) -> (i32, i32) {
    %c0_i32 = arith.constant 0 : i32
    %c0_i32_0 = arith.constant 0 : i32
    %c0_i32_1 = arith.constant 0 : i32
    return %c0_i32, %c0_i32_0 : i32, i32
  }
  func.func @transform_2(%arg0: i32) -> (i32, i32) {
    %c0_i32 = arith.constant 0 : i32
    %c0_i32_0 = arith.constant 0 : i32
    %c0_i32_1 = arith.constant 0 : i32
    return %c0_i32, %c0_i32_0 : i32, i32
  }
  func.func @transform_3(%arg0: i32) -> (i32, i32) {
    %c0_i32 = arith.constant 0 : i32
    %c0_i32_0 = arith.constant 0 : i32
    %c0_i32_1 = arith.constant 0 : i32
    return %c0_i32, %c0_i32_0 : i32, i32
  }
  func.func @transform_4(%arg0: i32) -> (i32, i32) {
    %c0_i32 = arith.constant 0 : i32
    %c0_i32_0 = arith.constant 0 : i32
    %c0_i32_1 = arith.constant 0 : i32
    return %c0_i32, %c0_i32_0 : i32, i32
  }
  func.func @transform_5(%arg0: i32) -> (i32, i32) {
    %c0_i32 = arith.constant 0 : i32
    %c0_i32_0 = arith.constant 0 : i32
    %c0_i32_1 = arith.constant 0 : i32
    return %c0_i32, %c0_i32_0 : i32, i32
  }
  func.func @transform_6(%arg0: i32) -> (i32, i32) {
    %c0_i32 = arith.constant 0 : i32
    %c0_i32_0 = arith.constant 0 : i32
    %c0_i32_1 = arith.constant 0 : i32
    return %c0_i32, %c0_i32_0 : i32, i32
  }
  func.func @transform_7(%arg0: i32) -> (i32, i32) {
    %c0_i32 = arith.constant 0 : i32
    %c0_i32_0 = arith.constant 0 : i32
    %c0_i32_1 = arith.constant 0 : i32
    return %c0_i32, %c0_i32_0 : i32, i32
  }
  func.func @transform_8(%arg0: i32) -> (i32, i32) {
    %c0_i32 = arith.constant 0 : i32
    %c0_i32_0 = arith.constant 0 : i32
    %c0_i32_1 = arith.constant 0 : i32
    return %c0_i32, %c0_i32_0 : i32, i32
  }
  func.func @transform_9(%arg0: i32) -> (i32, i32) {
    %c0_i32 = arith.constant 0 : i32
    %c0_i32_0 = arith.constant 0 : i32
    %c0_i32_1 = arith.constant 0 : i32
    return %c0_i32, %c0_i32_0 : i32, i32
  }
  func.func @transform_10(%arg0: i32) -> (i32, i32) {
    %c0_i32 = arith.constant 0 : i32
    %c0_i32_0 = arith.constant 0 : i32
    %c0_i32_1 = arith.constant 0 : i32
    return %c0_i32, %c0_i32_0 : i32, i32
  }
  func.func @transform_11(%arg0: i32) -> (i32, i32, i32) {
    %c0_i32 = arith.constant 0 : i32
    %c0_i32_0 = arith.constant 0 : i32
    %c0_i32_1 = arith.constant 0 : i32
    return %arg0, %c0_i32, %c0_i32_0 : i32, i32, i32
  }
}

</mosaic_0001>

<llo_original>
// kernel: tpu_custom_call.1
$region0: #{tpu_custom_call.1}
  #allocation0 [shape = 'u32[]', space=smem, size = 0x4, offset = 0x4, fixed_abs, tag = 'smem constant byte address 0x4 - core index']
  #allocation1 [shape = 'u32[144,128]{1,0:T(1,128)}', space=vmem, size = 0x12000, scoped, tag = 'internal scratch']
  %s0 = inlined_call_operand.hbm [shape: f32[4,56,128], index: 0, kind: input, shape index: {}]
  %s1 = inlined_call_operand.hbm [shape: bf16[1024,128], index: 1, kind: input, shape index: {}]
  %s2 = inlined_call_operand.vmem [shape: f32[1,128], index: 2, kind: input, shape index: {}]
  %s3 = inlined_call_operand.hbm [shape: bf16[1024,128], index: 3, kind: input, shape index: {}]
  %s4 = inlined_call_operand.vmem [shape: f32[1,128], index: 4, kind: input, shape index: {}]
  %s5 = inlined_call_operand.hbm [shape: bf16[1024,128], index: 5, kind: input, shape index: {}]
  %s6 = inlined_call_operand.vmem [shape: f32[1,128], index: 6, kind: input, shape index: {}]
  %s7 = inlined_call_operand.hbm [shape: bf16[1024,128], index: 7, kind: input, shape index: {}]
  %s8 = inlined_call_operand.vmem [shape: f32[1,128], index: 8, kind: input, shape index: {}]
  %s9 = inlined_call_operand.hbm [shape: bf16[128,128], index: 9, kind: input, shape index: {}]
  %s10 = inlined_call_operand.vmem [shape: f32[1,128], index: 10, kind: input, shape index: {}]
  %s11 = inlined_call_operand.hbm [shape: f32[2,2,128], index: 11, kind: output, shape index: {}]
  %s12 = sld [smem:[#allocation0]]
  $region101: #{tpu_custom_call.1} parent=0
    _
  %s14 = ssub.s32 1, %s12
  %s15 = scalar_select 0, %s14, %s12
  $region1: #{tpu_custom_call.1} parent=0
    #allocation2 [shape = 'u8[114688]{0}', space=vmem, size = 0x1c000, scoped, tag = 'input window, operand 0']
    #allocation3 [shape = 's32[2]{0}', space=sflag, size = 0x8, scoped, tag = 'scoped memory for tpu_custom_call.1']
    #allocation4 [shape = 's32[2]{0}', space=sflag, size = 0x8, scoped, tag = 'scoped memory for tpu_custom_call.1']
    #allocation5 [shape = 'u8[262144]{0}', space=vmem, size = 0x40000, scoped, tag = 'input window, operand 1, single buffered']
    #allocation6 [shape = 's32[1]{0}', space=sflag, size = 0x4, scoped, tag = 'scoped memory for tpu_custom_call.1']
    #allocation7 [shape = 'u8[262144]{0}', space=vmem, size = 0x40000, scoped, tag = 'input window, operand 3, single buffered']
    #allocation8 [shape = 'u8[262144]{0}', space=vmem, size = 0x40000, scoped, tag = 'input window, operand 5, single buffered']
    #allocation9 [shape = 's32[1]{0}', space=sflag, size = 0x4, scoped, tag = 'scoped memory for tpu_custom_call.1']
    #allocation10 [shape = 'u8[262144]{0}', space=vmem, size = 0x40000, scoped, tag = 'input window, operand 7, single buffered']
    #allocation11 [shape = 'u8[32768]{0}', space=vmem, size = 0x8000, scoped, tag = 'input window, operand 9, single buffered']
    #allocation12 [shape = 's32[1]{0}', space=sflag, size = 0x4, scoped, tag = 'scoped memory for tpu_custom_call.1']
    #allocation13 [shape = 'u8[2048]{0}', space=vmem, size = 0x800, scoped, tag = 'output window, operand 0']
    %16 = vsyncpa [#allocation3], 0
    %s17 = scalar_lea.sflag [#allocation3], 1
    %18 = vsyncpa %s17, 0
    %19 = vsyncpa [#allocation6], 0
    %20 = vsyncpa [#allocation9], 0
    %21 = vsyncpa [#allocation12], 0
    %22 = vsyncpa [#allocation4], 0
    %s23 = scalar_lea.sflag [#allocation4], 1
    %24 = vsyncpa %s23, 0
    loop: start=0, step=1, limit=4
    $region2: #{tpu_custom_call.1} parent=1 // loop_pre_header
      _
    $region3: #{tpu_custom_call.1} parent=1 // loop_header
      %s26 = sphi 0, %s30
      %p27 = scmp.ge.s32.totalorder %s26, 4
      %s36 = sphi 0, %s38
      %s39 = sphi 0, %s36
      %s40 = sphi 0, %s39
      %s56 = sphi 0, %s40
      %s60 = sphi 0, %s60
      %s62 = sphi 0, %s60
      %s63 = sphi 0, %s62
      %s77 = sphi 0, %s63
      %s81 = sphi 0, %s81
      %s83 = sphi 0, %s81
      %s84 = sphi 0, %s83
      %s98 = sphi 0, %s84
      %s102 = sphi 0, %s102
      %s104 = sphi 0, %s102
      %s105 = sphi 0, %s104
      %s119 = sphi 0, %s105
      %s123 = sphi 0, %s123
      %s125 = sphi 0, %s123
      %s126 = sphi 0, %s125
      %s140 = sphi 0, %s126
      %s144 = sphi 0, %s144
      %s146 = sphi 0, %s144
      %s147 = sphi 0, %s146
      %s161 = sphi 0, %s147
      %s165 = sphi 0, %s165
      %s167 = sphi 0, %s165
      %s168 = sphi 0, %s167
      %s182 = sphi 0, %s168
      %s186 = sphi 0, %s186
      %s188 = sphi 0, %s186
      %s189 = sphi 0, %s188
      %s203 = sphi 0, %s189
      %s207 = sphi 0, %s207
      %s209 = sphi 0, %s207
      %s210 = sphi 0, %s209
      %s224 = sphi 0, %s210
      %s228 = sphi 0, %s228
      %s230 = sphi 0, %s228
      %s231 = sphi 0, %s230
      %s245 = sphi 0, %s231
      %s249 = sphi 0, %s249
      %s251 = sphi 0, %s249
      %s252 = sphi 0, %s251
      %s266 = sphi 0, %s252
      %s272 = sphi 0, %s274
      %s275 = sphi 0, %s272
      %s276 = sphi 0, %s275
      %s292 = sphi 0, %s276
    $region4: #{tpu_custom_call.1} parent=1 // loop_header_branch
      %29 = sbr.rel (%p27) target = $region8
    $region5: #{tpu_custom_call.1} parent=1 // loop_body
      %s31 = ssub.s32 %s26, 1
      %s32 = ssub.s32 %s26, 2
      %s33 = sadd.s32 %s26, 1
      %s34 = ssub.s32 %s26, %s33
      %p35 = scmp.eq.s32.totalorder %s34, 0
      %s37 = sadd.s32 %s36, 1
      %s38 = scalar_select %p35, %s36, %s37
      %p41 = pneg %p35
      %p42 = scmp.eq.s32.totalorder %s26, 1
      %p43 = por %p41, %p42
      %p44 = scmp.ne.s32.totalorder %s36, %s39
      %p45 = scmp.eq.s32.totalorder %s26, 0
      %p46 = por %p44, %p45
      %p47 = scmp.ne.s32.totalorder %s36, %s39
      %p48 = scmp.eq.s32.totalorder %s31, 1
      %p49 = por %p47, %p48
      %p50 = scmp.ne.s32.totalorder %s39, %s40
      %p51 = scmp.eq.s32.totalorder %s31, 0
      %p52 = por %p50, %p51
      %p53 = scmp.ne.s32.totalorder %s39, %s40
      %p54 = scmp.eq.s32.totalorder %s32, 1
      %p55 = por %p53, %p54
      %p57 = scmp.ne.s32.totalorder %s40, %s56
      %p58 = scmp.eq.s32.totalorder %s32, 0
      %p59 = por %p57, %p58
      %s61 = sadd.s32 %s60, 1
      %p64 = scmp.eq.s32.totalorder %s26, 1
      %p65 = scmp.ne.s32.totalorder %s60, %s62
      %p66 = scmp.eq.s32.totalorder %s26, 0
      %p67 = por %p65, %p66
      %p68 = scmp.ne.s32.totalorder %s60, %s62
      %p69 = scmp.eq.s32.totalorder %s31, 1
      %p70 = por %p68, %p69
      %p71 = scmp.ne.s32.totalorder %s62, %s63
      %p72 = scmp.eq.s32.totalorder %s31, 0
      %p73 = por %p71, %p72
      %p74 = scmp.ne.s32.totalorder %s62, %s63
      %p75 = scmp.eq.s32.totalorder %s32, 1
      %p76 = por %p74, %p75
      %p78 = scmp.ne.s32.totalorder %s63, %s77
      %p79 = scmp.eq.s32.totalorder %s32, 0
      %p80 = por %p78, %p79
      %s82 = sadd.s32 %s81, 1
      %p85 = scmp.eq.s32.totalorder %s26, 1
      %p86 = scmp.ne.s32.totalorder %s81, %s83
      %p87 = scmp.eq.s32.totalorder %s26, 0
      %p88 = por %p86, %p87
      %p89 = scmp.ne.s32.totalorder %s81, %s83
      %p90 = scmp.eq.s32.totalorder %s31, 1
      %p91 = por %p89, %p90
      %p92 = scmp.ne.s32.totalorder %s83, %s84
      %p93 = scmp.eq.s32.totalorder %s31, 0
      %p94 = por %p92, %p93
      %p95 = scmp.ne.s32.totalorder %s83, %s84
      %p96 = scmp.eq.s32.totalorder %s32, 1
      %p97 = por %p95, %p96
      %p99 = scmp.ne.s32.totalorder %s84, %s98
      %p100 = scmp.eq.s32.totalorder %s32, 0
      %p101 = por %p99, %p100
      %s103 = sadd.s32 %s102, 1
      %p106 = scmp.eq.s32.totalorder %s26, 1
      %p107 = scmp.ne.s32.totalorder %s102, %s104
      %p108 = scmp.eq.s32.totalorder %s26, 0
      %p109 = por %p107, %p108
      %p110 = scmp.ne.s32.totalorder %s102, %s104
      %p111 = scmp.eq.s32.totalorder %s31, 1
      %p112 = por %p110, %p111
      %p113 = scmp.ne.s32.totalorder %s104, %s105
      %p114 = scmp.eq.s32.totalorder %s31, 0
      %p115 = por %p113, %p114
      %p116 = scmp.ne.s32.totalorder %s104, %s105
      %p117 = scmp.eq.s32.totalorder %s32, 1
      %p118 = por %p116, %p117
      %p120 = scmp.ne.s32.totalorder %s105, %s119
      %p121 = scmp.eq.s32.totalorder %s32, 0
      %p122 = por %p120, %p121
      %s124 = sadd.s32 %s123, 1
      %p127 = scmp.eq.s32.totalorder %s26, 1
      %p128 = scmp.ne.s32.totalorder %s123, %s125
      %p129 = scmp.eq.s32.totalorder %s26, 0
      %p130 = por %p128, %p129
      %p131 = scmp.ne.s32.totalorder %s123, %s125
      %p132 = scmp.eq.s32.totalorder %s31, 1
      %p133 = por %p131, %p132
      %p134 = scmp.ne.s32.totalorder %s125, %s126
      %p135 = scmp.eq.s32.totalorder %s31, 0
      %p136 = por %p134, %p135
      %p137 = scmp.ne.s32.totalorder %s125, %s126
      %p138 = scmp.eq.s32.totalorder %s32, 1
      %p139 = por %p137, %p138
      %p141 = scmp.ne.s32.totalorder %s126, %s140
      %p142 = scmp.eq.s32.totalorder %s32, 0
      %p143 = por %p141, %p142
      %s145 = sadd.s32 %s144, 1
      %p148 = scmp.eq.s32.totalorder %s26, 1
      %p149 = scmp.ne.s32.totalorder %s144, %s146
      %p150 = scmp.eq.s32.totalorder %s26, 0
      %p151 = por %p149, %p150
      %p152 = scmp.ne.s32.totalorder %s144, %s146
      %p153 = scmp.eq.s32.totalorder %s31, 1
      %p154 = por %p152, %p153
      %p155 = scmp.ne.s32.totalorder %s146, %s147
      %p156 = scmp.eq.s32.totalorder %s31, 0
      %p157 = por %p155, %p156
      %p158 = scmp.ne.s32.totalorder %s146, %s147
      %p159 = scmp.eq.s32.totalorder %s32, 1
      %p160 = por %p158, %p159
      %p162 = scmp.ne.s32.totalorder %s147, %s161
      %p163 = scmp.eq.s32.totalorder %s32, 0
      %p164 = por %p162, %p163
      %s166 = sadd.s32 %s165, 1
      %p169 = scmp.eq.s32.totalorder %s26, 1
      %p170 = scmp.ne.s32.totalorder %s165, %s167
      %p171 = scmp.eq.s32.totalorder %s26, 0
      %p172 = por %p170, %p171
      %p173 = scmp.ne.s32.totalorder %s165, %s167
      %p174 = scmp.eq.s32.totalorder %s31, 1
      %p175 = por %p173, %p174
      %p176 = scmp.ne.s32.totalorder %s167, %s168
      %p177 = scmp.eq.s32.totalorder %s31, 0
      %p178 = por %p176, %p177
      %p179 = scmp.ne.s32.totalorder %s167, %s168
      %p180 = scmp.eq.s32.totalorder %s32, 1
      %p181 = por %p179, %p180
      %p183 = scmp.ne.s32.totalorder %s168, %s182
      %p184 = scmp.eq.s32.totalorder %s32, 0
      %p185 = por %p183, %p184
      %s187 = sadd.s32 %s186, 1
      %p190 = scmp.eq.s32.totalorder %s26, 1
      %p191 = scmp.ne.s32.totalorder %s186, %s188
      %p192 = scmp.eq.s32.totalorder %s26, 0
      %p193 = por %p191, %p192
      %p194 = scmp.ne.s32.totalorder %s186, %s188
      %p195 = scmp.eq.s32.totalorder %s31, 1
      %p196 = por %p194, %p195
      %p197 = scmp.ne.s32.totalorder %s188, %s189
      %p198 = scmp.eq.s32.totalorder %s31, 0
      %p199 = por %p197, %p198
      %p200 = scmp.ne.s32.totalorder %s188, %s189
      %p201 = scmp.eq.s32.totalorder %s32, 1
      %p202 = por %p200, %p201
      %p204 = scmp.ne.s32.totalorder %s189, %s203
      %p205 = scmp.eq.s32.totalorder %s32, 0
      %p206 = por %p204, %p205
      %s208 = sadd.s32 %s207, 1
      %p211 = scmp.eq.s32.totalorder %s26, 1
      %p212 = scmp.ne.s32.totalorder %s207, %s209
      %p213 = scmp.eq.s32.totalorder %s26, 0
      %p214 = por %p212, %p213
      %p215 = scmp.ne.s32.totalorder %s207, %s209
      %p216 = scmp.eq.s32.totalorder %s31, 1
      %p217 = por %p215, %p216
      %p218 = scmp.ne.s32.totalorder %s209, %s210
      %p219 = scmp.eq.s32.totalorder %s31, 0
      %p220 = por %p218, %p219
      %p221 = scmp.ne.s32.totalorder %s209, %s210
      %p222 = scmp.eq.s32.totalorder %s32, 1
      %p223 = por %p221, %p222
      %p225 = scmp.ne.s32.totalorder %s210, %s224
      %p226 = scmp.eq.s32.totalorder %s32, 0
      %p227 = por %p225, %p226
      %s229 = sadd.s32 %s228, 1
      %p232 = scmp.eq.s32.totalorder %s26, 1
      %p233 = scmp.ne.s32.totalorder %s228, %s230
      %p234 = scmp.eq.s32.totalorder %s26, 0
      %p235 = por %p233, %p234
      %p236 = scmp.ne.s32.totalorder %s228, %s230
      %p237 = scmp.eq.s32.totalorder %s31, 1
      %p238 = por %p236, %p237
      %p239 = scmp.ne.s32.totalorder %s230, %s231
      %p240 = scmp.eq.s32.totalorder %s31, 0
      %p241 = por %p239, %p240
      %p242 = scmp.ne.s32.totalorder %s230, %s231
      %p243 = scmp.eq.s32.totalorder %s32, 1
      %p244 = por %p242, %p243
      %p246 = scmp.ne.s32.totalorder %s231, %s245
      %p247 = scmp.eq.s32.totalorder %s32, 0
      %p248 = por %p246, %p247
      %s250 = sadd.s32 %s249, 1
      %p253 = scmp.eq.s32.totalorder %s26, 1
      %p254 = scmp.ne.s32.totalorder %s249, %s251
      %p255 = scmp.eq.s32.totalorder %s26, 0
      %p256 = por %p254, %p255
      %p257 = scmp.ne.s32.totalorder %s249, %s251
      %p258 = scmp.eq.s32.totalorder %s31, 1
      %p259 = por %p257, %p258
      %p260 = scmp.ne.s32.totalorder %s251, %s252
      %p261 = scmp.eq.s32.totalorder %s31, 0
      %p262 = por %p260, %p261
      %p263 = scmp.ne.s32.totalorder %s251, %s252
      %p264 = scmp.eq.s32.totalorder %s32, 1
      %p265 = por %p263, %p264
      %p267 = scmp.ne.s32.totalorder %s252, %s266
      %p268 = scmp.eq.s32.totalorder %s32, 0
      %p269 = por %p267, %p268
      %s270 = ssub.s32 %s26, %s33
      %p271 = scmp.eq.s32.totalorder %s270, 0
      %s273 = sadd.s32 %s272, 1
      %s274 = scalar_select %p271, %s272, %s273
      %p277 = pneg %p271
      %p278 = scmp.eq.s32.totalorder %s26, 1
      %p279 = por %p277, %p278
      %p280 = scmp.ne.s32.totalorder %s272, %s275
      %p281 = scmp.eq.s32.totalorder %s26, 0
      %p282 = por %p280, %p281
      %p283 = scmp.ne.s32.totalorder %s272, %s275
      %p284 = scmp.eq.s32.totalorder %s31, 1
      %p285 = por %p283, %p284
      %p286 = scmp.ne.s32.totalorder %s275, %s276
      %p287 = scmp.eq.s32.totalorder %s31, 0
      %p288 = por %p286, %p287
      %p289 = scmp.ne.s32.totalorder %s275, %s276
      %p290 = scmp.eq.s32.totalorder %s32, 1
      %p291 = por %p289, %p290
      %p293 = scmp.ne.s32.totalorder %s276, %s292
      %p294 = scmp.eq.s32.totalorder %s32, 0
      %p295 = por %p293, %p294
      %p296 = scmp.le.s32.totalorder 1, %s26
      %p297 = scmp.lt.s32.totalorder %s26, 3
      %p298 = pnand %p296, %p297
      %p299 = pneg %p298
      // Predicated region
      $region9: #{tpu_custom_call.1} parent=5 // pred_check
        _
      $region10: #{tpu_custom_call.1} parent=5 // pred_check_branch
        %301 = sbr.rel (%p298) target = $region12
      $region11: #{tpu_custom_call.1} parent=5 // pred_region
        %s302 = ssub.s32 %s26, 1
        // Predicated region
        $region13: #{tpu_custom_call.1} parent=11 // pred_check
          %p303 = pneg %p73
        $region14: #{tpu_custom_call.1} parent=11 // pred_check_branch
          %305 = sbr.rel (%p303) target = $region16
        $region15: #{tpu_custom_call.1} parent=11 // pred_region
          %s307 = ssub.s32 8192, 8192
          %308 = vsyncadd [#allocation6], %s307
          %s309 = sshll.u32 [#allocation5], 4
          %s310 = int_to_ptr.vmem [resolvable:$true] %s309
          %315 = dma.hbm_to_vmem [thread:$0]  %s1, 8192, %s310, [#allocation6], 64, 64, 4
        $region16: #{tpu_custom_call.1} parent=11 // pred_fallthru
          _
        // Predicated region
        $region17: #{tpu_custom_call.1} parent=11 // pred_check
          %p316 = pneg %p94
        $region18: #{tpu_custom_call.1} parent=11 // pred_check_branch
          %318 = sbr.rel (%p316) target = $region20
        $region19: #{tpu_custom_call.1} parent=11 // pred_region
          _
        $region20: #{tpu_custom_call.1} parent=11 // pred_fallthru
          _
        // Predicated region
        $region21: #{tpu_custom_call.1} parent=11 // pred_check
          %p319 = pneg %p115
        $region22: #{tpu_custom_call.1} parent=11 // pred_check_branch
          %321 = sbr.rel (%p319) target = $region24
        $region23: #{tpu_custom_call.1} parent=11 // pred_region
          %s323 = ssub.s32 8192, 8192
          %324 = vsyncadd [#allocation6], %s323
          %s325 = sshll.u32 [#allocation7], 4
          %s326 = int_to_ptr.vmem [resolvable:$true] %s325
          %331 = dma.hbm_to_vmem [thread:$0]  %s3, 8192, %s326, [#allocation6], 64, 64, 4
        $region24: #{tpu_custom_call.1} parent=11 // pred_fallthru
          _
        // Predicated region
        $region25: #{tpu_custom_call.1} parent=11 // pred_check
          %p332 = pneg %p136
        $region26: #{tpu_custom_call.1} parent=11 // pred_check_branch
          %334 = sbr.rel (%p332) target = $region28
        $region27: #{tpu_custom_call.1} parent=11 // pred_region
          _
        $region28: #{tpu_custom_call.1} parent=11 // pred_fallthru
          _
        // Predicated region
        $region29: #{tpu_custom_call.1} parent=11 // pred_check
          %p335 = pneg %p157
        $region30: #{tpu_custom_call.1} parent=11 // pred_check_branch
          %337 = sbr.rel (%p335) target = $region32
        $region31: #{tpu_custom_call.1} parent=11 // pred_region
          %s339 = ssub.s32 8192, 8192
          %340 = vsyncadd [#allocation9], %s339
          %s341 = sshll.u32 [#allocation8], 4
          %s342 = int_to_ptr.vmem [resolvable:$true] %s341
          %347 = dma.hbm_to_vmem [thread:$0]  %s5, 8192, %s342, [#allocation9], 64, 64, 4
        $region32: #{tpu_custom_call.1} parent=11 // pred_fallthru
          _
        // Predicated region
        $region33: #{tpu_custom_call.1} parent=11 // pred_check
          %p348 = pneg %p178
        $region34: #{tpu_custom_call.1} parent=11 // pred_check_branch
          %350 = sbr.rel (%p348) target = $region36
        $region35: #{tpu_custom_call.1} parent=11 // pred_region
          _
        $region36: #{tpu_custom_call.1} parent=11 // pred_fallthru
          _
        // Predicated region
        $region37: #{tpu_custom_call.1} parent=11 // pred_check
          %p351 = pneg %p199
        $region38: #{tpu_custom_call.1} parent=11 // pred_check_branch
          %353 = sbr.rel (%p351) target = $region40
        $region39: #{tpu_custom_call.1} parent=11 // pred_region
          %s355 = ssub.s32 8192, 8192
          %356 = vsyncadd [#allocation9], %s355
          %s357 = sshll.u32 [#allocation10], 4
          %s358 = int_to_ptr.vmem [resolvable:$true] %s357
          %363 = dma.hbm_to_vmem [thread:$0]  %s7, 8192, %s358, [#allocation9], 64, 64, 4
        $region40: #{tpu_custom_call.1} parent=11 // pred_fallthru
          _
        // Predicated region
        $region41: #{tpu_custom_call.1} parent=11 // pred_check
          %p364 = pneg %p220
        $region42: #{tpu_custom_call.1} parent=11 // pred_check_branch
          %366 = sbr.rel (%p364) target = $region44
        $region43: #{tpu_custom_call.1} parent=11 // pred_region
          _
        $region44: #{tpu_custom_call.1} parent=11 // pred_fallthru
          _
        // Predicated region
        $region45: #{tpu_custom_call.1} parent=11 // pred_check
          %p367 = pneg %p241
        $region46: #{tpu_custom_call.1} parent=11 // pred_check_branch
          %369 = sbr.rel (%p367) target = $region48
        $region47: #{tpu_custom_call.1} parent=11 // pred_region
          %s371 = ssub.s32 1024, 1024
          %372 = vsyncadd [#allocation12], %s371
          %s373 = sshll.u32 [#allocation11], 4
          %s374 = int_to_ptr.vmem [resolvable:$true] %s373
          %379 = dma.hbm_to_vmem [thread:$0]  %s9, 1024, %s374, [#allocation12], 64, 64, 4
        $region48: #{tpu_custom_call.1} parent=11 // pred_fallthru
          _
        // Predicated region
        $region49: #{tpu_custom_call.1} parent=11 // pred_check
          %p380 = pneg %p262
        $region50: #{tpu_custom_call.1} parent=11 // pred_check_branch
          %382 = sbr.rel (%p380) target = $region52
        $region51: #{tpu_custom_call.1} parent=11 // pred_region
          _
        $region52: #{tpu_custom_call.1} parent=11 // pred_fallthru
          _
      $region12: #{tpu_custom_call.1} parent=5 // pred_fallthru
        _
      %p383 = scmp.lt.s32.totalorder %s26, 2
      // Predicated region
      $region53: #{tpu_custom_call.1} parent=5 // pred_check
        %p384 = pneg %p383
      $region54: #{tpu_custom_call.1} parent=5 // pred_check_branch
        %386 = sbr.rel (%p384) target = $region56
      $region55: #{tpu_custom_call.1} parent=5 // pred_region
        // Predicated region
        $region57: #{tpu_custom_call.1} parent=55 // pred_check
          %p387 = pneg %p46
        $region58: #{tpu_custom_call.1} parent=55 // pred_check_branch
          %389 = sbr.rel (%p387) target = $region60
        $region59: #{tpu_custom_call.1} parent=55 // pred_region
          %s390 = sand.u32 %s36, 1
          %s391 = scalar_lea.sflag [#allocation3], %s390
          %s392 = sand.u32 %s36, 1
          %s393 = smul.addr %s392, 112
          %s394 = scalar_lea.vmem [#allocation2], %s393
          %s395 = smul.u32 2, %s26
          %s397 = ssub.s32 1792, 1792
          %398 = vsyncadd %s391, %s397
          %s399 = smul.addr %s395, 7
          %s400 = smul.addr %s399, 128
          %s401 = scalar_lea.hbm %s0, %s400
          %s402 = sshll.u32 %s394, 4
          %s403 = int_to_ptr.vmem [resolvable:$true] %s402
          %408 = dma.hbm_to_vmem [thread:$0]  %s401, 1792, %s403, %s391, 128, 128, 8
        $region60: #{tpu_custom_call.1} parent=55 // pred_fallthru
          _
      $region56: #{tpu_custom_call.1} parent=5 // pred_fallthru
        _
      %p409 = scmp.le.s32.totalorder 1, %s26
      %p410 = scmp.lt.s32.totalorder %s26, 3
      %p411 = pnand %p409, %p410
      %p412 = pneg %p411
      // Predicated region
      $region61: #{tpu_custom_call.1} parent=5 // pred_check
        _
      $region62: #{tpu_custom_call.1} parent=5 // pred_check_branch
        %414 = sbr.rel (%p411) target = $region64
      $region63: #{tpu_custom_call.1} parent=5 // pred_region
        %s415 = ssub.s32 %s26, 1
        %s416 = sand.u32 %s39, 1
        %s417 = scalar_lea.sflag [#allocation3], %s416
        %s418 = sand.u32 %s39, 1
        %s419 = smul.addr %s418, 112
        %s420 = scalar_lea.vmem [#allocation2], %s419
        // Predicated region
        $region65: #{tpu_custom_call.1} parent=63 // pred_check
          %p421 = pneg %p52
        $region66: #{tpu_custom_call.1} parent=63 // pred_check_branch
          %423 = sbr.rel (%p421) target = $region68
        $region67: #{tpu_custom_call.1} parent=63 // pred_region
          %424 = dma.done %s417, 1792
        $region68: #{tpu_custom_call.1} parent=63 // pred_fallthru
          _
        // Predicated region
        $region69: #{tpu_custom_call.1} parent=63 // pred_check
          %p425 = pneg %p73
        $region70: #{tpu_custom_call.1} parent=63 // pred_check_branch
          %427 = sbr.rel (%p425) target = $region72
        $region71: #{tpu_custom_call.1} parent=63 // pred_region
          %428 = dma.done [#allocation6], 8192
        $region72: #{tpu_custom_call.1} parent=63 // pred_fallthru
          _
        // Predicated region
        $region73: #{tpu_custom_call.1} parent=63 // pred_check
          %p429 = pneg %p115
        $region74: #{tpu_custom_call.1} parent=63 // pred_check_branch
          %431 = sbr.rel (%p429) target = $region76
        $region75: #{tpu_custom_call.1} parent=63 // pred_region
          %432 = dma.done [#allocation6], 8192
        $region76: #{tpu_custom_call.1} parent=63 // pred_fallthru
          _
        // Predicated region
        $region77: #{tpu_custom_call.1} parent=63 // pred_check
          %p433 = pneg %p157
        $region78: #{tpu_custom_call.1} parent=63 // pred_check_branch
          %435 = sbr.rel (%p433) target = $region80
        $region79: #{tpu_custom_call.1} parent=63 // pred_region
          %436 = dma.done [#allocation9], 8192
        $region80: #{tpu_custom_call.1} parent=63 // pred_fallthru
          _
        // Predicated region
        $region81: #{tpu_custom_call.1} parent=63 // pred_check
          %p437 = pneg %p199
        $region82: #{tpu_custom_call.1} parent=63 // pred_check_branch
          %439 = sbr.rel (%p437) target = $region84
        $region83: #{tpu_custom_call.1} parent=63 // pred_region
          %440 = dma.done [#allocation9], 8192
        $region84: #{tpu_custom_call.1} parent=63 // pred_fallthru
          _
        // Predicated region
        $region85: #{tpu_custom_call.1} parent=63 // pred_check
          %p441 = pneg %p241
        $region86: #{tpu_custom_call.1} parent=63 // pred_check_branch
          %443 = sbr.rel (%p441) target = $region88
        $region87: #{tpu_custom_call.1} parent=63 // pred_region
          %444 = dma.done [#allocation12], 1024
        $region88: #{tpu_custom_call.1} parent=63 // pred_fallthru
          _
        %s445 = sand.u32 %s39, 1
        %s446 = scalar_lea.sflag [#allocation3], %s445
        %s447 = sand.u32 %s39, 1
        %s448 = smul.addr %s447, 112
        %s449 = scalar_lea.vmem [#allocation2], %s448
        %p450 = pneg %p52
        %p451 = pneg %p49
        %p452 = pneg %p73
        %p453 = pneg %p70
        %p454 = pneg %p94
        %p455 = pneg %p91
        %p456 = pneg %p115
        %p457 = pneg %p112
        %p458 = pneg %p136
        %p459 = pneg %p133
        %p460 = pneg %p157
        %p461 = pneg %p154
        %p462 = pneg %p178
        %p463 = pneg %p175
        %p464 = pneg %p199
        %p465 = pneg %p196
        %p466 = pneg %p220
        %p467 = pneg %p217
        %p468 = pneg %p241
        %p469 = pneg %p238
        %p470 = pneg %p262
        %p471 = pneg %p259
        %p472 = pneg %p288
        %p473 = pneg %p285
        %s474 = sand.u32 %s275, 1
        %s475 = scalar_lea.sflag [#allocation4], %s474
        %s476 = sand.u32 %s275, 1
        %s477 = smul.addr %s476, 2
        %s478 = scalar_lea.vmem [#allocation13], %s477
        %s479 = smul.u32 2, %s31
        %v481 = vld [vmem:[%s420] sm:$0xff]
        %v482 = vld [vmem:[%s420 + $0x8] sm:$0xff]
        %v483 = vld [vmem:[%s420 + $0x10] sm:$0xff]
        %v484 = vld [vmem:[%s420 + $0x18] sm:$0xff]
        %v485 = vld [vmem:[%s420 + $0x20] sm:$0xff]
        %v486 = vld [vmem:[%s420 + $0x28] sm:$0xff]
        %v487 = vld [vmem:[%s420 + $0x30] sm:$0xff]
        %vm493 = vcmask 1046528
        %v494 = vrot.slane %v482, 1
        %v495 = vrot.slane %v483, 1
        %v496 = vsel %vm493, %v494, %v495
        %v497 = vrot.slane %v484, 1
        %v498 = vsel %vm493, %v495, %v497
        %v499 = vrot.slane %v485, 1
        %v500 = vsel %vm493, %v497, %v499
        %v501 = vrot.slane %v486, 1
        %v502 = vsel %vm493, %v499, %v501
        %vm510 = vcmask 1045504
        %v511 = vrot.slane %v482, 2
        %v512 = vrot.slane %v483, 2
        %v513 = vsel %vm510, %v511, %v512
        %v514 = vrot.slane %v484, 2
        %v515 = vsel %vm510, %v512, %v514
        %v516 = vrot.slane %v485, 2
        %v517 = vsel %vm510, %v514, %v516
        %v518 = vrot.slane %v486, 2
        %v519 = vsel %vm510, %v516, %v518
        %v520 = vrot.slane %v487, 2
        %v521 = vsel %vm510, %v518, %v520
        %vm528 = vcmask 1044480
        %v529 = vrot.slane %v482, 3
        %v530 = vrot.slane %v483, 3
        %v531 = vsel %vm528, %v529, %v530
        %v532 = vrot.slane %v484, 3
        %v533 = vsel %vm528, %v530, %v532
        %v534 = vrot.slane %v485, 3
        %v535 = vsel %vm528, %v532, %v534
        %v536 = vrot.slane %v486, 3
        %v537 = vsel %vm528, %v534, %v536
        %v538 = vrot.slane %v487, 3
        %v539 = vsel %vm528, %v536, %v538
        %vm546 = vcmask 1043456
        %v547 = vrot.slane %v482, 4
        %v548 = vrot.slane %v483, 4
        %v549 = vsel %vm546, %v547, %v548
        %v550 = vrot.slane %v484, 4
        %v551 = vsel %vm546, %v548, %v550
        %v552 = vrot.slane %v485, 4
        %v553 = vsel %vm546, %v550, %v552
        %v554 = vrot.slane %v486, 4
        %v555 = vsel %vm546, %v552, %v554
        %v556 = vrot.slane %v487, 4
        %v557 = vsel %vm546, %v554, %v556
        %vm564 = vcmask 1042432
        %v565 = vrot.slane %v482, 5
        %v566 = vrot.slane %v483, 5
        %v567 = vsel %vm564, %v565, %v566
        %v568 = vrot.slane %v484, 5
        %v569 = vsel %vm564, %v566, %v568
        %v570 = vrot.slane %v485, 5
        %v571 = vsel %vm564, %v568, %v570
        %v572 = vrot.slane %v486, 5
        %v573 = vsel %vm564, %v570, %v572
        %v574 = vrot.slane %v487, 5
        %v575 = vsel %vm564, %v572, %v574
        %vm582 = vcmask 1041408
        %v583 = vrot.slane %v482, 6
        %v584 = vrot.slane %v483, 6
        %v585 = vsel %vm582, %v583, %v584
        %v586 = vrot.slane %v484, 6
        %v587 = vsel %vm582, %v584, %v586
        %v588 = vrot.slane %v485, 6
        %v589 = vsel %vm582, %v586, %v588
        %v590 = vrot.slane %v486, 6
        %v591 = vsel %vm582, %v588, %v590
        %v592 = vrot.slane %v487, 6
        %v593 = vsel %vm582, %v590, %v592
        %vm600 = vcmask 1040384
        %v601 = vrot.slane %v482, 7
        %v602 = vrot.slane %v483, 7
        %v603 = vsel %vm600, %v601, %v602
        %v604 = vrot.slane %v484, 7
        %v605 = vsel %vm600, %v602, %v604
        %v606 = vrot.slane %v485, 7
        %v607 = vsel %vm600, %v604, %v606
        %v608 = vrot.slane %v486, 7
        %v609 = vsel %vm600, %v606, %v608
        %v610 = vrot.slane %v487, 7
        %v611 = vsel %vm600, %v608, %v610
        %v618 = vpack.c.bf16 %v482, %v481
        %v619 = vpack.c.bf16 %v496, %v494
        %v620 = vpack.c.bf16 %v513, %v511
        %v621 = vpack.c.bf16 %v531, %v529
        %v622 = vpack.c.bf16 %v549, %v547
        %v623 = vpack.c.bf16 %v567, %v565
        %v624 = vpack.c.bf16 %v585, %v583
        %v625 = vpack.c.bf16 %v603, %v601
        %v626 = vpack.c.bf16 %v484, %v483
        %v627 = vpack.c.bf16 %v500, %v498
        %v628 = vpack.c.bf16 %v517, %v515
        %v629 = vpack.c.bf16 %v535, %v533
        %v630 = vpack.c.bf16 %v553, %v551
        %v631 = vpack.c.bf16 %v571, %v569
        %v632 = vpack.c.bf16 %v589, %v587
        %v633 = vpack.c.bf16 %v607, %v605
        %v634 = vpack.c.bf16 %v486, %v485
        %v635 = vpack.c.bf16 %v501, %v502
        %v636 = vpack.c.bf16 %v521, %v519
        %v637 = vpack.c.bf16 %v539, %v537
        %v638 = vpack.c.bf16 %v557, %v555
        %v639 = vpack.c.bf16 %v575, %v573
        %v640 = vpack.c.bf16 %v593, %v591
        %v641 = vpack.c.bf16 %v611, %v609
        %v642 = vld [vmem:[#allocation5] sm:$0xf]
        %v643 = vld [vmem:[#allocation5 + $0x4] sm:$0xf]
        %v644 = vld [vmem:[#allocation5 + $0x8] sm:$0xf]
        %v645 = vld [vmem:[#allocation5 + $0xc] sm:$0xf]
        %v646 = vld [vmem:[#allocation5 + $0x10] sm:$0xf]
        %v647 = vld [vmem:[#allocation5 + $0x14] sm:$0xf]
        %v648 = vld [vmem:[#allocation5 + $0x18] sm:$0xf]
        %v649 = vld [vmem:[#allocation5 + $0x1c] sm:$0xf]
        %v650 = vld [vmem:[#allocation5 + $0x20] sm:$0xf]
        %v651 = vld [vmem:[#allocation5 + $0x24] sm:$0xf]
        %v652 = vld [vmem:[#allocation5 + $0x28] sm:$0xf]
        %v653 = vld [vmem:[#allocation5 + $0x2c] sm:$0xf]
        %v654 = vld [vmem:[#allocation5 + $0x30] sm:$0xf]
        %v655 = vld [vmem:[#allocation5 + $0x34] sm:$0xf]
        %v656 = vld [vmem:[#allocation5 + $0x38] sm:$0xf]
        %v657 = vld [vmem:[#allocation5 + $0x3c] sm:$0xf]
        %v658 = vld [vmem:[#allocation5 + $0x40] sm:$0xf]
        %v659 = vld [vmem:[#allocation5 + $0x44] sm:$0xf]
        %v660 = vld [vmem:[#allocation5 + $0x48] sm:$0xf]
        %v661 = vld [vmem:[#allocation5 + $0x4c] sm:$0xf]
        %v662 = vld [vmem:[#allocation5 + $0x50] sm:$0xf]
        %v663 = vld [vmem:[#allocation5 + $0x54] sm:$0xf]
        %v664 = vld [vmem:[#allocation5 + $0x58] sm:$0xf]
        %v665 = vld [vmem:[#allocation5 + $0x5c] sm:$0xf]
        %v666 = vld [vmem:[#allocation5 + $0x60] sm:$0xf]
        %v667 = vld [vmem:[#allocation5 + $0x64] sm:$0xf]
        %v668 = vld [vmem:[#allocation5 + $0x68] sm:$0xf]
        %v669 = vld [vmem:[#allocation5 + $0x6c] sm:$0xf]
        %v670 = vld [vmem:[#allocation5 + $0x70] sm:$0xf]
        %v671 = vld [vmem:[#allocation5 + $0x74] sm:$0xf]
        %v672 = vld [vmem:[#allocation5 + $0x78] sm:$0xf]
        %v673 = vld [vmem:[#allocation5 + $0x7c] sm:$0xf]
        %v674 = vld [vmem:[#allocation5 + $0x80] sm:$0xf]
        %v675 = vld [vmem:[#allocation5 + $0x84] sm:$0xf]
        %v676 = vld [vmem:[#allocation5 + $0x88] sm:$0xf]
        %v677 = vld [vmem:[#allocation5 + $0x8c] sm:$0xf]
        %v678 = vld [vmem:[#allocation5 + $0x90] sm:$0xf]
        %v679 = vld [vmem:[#allocation5 + $0x94] sm:$0xf]
        %v680 = vld [vmem:[#allocation5 + $0x98] sm:$0xf]
        %v681 = vld [vmem:[#allocation5 + $0x9c] sm:$0xf]
        %v682 = vld [vmem:[#allocation5 + $0xa0] sm:$0xf]
        %v683 = vld [vmem:[#allocation5 + $0xa4] sm:$0xf]
        %v684 = vld [vmem:[#allocation5 + $0xa8] sm:$0xf]
        %v685 = vld [vmem:[#allocation5 + $0xac] sm:$0xf]
        %v686 = vld [vmem:[#allocation5 + $0xb0] sm:$0xf]
        %v687 = vld [vmem:[#allocation5 + $0xb4] sm:$0xf]
        %v688 = vld [vmem:[#allocation5 + $0xb8] sm:$0xf]
        %v689 = vld [vmem:[#allocation5 + $0xbc] sm:$0xf]
        %v690 = vld [vmem:[#allocation5 + $0xc0] sm:$0xf]
        %v691 = vld [vmem:[#allocation5 + $0xc4] sm:$0xf]
        %v692 = vld [vmem:[#allocation5 + $0xc8] sm:$0xf]
        %v693 = vld [vmem:[#allocation5 + $0xcc] sm:$0xf]
        %v694 = vld [vmem:[#allocation5 + $0xd0] sm:$0xf]
        %v695 = vld [vmem:[#allocation5 + $0xd4] sm:$0xf]
        %v696 = vld [vmem:[#allocation5 + $0xd8] sm:$0xf]
        %v697 = vld [vmem:[#allocation5 + $0xdc] sm:$0xf]
        %v698 = vld [vmem:[#allocation5 + $0xe0] sm:$0xf]
        %v699 = vld [vmem:[#allocation5 + $0xe4] sm:$0xf]
        %v700 = vld [vmem:[#allocation5 + $0xe8] sm:$0xf]
        %v701 = vld [vmem:[#allocation5 + $0xec] sm:$0xf]
        %v702 = vld [vmem:[#allocation5 + $0xf0] sm:$0xf]
        %v703 = vld [vmem:[#allocation5 + $0xf4] sm:$0xf]
        %v704 = vld [vmem:[#allocation5 + $0xf8] sm:$0xf]
        %v705 = vld [vmem:[#allocation5 + $0xfc] sm:$0xf]
        %v706 = vld [vmem:[#allocation5 + $0x100] sm:$0xf]
        %v707 = vld [vmem:[#allocation5 + $0x104] sm:$0xf]
        %v708 = vld [vmem:[#allocation5 + $0x108] sm:$0xf]
        %v709 = vld [vmem:[#allocation5 + $0x10c] sm:$0xf]
        %v710 = vld [vmem:[#allocation5 + $0x110] sm:$0xf]
        %v711 = vld [vmem:[#allocation5 + $0x114] sm:$0xf]
        %v712 = vld [vmem:[#allocation5 + $0x118] sm:$0xf]
        %v713 = vld [vmem:[#allocation5 + $0x11c] sm:$0xf]
        %v714 = vld [vmem:[#allocation5 + $0x120] sm:$0xf]
        %v715 = vld [vmem:[#allocation5 + $0x124] sm:$0xf]
        %v716 = vld [vmem:[#allocation5 + $0x128] sm:$0xf]
        %v717 = vld [vmem:[#allocation5 + $0x12c] sm:$0xf]
        %v718 = vld [vmem:[#allocation5 + $0x130] sm:$0xf]
        %v719 = vld [vmem:[#allocation5 + $0x134] sm:$0xf]
        %v720 = vld [vmem:[#allocation5 + $0x138] sm:$0xf]
        %v721 = vld [vmem:[#allocation5 + $0x13c] sm:$0xf]
        %v722 = vld [vmem:[#allocation5 + $0x140] sm:$0xf]
        %v723 = vld [vmem:[#allocation5 + $0x144] sm:$0xf]
        %v724 = vld [vmem:[#allocation5 + $0x148] sm:$0xf]
        %v725 = vld [vmem:[#allocation5 + $0x14c] sm:$0xf]
        %v726 = vld [vmem:[#allocation5 + $0x150] sm:$0xf]
        %v727 = vld [vmem:[#allocation5 + $0x154] sm:$0xf]
        %v728 = vld [vmem:[#allocation5 + $0x158] sm:$0xf]
        %v729 = vld [vmem:[#allocation5 + $0x15c] sm:$0xf]
        %v730 = vld [vmem:[#allocation5 + $0x160] sm:$0xf]
        %v731 = vld [vmem:[#allocation5 + $0x164] sm:$0xf]
        %v732 = vld [vmem:[#allocation5 + $0x168] sm:$0xf]
        %v733 = vld [vmem:[#allocation5 + $0x16c] sm:$0xf]
        %v734 = vld [vmem:[#allocation5 + $0x170] sm:$0xf]
        %v735 = vld [vmem:[#allocation5 + $0x174] sm:$0xf]
        %v736 = vld [vmem:[#allocation5 + $0x178] sm:$0xf]
        %v737 = vld [vmem:[#allocation5 + $0x17c] sm:$0xf]
        %v738 = vld [vmem:[#allocation5 + $0x180] sm:$0xf]
        %v739 = vld [vmem:[#allocation5 + $0x184] sm:$0xf]
        %v740 = vld [vmem:[#allocation5 + $0x188] sm:$0xf]
        %v741 = vld [vmem:[#allocation5 + $0x18c] sm:$0xf]
        %v742 = vld [vmem:[#allocation5 + $0x190] sm:$0xf]
        %v743 = vld [vmem:[#allocation5 + $0x194] sm:$0xf]
        %v744 = vld [vmem:[#allocation5 + $0x198] sm:$0xf]
        %v745 = vld [vmem:[#allocation5 + $0x19c] sm:$0xf]
        %v746 = vld [vmem:[#allocation5 + $0x1a0] sm:$0xf]
        %v747 = vld [vmem:[#allocation5 + $0x1a4] sm:$0xf]
        %v748 = vld [vmem:[#allocation5 + $0x1a8] sm:$0xf]
        %v749 = vld [vmem:[#allocation5 + $0x1ac] sm:$0xf]
        %v750 = vld [vmem:[#allocation5 + $0x1b0] sm:$0xf]
        %v751 = vld [vmem:[#allocation5 + $0x1b4] sm:$0xf]
        %v752 = vld [vmem:[#allocation5 + $0x1b8] sm:$0xf]
        %v753 = vld [vmem:[#allocation5 + $0x1bc] sm:$0xf]
        %v754 = vld [vmem:[#allocation5 + $0x1c0] sm:$0xf]
        %v755 = vld [vmem:[#allocation5 + $0x1c4] sm:$0xf]
        %v756 = vld [vmem:[#allocation5 + $0x1c8] sm:$0xf]
        %v757 = vld [vmem:[#allocation5 + $0x1cc] sm:$0xf]
        %v758 = vld [vmem:[#allocation5 + $0x1d0] sm:$0xf]
        %v759 = vld [vmem:[#allocation5 + $0x1d4] sm:$0xf]
        %v760 = vld [vmem:[#allocation5 + $0x1d8] sm:$0xf]
        %v761 = vld [vmem:[#allocation5 + $0x1dc] sm:$0xf]
        %v762 = vld [vmem:[#allocation5 + $0x1e0] sm:$0xf]
        %v763 = vld [vmem:[#allocation5 + $0x1e4] sm:$0xf]
        %v764 = vld [vmem:[#allocation5 + $0x1e8] sm:$0xf]
        %v765 = vld [vmem:[#allocation5 + $0x1ec] sm:$0xf]
        %v766 = vld [vmem:[#allocation5 + $0x1f0] sm:$0xf]
        %v767 = vld [vmem:[#allocation5 + $0x1f4] sm:$0xf]
        %v768 = vld [vmem:[#allocation5 + $0x1f8] sm:$0xf]
        %v769 = vld [vmem:[#allocation5 + $0x1fc] sm:$0xf]
        %v770 = vld [vmem:[%s2] sm:$0x1]
        %v772 = vlaneseq
        %v773 = vshrl.u32 %v772, 7
        %v774 = vsub.s32 0, %v773
        %v775 = vrot.slane %v770, %v774
        %vm777 = vsmask.f32 4352
        %v779 = vshrl.u32 %v618, 16
        %v781 = vrot.slane %v779, 3
        %v782 = vshll.u32 %v618, 16
        %v784 = vrot.slane %v782, 4
        %v785 = vor.u32 %v781, %v784
        %v787 = vshrl.u32 %v626, 16
        %v789 = vrot.slane %v787, 3
        %v790 = vshll.u32 %v626, 16
        %v792 = vrot.slane %v790, 4
        %v793 = vor.u32 %v789, %v792
        %v794 = vsel %vm777, %v785, %v793
        %v796 = vshrl.u32 %v619, 16
        %v798 = vrot.slane %v796, 3
        %v799 = vshll.u32 %v619, 16
        %v801 = vrot.slane %v799, 4
        %v802 = vor.u32 %v798, %v801
        %v804 = vshrl.u32 %v627, 16
        %v806 = vrot.slane %v804, 3
        %v807 = vshll.u32 %v627, 16
        %v809 = vrot.slane %v807, 4
        %v810 = vor.u32 %v806, %v809
        %v811 = vsel %vm777, %v802, %v810
        %v813 = vshrl.u32 %v620, 16
        %v815 = vrot.slane %v813, 3
        %v816 = vshll.u32 %v620, 16
        %v818 = vrot.slane %v816, 4
        %v819 = vor.u32 %v815, %v818
        %v821 = vshrl.u32 %v628, 16
        %v823 = vrot.slane %v821, 3
        %v824 = vshll.u32 %v628, 16
        %v826 = vrot.slane %v824, 4
        %v827 = vor.u32 %v823, %v826
        %v828 = vsel %vm777, %v819, %v827
        %v830 = vshrl.u32 %v621, 16
        %v832 = vrot.slane %v830, 3
        %v833 = vshll.u32 %v621, 16
        %v835 = vrot.slane %v833, 4
        %v836 = vor.u32 %v832, %v835
        %v838 = vshrl.u32 %v629, 16
        %v840 = vrot.slane %v838, 3
        %v841 = vshll.u32 %v629, 16
        %v843 = vrot.slane %v841, 4
        %v844 = vor.u32 %v840, %v843
        %v845 = vsel %vm777, %v836, %v844
        %v847 = vshrl.u32 %v622, 16
        %v849 = vrot.slane %v847, 3
        %v850 = vshll.u32 %v622, 16
        %v852 = vrot.slane %v850, 4
        %v853 = vor.u32 %v849, %v852
        %v855 = vshrl.u32 %v630, 16
        %v857 = vrot.slane %v855, 3
        %v858 = vshll.u32 %v630, 16
        %v860 = vrot.slane %v858, 4
        %v861 = vor.u32 %v857, %v860
        %v862 = vsel %vm777, %v853, %v861
        %v864 = vshrl.u32 %v623, 16
        %v866 = vrot.slane %v864, 3
        %v867 = vshll.u32 %v623, 16
        %v869 = vrot.slane %v867, 4
        %v870 = vor.u32 %v866, %v869
        %v872 = vshrl.u32 %v631, 16
        %v874 = vrot.slane %v872, 3
        %v875 = vshll.u32 %v631, 16
        %v877 = vrot.slane %v875, 4
        %v878 = vor.u32 %v874, %v877
        %v879 = vsel %vm777, %v870, %v878
        %v881 = vshrl.u32 %v624, 16
        %v883 = vrot.slane %v881, 3
        %v884 = vshll.u32 %v624, 16
        %v886 = vrot.slane %v884, 4
        %v887 = vor.u32 %v883, %v886
        %v889 = vshrl.u32 %v632, 16
        %v891 = vrot.slane %v889, 3
        %v892 = vshll.u32 %v632, 16
        %v894 = vrot.slane %v892, 4
        %v895 = vor.u32 %v891, %v894
        %v896 = vsel %vm777, %v887, %v895
        %v898 = vshrl.u32 %v625, 16
        %v900 = vrot.slane %v898, 3
        %v901 = vshll.u32 %v625, 16
        %v903 = vrot.slane %v901, 4
        %v904 = vor.u32 %v900, %v903
        %v906 = vshrl.u32 %v633, 16
        %v908 = vrot.slane %v906, 3
        %v909 = vshll.u32 %v633, 16
        %v911 = vrot.slane %v909, 4
        %v912 = vor.u32 %v908, %v911
        %v913 = vsel %vm777, %v904, %v912
        %v915 = vshrl.u32 %v634, 16
        %v917 = vrot.slane %v915, 3
        %v918 = vshll.u32 %v634, 16
        %v920 = vrot.slane %v918, 4
        %v921 = vor.u32 %v917, %v920
        %v922 = vsel %vm777, %v793, %v921
        %v924 = vshrl.u32 %v635, 16
        %v926 = vrot.slane %v924, 3
        %v927 = vshll.u32 %v635, 16
        %v929 = vrot.slane %v927, 4
        %v930 = vor.u32 %v926, %v929
        %v931 = vsel %vm777, %v810, %v930
        %v933 = vshrl.u32 %v636, 16
        %v935 = vrot.slane %v933, 3
        %v936 = vshll.u32 %v636, 16
        %v938 = vrot.slane %v936, 4
        %v939 = vor.u32 %v935, %v938
        %v940 = vsel %vm777, %v827, %v939
        %v942 = vshrl.u32 %v637, 16
        %v944 = vrot.slane %v942, 3
        %v945 = vshll.u32 %v637, 16
        %v947 = vrot.slane %v945, 4
        %v948 = vor.u32 %v944, %v947
        %v949 = vsel %vm777, %v844, %v948
        %v951 = vshrl.u32 %v638, 16
        %v953 = vrot.slane %v951, 3
        %v954 = vshll.u32 %v638, 16
        %v956 = vrot.slane %v954, 4
        %v957 = vor.u32 %v953, %v956
        %v958 = vsel %vm777, %v861, %v957
        %v960 = vshrl.u32 %v639, 16
        %v962 = vrot.slane %v960, 3
        %v963 = vshll.u32 %v639, 16
        %v965 = vrot.slane %v963, 4
        %v966 = vor.u32 %v962, %v965
        %v967 = vsel %vm777, %v878, %v966
        %v969 = vshrl.u32 %v640, 16
        %v971 = vrot.slane %v969, 3
        %v972 = vshll.u32 %v640, 16
        %v974 = vrot.slane %v972, 4
        %v975 = vor.u32 %v971, %v974
        %v976 = vsel %vm777, %v895, %v975
        %v978 = vshrl.u32 %v641, 16
        %v980 = vrot.slane %v978, 3
        %v981 = vshll.u32 %v641, 16
        %v983 = vrot.slane %v981, 4
        %v984 = vor.u32 %v980, %v983
        %v985 = vsel %vm777, %v912, %v984
        %v1138 = vunpack.c.l.b16 %v642
        %v1139 = vunpack.c.l.b16 %v643
        %v1140 = vunpack.c.l.b16 %v644
        %v1141 = vunpack.c.l.b16 %v645
        %v1142 = vunpack.c.l.b16 %v646
        %v1143 = vunpack.c.l.b16 %v647
        %v1144 = vunpack.c.l.b16 %v648
        %v1145 = vunpack.c.l.b16 %v649
        %v1146 = vunpack.c.l.b16 %v650
        %v1147 = vunpack.c.l.b16 %v651
        %v1148 = vunpack.c.l.b16 %v652
        %v1149 = vunpack.c.l.b16 %v653
        %v1150 = vunpack.c.l.b16 %v654
        %v1151 = vunpack.c.l.b16 %v655
        %v1152 = vunpack.c.l.b16 %v656
        %v1153 = vunpack.c.l.b16 %v657
        %v1154 = vunpack.c.l.b16 %v658
        %v1155 = vunpack.c.l.b16 %v659
        %v1156 = vunpack.c.l.b16 %v660
        %v1157 = vunpack.c.l.b16 %v661
        %v1158 = vunpack.c.l.b16 %v662
        %v1159 = vunpack.c.l.b16 %v663
        %v1160 = vunpack.c.l.b16 %v664
        %v1161 = vunpack.c.l.b16 %v665
        %v1162 = vunpack.c.l.b16 %v666
        %v1163 = vunpack.c.l.b16 %v667
        %v1164 = vunpack.c.l.b16 %v668
        %v1165 = vunpack.c.l.b16 %v669
        %v1166 = vunpack.c.l.b16 %v670
        %v1167 = vunpack.c.l.b16 %v671
        %v1168 = vunpack.c.l.b16 %v672
        %v1169 = vunpack.c.l.b16 %v673
        %v1170 = vunpack.c.l.b16 %v674
        %v1171 = vunpack.c.l.b16 %v675
        %v1172 = vunpack.c.l.b16 %v676
        %v1173 = vunpack.c.l.b16 %v677
        %v1174 = vunpack.c.l.b16 %v678
        %v1175 = vunpack.c.l.b16 %v679
        %v1176 = vunpack.c.l.b16 %v680
        %v1177 = vunpack.c.l.b16 %v681
        %v1178 = vunpack.c.l.b16 %v682
        %v1179 = vunpack.c.l.b16 %v683
        %v1180 = vunpack.c.l.b16 %v684
        %v1181 = vunpack.c.l.b16 %v685
        %v1182 = vunpack.c.l.b16 %v686
        %v1183 = vunpack.c.l.b16 %v687
        %v1184 = vunpack.c.l.b16 %v688
        %v1185 = vunpack.c.l.b16 %v689
        %v1186 = vunpack.c.l.b16 %v690
        %v1187 = vunpack.c.l.b16 %v691
        %v1188 = vunpack.c.l.b16 %v692
        %v1189 = vunpack.c.l.b16 %v693
        %v1190 = vunpack.c.l.b16 %v694
        %v1191 = vunpack.c.l.b16 %v695
        %v1192 = vunpack.c.l.b16 %v696
        %v1193 = vunpack.c.l.b16 %v697
        %v1194 = vunpack.c.l.b16 %v698
        %v1195 = vunpack.c.l.b16 %v699
        %v1196 = vunpack.c.l.b16 %v700
        %v1197 = vunpack.c.l.b16 %v701
        %v1198 = vunpack.c.l.b16 %v702
        %v1199 = vunpack.c.l.b16 %v703
        %v1200 = vunpack.c.l.b16 %v704
        %v1201 = vunpack.c.l.b16 %v705
        %v1202 = vunpack.c.l.b16 %v706
        %v1203 = vunpack.c.l.b16 %v707
        %v1204 = vunpack.c.l.b16 %v708
        %v1205 = vunpack.c.l.b16 %v709
        %v1206 = vunpack.c.l.b16 %v710
        %v1207 = vunpack.c.l.b16 %v711
        %v1208 = vunpack.c.l.b16 %v712
        %v1209 = vunpack.c.l.b16 %v713
        %v1210 = vunpack.c.l.b16 %v714
        %v1211 = vunpack.c.l.b16 %v715
        %v1212 = vunpack.c.l.b16 %v716
        %v1213 = vunpack.c.l.b16 %v717
        %v1214 = vunpack.c.l.b16 %v718
        %v1215 = vunpack.c.l.b16 %v719
        %v1216 = vunpack.c.l.b16 %v720
        %v1217 = vunpack.c.l.b16 %v721
        %v1218 = vunpack.c.l.b16 %v722
        %v1219 = vunpack.c.l.b16 %v723
        %v1220 = vunpack.c.l.b16 %v724
        %v1221 = vunpack.c.l.b16 %v725
        %v1222 = vunpack.c.l.b16 %v726
        %v1223 = vunpack.c.l.b16 %v727
        %v1224 = vunpack.c.l.b16 %v728
        %v1225 = vunpack.c.l.b16 %v729
        %v1226 = vunpack.c.l.b16 %v730
        %v1227 = vunpack.c.l.b16 %v731
        %v1228 = vunpack.c.l.b16 %v732
        %v1229 = vunpack.c.l.b16 %v733
        %v1230 = vunpack.c.l.b16 %v734
        %v1231 = vunpack.c.l.b16 %v735
        %v1232 = vunpack.c.l.b16 %v736
        %v1233 = vunpack.c.l.b16 %v737
        %v1234 = vunpack.c.l.b16 %v738
        %v1235 = vunpack.c.l.b16 %v739
        %v1236 = vunpack.c.l.b16 %v740
        %v1237 = vunpack.c.l.b16 %v741
        %v1238 = vunpack.c.l.b16 %v742
        %v1239 = vunpack.c.l.b16 %v743
        %v1240 = vunpack.c.l.b16 %v744
        %v1241 = vunpack.c.l.b16 %v745
        %v1242 = vunpack.c.l.b16 %v746
        %v1243 = vunpack.c.l.b16 %v747
        %v1244 = vunpack.c.l.b16 %v748
        %v1245 = vunpack.c.l.b16 %v749
        %v1246 = vunpack.c.l.b16 %v750
        %v1247 = vunpack.c.l.b16 %v751
        %v1248 = vunpack.c.l.b16 %v752
        %v1249 = vunpack.c.l.b16 %v753
        %v1250 = vunpack.c.l.b16 %v754
        %v1251 = vunpack.c.l.b16 %v755
        %v1252 = vunpack.c.l.b16 %v756
        %v1253 = vunpack.c.l.b16 %v757
        %v1254 = vunpack.c.l.b16 %v758
        %v1255 = vunpack.c.l.b16 %v759
        %v1256 = vunpack.c.l.b16 %v760
        %v1257 = vunpack.c.l.b16 %v761
        %v1258 = vunpack.c.l.b16 %v762
        %v1259 = vunpack.c.l.b16 %v763
        %v1260 = vunpack.c.l.b16 %v764
        %v1261 = vunpack.c.l.b16 %v765
        %v1262 = vunpack.c.l.b16 %v766
        %v1263 = vunpack.c.l.b16 %v767
        %v1264 = vunpack.c.l.b16 %v768
        %v1265 = vunpack.c.l.b16 %v769
        %v1266 = vpack.c.b16 %v1139, %v1138
        %v1267 = vpack.c.b16 %v1141, %v1140
        %v1268 = vpack.c.b16 %v1143, %v1142
        %v1269 = vpack.c.b16 %v1145, %v1144
        %v1270 = vpack.c.b16 %v1147, %v1146
        %v1271 = vpack.c.b16 %v1149, %v1148
        %v1272 = vpack.c.b16 %v1151, %v1150
        %v1273 = vpack.c.b16 %v1153, %v1152
        %v1274 = vpack.c.b16 %v1155, %v1154
        %v1275 = vpack.c.b16 %v1157, %v1156
        %v1276 = vpack.c.b16 %v1159, %v1158
        %v1277 = vpack.c.b16 %v1161, %v1160
        %v1278 = vpack.c.b16 %v1163, %v1162
        %v1279 = vpack.c.b16 %v1165, %v1164
        %v1280 = vpack.c.b16 %v1167, %v1166
        %v1281 = vpack.c.b16 %v1169, %v1168
        %v1282 = vpack.c.b16 %v1171, %v1170
        %v1283 = vpack.c.b16 %v1173, %v1172
        %v1284 = vpack.c.b16 %v1175, %v1174
        %v1285 = vpack.c.b16 %v1177, %v1176
        %v1286 = vpack.c.b16 %v1179, %v1178
        %v1287 = vpack.c.b16 %v1181, %v1180
        %v1288 = vpack.c.b16 %v1183, %v1182
        %v1289 = vpack.c.b16 %v1185, %v1184
        %v1290 = vpack.c.b16 %v1187, %v1186
        %v1291 = vpack.c.b16 %v1189, %v1188
        %v1292 = vpack.c.b16 %v1191, %v1190
        %v1293 = vpack.c.b16 %v1193, %v1192
        %v1294 = vpack.c.b16 %v1195, %v1194
        %v1295 = vpack.c.b16 %v1197, %v1196
        %v1296 = vpack.c.b16 %v1199, %v1198
        %v1297 = vpack.c.b16 %v1201, %v1200
        %v1298 = vpack.c.b16 %v1203, %v1202
        %v1299 = vpack.c.b16 %v1205, %v1204
        %v1300 = vpack.c.b16 %v1207, %v1206
        %v1301 = vpack.c.b16 %v1209, %v1208
        %v1302 = vpack.c.b16 %v1211, %v1210
        %v1303 = vpack.c.b16 %v1213, %v1212
        %v1304 = vpack.c.b16 %v1215, %v1214
        %v1305 = vpack.c.b16 %v1217, %v1216
        %v1306 = vpack.c.b16 %v1219, %v1218
        %v1307 = vpack.c.b16 %v1221, %v1220
        %v1308 = vpack.c.b16 %v1223, %v1222
        %v1309 = vpack.c.b16 %v1225, %v1224
        %v1310 = vpack.c.b16 %v1227, %v1226
        %v1311 = vpack.c.b16 %v1229, %v1228
        %v1312 = vpack.c.b16 %v1231, %v1230
        %v1313 = vpack.c.b16 %v1233, %v1232
        %v1314 = vpack.c.b16 %v1235, %v1234
        %v1315 = vpack.c.b16 %v1237, %v1236
        %v1316 = vpack.c.b16 %v1239, %v1238
        %v1317 = vpack.c.b16 %v1241, %v1240
        %v1318 = vpack.c.b16 %v1243, %v1242
        %v1319 = vpack.c.b16 %v1245, %v1244
        %v1320 = vpack.c.b16 %v1247, %v1246
        %v1321 = vpack.c.b16 %v1249, %v1248
        %v1322 = vpack.c.b16 %v1251, %v1250
        %v1323 = vpack.c.b16 %v1253, %v1252
        %v1324 = vpack.c.b16 %v1255, %v1254
        %v1325 = vpack.c.b16 %v1257, %v1256
        %v1326 = vpack.c.b16 %v1259, %v1258
        %v1327 = vpack.c.b16 %v1261, %v1260
        %v1328 = vpack.c.b16 %v1263, %v1262
        %v1329 = vpack.c.b16 %v1265, %v1264
        %1394 = vmatprep.subr.bf16.mxu0 0
        %1395 = vmatpush1.bf16.msra.mxu0 %v1266
        %1396 = vmatprep.subr.bf16.mxu0 0
        %1397 = vmatpush1.bf16.msra.mxu0 %v1267
        %1398 = vmatprep.subr.bf16.mxu0 0
        %1399 = vmatpush1.bf16.msra.mxu0 %v1268
        %1400 = vmatprep.subr.bf16.mxu0 0
        %1401 = vmatpush1.bf16.msra.mxu0 %v1269
        %1402 = vmatprep.subr.bf16.mxu0 0
        %1403 = vmatpush1.bf16.msra.mxu0 %v1270
        %1404 = vmatprep.subr.bf16.mxu0 0
        %1405 = vmatpush1.bf16.msra.mxu0 %v1271
        %1406 = vmatprep.subr.bf16.mxu0 0
        %1407 = vmatpush1.bf16.msra.mxu0 %v1272
        %1408 = vmatprep.subr.bf16.mxu0 0
        %1409 = vmatpush1.bf16.msra.mxu0 %v1273
        %1410 = vmatprep.subr.bf16.mxu0 0
        %1411 = vmatpush1.bf16.msra.mxu0 %v1274
        %1412 = vmatprep.subr.bf16.mxu0 0
        %1413 = vmatpush1.bf16.msra.mxu0 %v1275
        %1414 = vmatprep.subr.bf16.mxu0 0
        %1415 = vmatpush1.bf16.msra.mxu0 %v1276
        %1416 = vmatprep.subr.bf16.mxu0 0
        %1417 = vmatpush1.bf16.msra.mxu0 %v1277
        %1418 = vmatprep.subr.bf16.mxu0 0
        %1419 = vmatpush1.bf16.msra.mxu0 %v1278
        %1420 = vmatprep.subr.bf16.mxu0 0
        %1421 = vmatpush1.bf16.msra.mxu0 %v1279
        %1422 = vmatprep.subr.bf16.mxu0 0
        %1423 = vmatpush1.bf16.msra.mxu0 %v1280
        %1424 = vmatprep.subr.bf16.mxu0 0
        %1425 = vmatpush1.bf16.msra.mxu0 %v1281
        %1426 = vmatprep.mubr.bf16.mxu0 %v811
        %1427 = vmatmul.mubr.bf16.gmra.mrb[0].mxu0 %v794
        %v1428 = vpop.f32.mrb[0].mxu0
        %v1429 = vadd.f32 %v775, %v1428
        %v1430 = vpop.f32.mrb[0].mxu0
        %v1431 = vpop.f32.mrb[0].mxu0
        %v1432 = vadd.f32 %v775, %v1431
        %v1433 = vpop.f32.mrb[0].mxu0
        %1434 = vmatprep.mubr.bf16.mxu0 %v931
        %1435 = vmatmul.mubr.bf16.gmra.mrb[0].mxu0 %v922
        %v1436 = vpop.f32.mrb[0].mxu0
        %v1437 = vadd.f32 %v775, %v1436
        %v1438 = vpop.f32.mrb[0].mxu0
        %v1439 = vpop.f32.mrb[0].mxu0
        %v1440 = vadd.f32 %v775, %v1439
        %v1441 = vpop.f32.mrb[0].mxu0
        %1442 = vmatprep.mubr.bf16.mxu0 %v930
        %1443 = vmatmul.mubr.bf16.gmra.mrb[0].mxu0 %v921
        %v1444 = vpop.f32.mrb[0].mxu0
        %v1445 = vadd.f32 %v775, %v1444
        %v1446 = vpop.f32.mrb[0].mxu0
        %v1447 = vpop.f32.mrb[0].mxu0
        %v1448 = vpop.f32.mrb[0].mxu0
        %1449 = vdwg.mxu0
        %1450 = vmatprep.subr.bf16.mxu0 0
        %1451 = vmatpush1.bf16.msra.mxu0 %v1282
        %1452 = vmatprep.subr.bf16.mxu0 0
        %1453 = vmatpush1.bf16.msra.mxu0 %v1283
        %1454 = vmatprep.subr.bf16.mxu0 0
        %1455 = vmatpush1.bf16.msra.mxu0 %v1284
        %1456 = vmatprep.subr.bf16.mxu0 0
        %1457 = vmatpush1.bf16.msra.mxu0 %v1285
        %1458 = vmatprep.subr.bf16.mxu0 0
        %1459 = vmatpush1.bf16.msra.mxu0 %v1286
        %1460 = vmatprep.subr.bf16.mxu0 0
        %1461 = vmatpush1.bf16.msra.mxu0 %v1287
        %1462 = vmatprep.subr.bf16.mxu0 0
        %1463 = vmatpush1.bf16.msra.mxu0 %v1288
        %1464 = vmatprep.subr.bf16.mxu0 0
        %1465 = vmatpush1.bf16.msra.mxu0 %v1289
        %1466 = vmatprep.subr.bf16.mxu0 0
        %1467 = vmatpush1.bf16.msra.mxu0 %v1290
        %1468 = vmatprep.subr.bf16.mxu0 0
        %1469 = vmatpush1.bf16.msra.mxu0 %v1291
        %1470 = vmatprep.subr.bf16.mxu0 0
        %1471 = vmatpush1.bf16.msra.mxu0 %v1292
        %1472 = vmatprep.subr.bf16.mxu0 0
        %1473 = vmatpush1.bf16.msra.mxu0 %v1293
        %1474 = vmatprep.subr.bf16.mxu0 0
        %1475 = vmatpush1.bf16.msra.mxu0 %v1294
        %1476 = vmatprep.subr.bf16.mxu0 0
        %1477 = vmatpush1.bf16.msra.mxu0 %v1295
        %1478 = vmatprep.subr.bf16.mxu0 0
        %1479 = vmatpush1.bf16.msra.mxu0 %v1296
        %1480 = vmatprep.subr.bf16.mxu0 0
        %1481 = vmatpush1.bf16.msra.mxu0 %v1297
        %1482 = vmatprep.mubr.bf16.mxu0 %v845
        %1483 = vmatmul.mubr.bf16.gmra.mrb[0].mxu0 %v828
        %v1484 = vpop.f32.mrb[0].mxu0
        %v1485 = vadd.f32 %v1429, %v1484
        %v1486 = vpop.f32.mrb[0].mxu0
        %v1487 = vpop.f32.mrb[0].mxu0
        %v1488 = vadd.f32 %v1432, %v1487
        %v1489 = vpop.f32.mrb[0].mxu0
        %1490 = vmatprep.mubr.bf16.mxu0 %v949
        %1491 = vmatmul.mubr.bf16.gmra.mrb[0].mxu0 %v940
        %v1492 = vpop.f32.mrb[0].mxu0
        %v1493 = vadd.f32 %v1437, %v1492
        %v1494 = vpop.f32.mrb[0].mxu0
        %v1495 = vpop.f32.mrb[0].mxu0
        %v1496 = vadd.f32 %v1440, %v1495
        %v1497 = vpop.f32.mrb[0].mxu0
        %1498 = vmatprep.mubr.bf16.mxu0 %v948
        %1499 = vmatmul.mubr.bf16.gmra.mrb[0].mxu0 %v939
        %v1500 = vpop.f32.mrb[0].mxu0
        %v1501 = vadd.f32 %v1445, %v1500
        %v1502 = vpop.f32.mrb[0].mxu0
        %v1503 = vpop.f32.mrb[0].mxu0
        %v1504 = vpop.f32.mrb[0].mxu0
        %1505 = vdwg.mxu0
        %1506 = vmatprep.subr.bf16.mxu0 0
        %1507 = vmatpush1.bf16.msra.mxu0 %v1298
        %1508 = vmatprep.subr.bf16.mxu0 0
        %1509 = vmatpush1.bf16.msra.mxu0 %v1299
        %1510 = vmatprep.subr.bf16.mxu0 0
        %1511 = vmatpush1.bf16.msra.mxu0 %v1300
        %1512 = vmatprep.subr.bf16.mxu0 0
        %1513 = vmatpush1.bf16.msra.mxu0 %v1301
        %1514 = vmatprep.subr.bf16.mxu0 0
        %1515 = vmatpush1.bf16.msra.mxu0 %v1302
        %1516 = vmatprep.subr.bf16.mxu0 0
        %1517 = vmatpush1.bf16.msra.mxu0 %v1303
        %1518 = vmatprep.subr.bf16.mxu0 0
        %1519 = vmatpush1.bf16.msra.mxu0 %v1304
        %1520 = vmatprep.subr.bf16.mxu0 0
        %1521 = vmatpush1.bf16.msra.mxu0 %v1305
        %1522 = vmatprep.subr.bf16.mxu0 0
        %1523 = vmatpush1.bf16.msra.mxu0 %v1306
        %1524 = vmatprep.subr.bf16.mxu0 0
        %1525 = vmatpush1.bf16.msra.mxu0 %v1307
        %1526 = vmatprep.subr.bf16.mxu0 0
        %1527 = vmatpush1.bf16.msra.mxu0 %v1308
        %1528 = vmatprep.subr.bf16.mxu0 0
        %1529 = vmatpush1.bf16.msra.mxu0 %v1309
        %1530 = vmatprep.subr.bf16.mxu0 0
        %1531 = vmatpush1.bf16.msra.mxu0 %v1310
        %1532 = vmatprep.subr.bf16.mxu0 0
        %1533 = vmatpush1.bf16.msra.mxu0 %v1311
        %1534 = vmatprep.subr.bf16.mxu0 0
        %1535 = vmatpush1.bf16.msra.mxu0 %v1312
        %1536 = vmatprep.subr.bf16.mxu0 0
        %1537 = vmatpush1.bf16.msra.mxu0 %v1313
        %1538 = vmatprep.mubr.bf16.mxu0 %v879
        %1539 = vmatmul.mubr.bf16.gmra.mrb[0].mxu0 %v862
        %v1540 = vpop.f32.mrb[0].mxu0
        %v1541 = vadd.f32 %v1485, %v1540
        %v1542 = vpop.f32.mrb[0].mxu0
        %v1543 = vpop.f32.mrb[0].mxu0
        %v1544 = vadd.f32 %v1488, %v1543
        %v1545 = vpop.f32.mrb[0].mxu0
        %1546 = vmatprep.mubr.bf16.mxu0 %v967
        %1547 = vmatmul.mubr.bf16.gmra.mrb[0].mxu0 %v958
        %v1548 = vpop.f32.mrb[0].mxu0
        %v1549 = vadd.f32 %v1493, %v1548
        %v1550 = vpop.f32.mrb[0].mxu0
        %v1551 = vpop.f32.mrb[0].mxu0
        %v1552 = vadd.f32 %v1496, %v1551
        %v1553 = vpop.f32.mrb[0].mxu0
        %1554 = vmatprep.mubr.bf16.mxu0 %v966
        %1555 = vmatmul.mubr.bf16.gmra.mrb[0].mxu0 %v957
        %v1556 = vpop.f32.mrb[0].mxu0
        %v1557 = vadd.f32 %v1501, %v1556
        %v1558 = vpop.f32.mrb[0].mxu0
        %v1559 = vpop.f32.mrb[0].mxu0
        %v1560 = vpop.f32.mrb[0].mxu0
        %1561 = vdwg.mxu0
        %1562 = vmatprep.subr.bf16.mxu0 0
        %1563 = vmatpush1.bf16.msra.mxu0 %v1314
        %1564 = vmatprep.subr.bf16.mxu0 0
        %1565 = vmatpush1.bf16.msra.mxu0 %v1315
        %1566 = vmatprep.subr.bf16.mxu0 0
        %1567 = vmatpush1.bf16.msra.mxu0 %v1316
        %1568 = vmatprep.subr.bf16.mxu0 0
        %1569 = vmatpush1.bf16.msra.mxu0 %v1317
        %1570 = vmatprep.subr.bf16.mxu0 0
        %1571 = vmatpush1.bf16.msra.mxu0 %v1318
        %1572 = vmatprep.subr.bf16.mxu0 0
        %1573 = vmatpush1.bf16.msra.mxu0 %v1319
        %1574 = vmatprep.subr.bf16.mxu0 0
        %1575 = vmatpush1.bf16.msra.mxu0 %v1320
        %1576 = vmatprep.subr.bf16.mxu0 0
        %1577 = vmatpush1.bf16.msra.mxu0 %v1321
        %1578 = vmatprep.subr.bf16.mxu0 0
        %1579 = vmatpush1.bf16.msra.mxu0 %v1322
        %1580 = vmatprep.subr.bf16.mxu0 0
        %1581 = vmatpush1.bf16.msra.mxu0 %v1323
        %1582 = vmatprep.subr.bf16.mxu0 0
        %1583 = vmatpush1.bf16.msra.mxu0 %v1324
        %1584 = vmatprep.subr.bf16.mxu0 0
        %1585 = vmatpush1.bf16.msra.mxu0 %v1325
        %1586 = vmatprep.subr.bf16.mxu0 0
        %1587 = vmatpush1.bf16.msra.mxu0 %v1326
        %1588 = vmatprep.subr.bf16.mxu0 0
        %1589 = vmatpush1.bf16.msra.mxu0 %v1327
        %1590 = vmatprep.subr.bf16.mxu0 0
        %1591 = vmatpush1.bf16.msra.mxu0 %v1328
        %1592 = vmatprep.subr.bf16.mxu0 0
        %1593 = vmatpush1.bf16.msra.mxu0 %v1329
        %1594 = vmatprep.mubr.bf16.mxu0 %v913
        %1595 = vmatmul.mubr.bf16.gmra.mrb[0].mxu0 %v896
        %v1596 = vpop.f32.mrb[0].mxu0
        %v1597 = vadd.f32 %v1541, %v1596
        %v1598 = vpop.f32.mrb[0].mxu0
        %v1599 = vpop.f32.mrb[0].mxu0
        %v1600 = vadd.f32 %v1544, %v1599
        %v1601 = vpop.f32.mrb[0].mxu0
        %1602 = vmatprep.mubr.bf16.mxu0 %v985
        %1603 = vmatmul.mubr.bf16.gmra.mrb[0].mxu0 %v976
        %v1604 = vpop.f32.mrb[0].mxu0
        %v1605 = vadd.f32 %v1549, %v1604
        %v1606 = vpop.f32.mrb[0].mxu0
        %v1607 = vpop.f32.mrb[0].mxu0
        %v1608 = vadd.f32 %v1552, %v1607
        %v1609 = vpop.f32.mrb[0].mxu0
        %1610 = vmatprep.mubr.bf16.mxu0 %v984
        %1611 = vmatmul.mubr.bf16.gmra.mrb[0].mxu0 %v975
        %v1612 = vpop.f32.mrb[0].mxu0
        %v1613 = vadd.f32 %v1557, %v1612
        %v1614 = vpop.f32.mrb[0].mxu0
        %v1615 = vpop.f32.mrb[0].mxu0
        %v1616 = vpop.f32.mrb[0].mxu0
        %1617 = vdwg.mxu0
        %v1618 = vmax.f32 %v1597, 0.0
        %v1619 = vmax.f32 %v1600, 0.0
        %v1620 = vmax.f32 %v1605, 0.0
        %v1621 = vmax.f32 %v1608, 0.0
        %v1622 = vmax.f32 %v1613, 0.0
        %v1623 = vlaneseq
        %v1624 = vshrl.u32 %v1623, 7
        %v1625 = vadd.s32 %v1624, 8
        %v1626 = vadd.s32 %v1624, 16
        %v1627 = vadd.s32 %v1624, 24
        %v1628 = vadd.s32 %v1624, 32
        %vm1629 = vcmp.lt.s32.totalorder %v1624, 33
        %vm1630 = vcmp.lt.s32.totalorder %v1625, 33
        %vm1631 = vcmp.lt.s32.totalorder %v1626, 33
        %vm1632 = vcmp.lt.s32.totalorder %v1627, 33
        %vm1633 = vcmp.lt.s32.totalorder %v1628, 33
        %v1634 = vsel %vm1629, %v1618, 0.0
        %v1635 = vsel %vm1630, %v1619, 0.0
        %v1636 = vsel %vm1631, %v1620, 0.0
        %v1637 = vsel %vm1632, %v1621, 0.0
        %v1638 = vsel %vm1633, %v1622, 0.0
        %v1643 = vrot.slane %v1634, 1
        %v1644 = vrot.slane %v1635, 1
        %v1645 = vsel %vm493, %v1643, %v1644
        %v1646 = vrot.slane %v1636, 1
        %v1647 = vsel %vm493, %v1644, %v1646
        %v1648 = vrot.slane %v1637, 1
        %v1649 = vsel %vm493, %v1646, %v1648
        %v1656 = vrot.slane %v1634, 2
        %v1657 = vrot.slane %v1635, 2
        %v1658 = vsel %vm510, %v1656, %v1657
        %v1659 = vrot.slane %v1636, 2
        %v1660 = vsel %vm510, %v1657, %v1659
        %v1661 = vrot.slane %v1637, 2
        %v1662 = vsel %vm510, %v1659, %v1661
        %v1663 = vrot.slane %v1638, 2
        %v1664 = vsel %vm510, %v1661, %v1663
        %v1670 = vrot.slane %v1634, 3
        %v1671 = vrot.slane %v1635, 3
        %v1672 = vsel %vm528, %v1670, %v1671
        %v1673 = vrot.slane %v1636, 3
        %v1674 = vsel %vm528, %v1671, %v1673
        %v1675 = vrot.slane %v1637, 3
        %v1676 = vsel %vm528, %v1673, %v1675
        %v1677 = vrot.slane %v1638, 3
        %v1678 = vsel %vm528, %v1675, %v1677
        %v1684 = vrot.slane %v1634, 4
        %v1685 = vrot.slane %v1635, 4
        %v1686 = vsel %vm546, %v1684, %v1685
        %v1687 = vrot.slane %v1636, 4
        %v1688 = vsel %vm546, %v1685, %v1687
        %v1689 = vrot.slane %v1637, 4
        %v1690 = vsel %vm546, %v1687, %v1689
        %v1691 = vrot.slane %v1638, 4
        %v1692 = vsel %vm546, %v1689, %v1691
        %v1698 = vrot.slane %v1634, 5
        %v1699 = vrot.slane %v1635, 5
        %v1700 = vsel %vm564, %v1698, %v1699
        %v1701 = vrot.slane %v1636, 5
        %v1702 = vsel %vm564, %v1699, %v1701
        %v1703 = vrot.slane %v1637, 5
        %v1704 = vsel %vm564, %v1701, %v1703
        %v1705 = vrot.slane %v1638, 5
        %v1706 = vsel %vm564, %v1703, %v1705
        %v1712 = vrot.slane %v1634, 6
        %v1713 = vrot.slane %v1635, 6
        %v1714 = vsel %vm582, %v1712, %v1713
        %v1715 = vrot.slane %v1636, 6
        %v1716 = vsel %vm582, %v1713, %v1715
        %v1717 = vrot.slane %v1637, 6
        %v1718 = vsel %vm582, %v1715, %v1717
        %v1719 = vrot.slane %v1638, 6
        %v1720 = vsel %vm582, %v1717, %v1719
        %v1726 = vrot.slane %v1634, 7
        %v1727 = vrot.slane %v1635, 7
        %v1728 = vsel %vm600, %v1726, %v1727
        %v1729 = vrot.slane %v1636, 7
        %v1730 = vsel %vm600, %v1727, %v1729
        %v1731 = vrot.slane %v1637, 7
        %v1732 = vsel %vm600, %v1729, %v1731
        %v1733 = vrot.slane %v1638, 7
        %v1734 = vsel %vm600, %v1731, %v1733
        %v1740 = vpack.c.bf16 %v1634, 0.0
        %v1741 = vpack.c.bf16 %v1645, %v1643
        %v1742 = vpack.c.bf16 %v1658, %v1656
        %v1743 = vpack.c.bf16 %v1672, %v1670
        %v1744 = vpack.c.bf16 %v1686, %v1684
        %v1745 = vpack.c.bf16 %v1700, %v1698
        %v1746 = vpack.c.bf16 %v1714, %v1712
        %v1747 = vpack.c.bf16 %v1728, %v1726
        %v1748 = vpack.c.bf16 %v1636, %v1635
        %v1749 = vpack.c.bf16 %v1649, %v1647
        %v1750 = vpack.c.bf16 %v1662, %v1660
        %v1751 = vpack.c.bf16 %v1676, %v1674
        %v1752 = vpack.c.bf16 %v1690, %v1688
        %v1753 = vpack.c.bf16 %v1704, %v1702
        %v1754 = vpack.c.bf16 %v1718, %v1716
        %v1755 = vpack.c.bf16 %v1732, %v1730
        %v1756 = vpack.c.bf16 %v1637, %v1637
        %v1757 = vpack.c.bf16 %v1648, %v1648
        %v1758 = vpack.c.bf16 %v1664, %v1664
        %v1759 = vpack.c.bf16 %v1678, %v1678
        %v1760 = vpack.c.bf16 %v1692, %v1692
        %v1761 = vpack.c.bf16 %v1706, %v1706
        %v1762 = vpack.c.bf16 %v1720, %v1720
        %v1763 = vpack.c.bf16 %v1734, %v1734
        %v1764 = vld [vmem:[#allocation7] sm:$0xf]
        %v1765 = vld [vmem:[#allocation7 + $0x4] sm:$0xf]
        %v1766 = vld [vmem:[#allocation7 + $0x8] sm:$0xf]
        %v1767 = vld [vmem:[#allocation7 + $0xc] sm:$0xf]
        %v1768 = vld [vmem:[#allocation7 + $0x10] sm:$0xf]
        %v1769 = vld [vmem:[#allocation7 + $0x14] sm:$0xf]
        %v1770 = vld [vmem:[#allocation7 + $0x18] sm:$0xf]
        %v1771 = vld [vmem:[#allocation7 + $0x1c] sm:$0xf]
        %v1772 = vld [vmem:[#allocation7 + $0x20] sm:$0xf]
        %v1773 = vld [vmem:[#allocation7 + $0x24] sm:$0xf]
        %v1774 = vld [vmem:[#allocation7 + $0x28] sm:$0xf]
        %v1775 = vld [vmem:[#allocation7 + $0x2c] sm:$0xf]
        %v1776 = vld [vmem:[#allocation7 + $0x30] sm:$0xf]
        %v1777 = vld [vmem:[#allocation7 + $0x34] sm:$0xf]
        %v1778 = vld [vmem:[#allocation7 + $0x38] sm:$0xf]
        %v1779 = vld [vmem:[#allocation7 + $0x3c] sm:$0xf]
        %v1780 = vld [vmem:[#allocation7 + $0x40] sm:$0xf]
        %v1781 = vld [vmem:[#allocation7 + $0x44] sm:$0xf]
        %v1782 = vld [vmem:[#allocation7 + $0x48] sm:$0xf]
        %v1783 = vld [vmem:[#allocation7 + $0x4c] sm:$0xf]
        %v1784 = vld [vmem:[#allocation7 + $0x50] sm:$0xf]
        %v1785 = vld [vmem:[#allocation7 + $0x54] sm:$0xf]
        %v1786 = vld [vmem:[#allocation7 + $0x58] sm:$0xf]
        %v1787 = vld [vmem:[#allocation7 + $0x5c] sm:$0xf]
        %v1788 = vld [vmem:[#allocation7 + $0x60] sm:$0xf]
        %v1789 = vld [vmem:[#allocation7 + $0x64] sm:$0xf]
        %v1790 = vld [vmem:[#allocation7 + $0x68] sm:$0xf]
        %v1791 = vld [vmem:[#allocation7 + $0x6c] sm:$0xf]
        %v1792 = vld [vmem:[#allocation7 + $0x70] sm:$0xf]
        %v1793 = vld [vmem:[#allocation7 + $0x74] sm:$0xf]
        %v1794 = vld [vmem:[#allocation7 + $0x78] sm:$0xf]
        %v1795 = vld [vmem:[#allocation7 + $0x7c] sm:$0xf]
        %v1796 = vld [vmem:[#allocation7 + $0x80] sm:$0xf]
        %v1797 = vld [vmem:[#allocation7 + $0x84] sm:$0xf]
        %v1798 = vld [vmem:[#allocation7 + $0x88] sm:$0xf]
        %v1799 = vld [vmem:[#allocation7 + $0x8c] sm:$0xf]
        %v1800 = vld [vmem:[#allocation7 + $0x90] sm:$0xf]
        %v1801 = vld [vmem:[#allocation7 + $0x94] sm:$0xf]
        %v1802 = vld [vmem:[#allocation7 + $0x98] sm:$0xf]
        %v1803 = vld [vmem:[#allocation7 + $0x9c] sm:$0xf]
        %v1804 = vld [vmem:[#allocation7 + $0xa0] sm:$0xf]
        %v1805 = vld [vmem:[#allocation7 + $0xa4] sm:$0xf]
        %v1806 = vld [vmem:[#allocation7 + $0xa8] sm:$0xf]
        %v1807 = vld [vmem:[#allocation7 + $0xac] sm:$0xf]
        %v1808 = vld [vmem:[#allocation7 + $0xb0] sm:$0xf]
        %v1809 = vld [vmem:[#allocation7 + $0xb4] sm:$0xf]
        %v1810 = vld [vmem:[#allocation7 + $0xb8] sm:$0xf]
        %v1811 = vld [vmem:[#allocation7 + $0xbc] sm:$0xf]
        %v1812 = vld [vmem:[#allocation7 + $0xc0] sm:$0xf]
        %v1813 = vld [vmem:[#allocation7 + $0xc4] sm:$0xf]
        %v1814 = vld [vmem:[#allocation7 + $0xc8] sm:$0xf]
        %v1815 = vld [vmem:[#allocation7 + $0xcc] sm:$0xf]
        %v1816 = vld [vmem:[#allocation7 + $0xd0] sm:$0xf]
        %v1817 = vld [vmem:[#allocation7 + $0xd4] sm:$0xf]
        %v1818 = vld [vmem:[#allocation7 + $0xd8] sm:$0xf]
        %v1819 = vld [vmem:[#allocation7 + $0xdc] sm:$0xf]
        %v1820 = vld [vmem:[#allocation7 + $0xe0] sm:$0xf]
        %v1821 = vld [vmem:[#allocation7 + $0xe4] sm:$0xf]
        %v1822 = vld [vmem:[#allocation7 + $0xe8] sm:$0xf]
        %v1823 = vld [vmem:[#allocation7 + $0xec] sm:$0xf]
        %v1824 = vld [vmem:[#allocation7 + $0xf0] sm:$0xf]
        %v1825 = vld [vmem:[#allocation7 + $0xf4] sm:$0xf]
        %v1826 = vld [vmem:[#allocation7 + $0xf8] sm:$0xf]
        %v1827 = vld [vmem:[#allocation7 + $0xfc] sm:$0xf]
        %v1828 = vld [vmem:[#allocation7 + $0x100] sm:$0xf]
        %v1829 = vld [vmem:[#allocation7 + $0x104] sm:$0xf]
        %v1830 = vld [vmem:[#allocation7 + $0x108] sm:$0xf]
        %v1831 = vld [vmem:[#allocation7 + $0x10c] sm:$0xf]
        %v1832 = vld [vmem:[#allocation7 + $0x110] sm:$0xf]
        %v1833 = vld [vmem:[#allocation7 + $0x114] sm:$0xf]
        %v1834 = vld [vmem:[#allocation7 + $0x118] sm:$0xf]
        %v1835 = vld [vmem:[#allocation7 + $0x11c] sm:$0xf]
        %v1836 = vld [vmem:[#allocation7 + $0x120] sm:$0xf]
        %v1837 = vld [vmem:[#allocation7 + $0x124] sm:$0xf]
        %v1838 = vld [vmem:[#allocation7 + $0x128] sm:$0xf]
        %v1839 = vld [vmem:[#allocation7 + $0x12c] sm:$0xf]
        %v1840 = vld [vmem:[#allocation7 + $0x130] sm:$0xf]
        %v1841 = vld [vmem:[#allocation7 + $0x134] sm:$0xf]
        %v1842 = vld [vmem:[#allocation7 + $0x138] sm:$0xf]
        %v1843 = vld [vmem:[#allocation7 + $0x13c] sm:$0xf]
        %v1844 = vld [vmem:[#allocation7 + $0x140] sm:$0xf]
        %v1845 = vld [vmem:[#allocation7 + $0x144] sm:$0xf]
        %v1846 = vld [vmem:[#allocation7 + $0x148] sm:$0xf]
        %v1847 = vld [vmem:[#allocation7 + $0x14c] sm:$0xf]
        %v1848 = vld [vmem:[#allocation7 + $0x150] sm:$0xf]
        %v1849 = vld [vmem:[#allocation7 + $0x154] sm:$0xf]
        %v1850 = vld [vmem:[#allocation7 + $0x158] sm:$0xf]
        %v1851 = vld [vmem:[#allocation7 + $0x15c] sm:$0xf]
        %v1852 = vld [vmem:[#allocation7 + $0x160] sm:$0xf]
        %v1853 = vld [vmem:[#allocation7 + $0x164] sm:$0xf]
        %v1854 = vld [vmem:[#allocation7 + $0x168] sm:$0xf]
        %v1855 = vld [vmem:[#allocation7 + $0x16c] sm:$0xf]
        %v1856 = vld [vmem:[#allocation7 + $0x170] sm:$0xf]
        %v1857 = vld [vmem:[#allocation7 + $0x174] sm:$0xf]
        %v1858 = vld [vmem:[#allocation7 + $0x178] sm:$0xf]
        %v1859 = vld [vmem:[#allocation7 + $0x17c] sm:$0xf]
        %v1860 = vld [vmem:[#allocation7 + $0x180] sm:$0xf]
        %v1861 = vld [vmem:[#allocation7 + $0x184] sm:$0xf]
        %v1862 = vld [vmem:[#allocation7 + $0x188] sm:$0xf]
        %v1863 = vld [vmem:[#allocation7 + $0x18c] sm:$0xf]
        %v1864 = vld [vmem:[#allocation7 + $0x190] sm:$0xf]
        %v1865 = vld [vmem:[#allocation7 + $0x194] sm:$0xf]
        %v1866 = vld [vmem:[#allocation7 + $0x198] sm:$0xf]
        %v1867 = vld [vmem:[#allocation7 + $0x19c] sm:$0xf]
        %v1868 = vld [vmem:[#allocation7 + $0x1a0] sm:$0xf]
        %v1869 = vld [vmem:[#allocation7 + $0x1a4] sm:$0xf]
        %v1870 = vld [vmem:[#allocation7 + $0x1a8] sm:$0xf]
        %v1871 = vld [vmem:[#allocation7 + $0x1ac] sm:$0xf]
        %v1872 = vld [vmem:[#allocation7 + $0x1b0] sm:$0xf]
        %v1873 = vld [vmem:[#allocation7 + $0x1b4] sm:$0xf]
        %v1874 = vld [vmem:[#allocation7 + $0x1b8] sm:$0xf]
        %v1875 = vld [vmem:[#allocation7 + $0x1bc] sm:$0xf]
        %v1876 = vld [vmem:[#allocation7 + $0x1c0] sm:$0xf]
        %v1877 = vld [vmem:[#allocation7 + $0x1c4] sm:$0xf]
        %v1878 = vld [vmem:[#allocation7 + $0x1c8] sm:$0xf]
        %v1879 = vld [vmem:[#allocation7 + $0x1cc] sm:$0xf]
        %v1880 = vld [vmem:[#allocation7 + $0x1d0] sm:$0xf]
        %v1881 = vld [vmem:[#allocation7 + $0x1d4] sm:$0xf]
        %v1882 = vld [vmem:[#allocation7 + $0x1d8] sm:$0xf]
        %v1883 = vld [vmem:[#allocation7 + $0x1dc] sm:$0xf]
        %v1884 = vld [vmem:[#allocation7 + $0x1e0] sm:$0xf]
        %v1885 = vld [vmem:[#allocation7 + $0x1e4] sm:$0xf]
        %v1886 = vld [vmem:[#allocation7 + $0x1e8] sm:$0xf]
        %v1887 = vld [vmem:[#allocation7 + $0x1ec] sm:$0xf]
        %v1888 = vld [vmem:[#allocation7 + $0x1f0] sm:$0xf]
        %v1889 = vld [vmem:[#allocation7 + $0x1f4] sm:$0xf]
        %v1890 = vld [vmem:[#allocation7 + $0x1f8] sm:$0xf]
        %v1891 = vld [vmem:[#allocation7 + $0x1fc] sm:$0xf]
        %v1892 = vld [vmem:[%s4] sm:$0x1]
        %v1894 = vlaneseq
        %v1895 = vshrl.u32 %v1894, 7
        %v1896 = vsub.s32 0, %v1895
        %v1897 = vrot.slane %v1892, %v1896
        %v1900 = vshrl.u32 %v1740, 16
        %v1902 = vrot.slane %v1900, 3
        %v1903 = vshll.u32 %v1740, 16
        %v1905 = vrot.slane %v1903, 4
        %v1906 = vor.u32 %v1902, %v1905
        %v1908 = vshrl.u32 %v1748, 16
        %v1910 = vrot.slane %v1908, 3
        %v1911 = vshll.u32 %v1748, 16
        %v1913 = vrot.slane %v1911, 4
        %v1914 = vor.u32 %v1910, %v1913
        %v1915 = vsel %vm777, %v1906, %v1914
        %v1917 = vshrl.u32 %v1741, 16
        %v1919 = vrot.slane %v1917, 3
        %v1920 = vshll.u32 %v1741, 16
        %v1922 = vrot.slane %v1920, 4
        %v1923 = vor.u32 %v1919, %v1922
        %v1925 = vshrl.u32 %v1749, 16
        %v1927 = vrot.slane %v1925, 3
        %v1928 = vshll.u32 %v1749, 16
        %v1930 = vrot.slane %v1928, 4
        %v1931 = vor.u32 %v1927, %v1930
        %v1932 = vsel %vm777, %v1923, %v1931
        %v1934 = vshrl.u32 %v1742, 16
        %v1936 = vrot.slane %v1934, 3
        %v1937 = vshll.u32 %v1742, 16
        %v1939 = vrot.slane %v1937, 4
        %v1940 = vor.u32 %v1936, %v1939
        %v1942 = vshrl.u32 %v1750, 16
        %v1944 = vrot.slane %v1942, 3
        %v1945 = vshll.u32 %v1750, 16
        %v1947 = vrot.slane %v1945, 4
        %v1948 = vor.u32 %v1944, %v1947
        %v1949 = vsel %vm777, %v1940, %v1948
        %v1951 = vshrl.u32 %v1743, 16
        %v1953 = vrot.slane %v1951, 3
        %v1954 = vshll.u32 %v1743, 16
        %v1956 = vrot.slane %v1954, 4
        %v1957 = vor.u32 %v1953, %v1956
        %v1959 = vshrl.u32 %v1751, 16
        %v1961 = vrot.slane %v1959, 3
        %v1962 = vshll.u32 %v1751, 16
        %v1964 = vrot.slane %v1962, 4
        %v1965 = vor.u32 %v1961, %v1964
        %v1966 = vsel %vm777, %v1957, %v1965
        %v1968 = vshrl.u32 %v1744, 16
        %v1970 = vrot.slane %v1968, 3
        %v1971 = vshll.u32 %v1744, 16
        %v1973 = vrot.slane %v1971, 4
        %v1974 = vor.u32 %v1970, %v1973
        %v1976 = vshrl.u32 %v1752, 16
        %v1978 = vrot.slane %v1976, 3
        %v1979 = vshll.u32 %v1752, 16
        %v1981 = vrot.slane %v1979, 4
        %v1982 = vor.u32 %v1978, %v1981
        %v1983 = vsel %vm777, %v1974, %v1982
        %v1985 = vshrl.u32 %v1745, 16
        %v1987 = vrot.slane %v1985, 3
        %v1988 = vshll.u32 %v1745, 16
        %v1990 = vrot.slane %v1988, 4
        %v1991 = vor.u32 %v1987, %v1990
        %v1993 = vshrl.u32 %v1753, 16
        %v1995 = vrot.slane %v1993, 3
        %v1996 = vshll.u32 %v1753, 16
        %v1998 = vrot.slane %v1996, 4
        %v1999 = vor.u32 %v1995, %v1998
        %v2000 = vsel %vm777, %v1991, %v1999
        %v2002 = vshrl.u32 %v1746, 16
        %v2004 = vrot.slane %v2002, 3
        %v2005 = vshll.u32 %v1746, 16
        %v2007 = vrot.slane %v2005, 4
        %v2008 = vor.u32 %v2004, %v2007
        %v2010 = vshrl.u32 %v1754, 16
        %v2012 = vrot.slane %v2010, 3
        %v2013 = vshll.u32 %v1754, 16
        %v2015 = vrot.slane %v2013, 4
        %v2016 = vor.u32 %v2012, %v2015
        %v2017 = vsel %vm777, %v2008, %v2016
        %v2019 = vshrl.u32 %v1747, 16
        %v2021 = vrot.slane %v2019, 3
        %v2022 = vshll.u32 %v1747, 16
        %v2024 = vrot.slane %v2022, 4
        %v2025 = vor.u32 %v2021, %v2024
        %v2027 = vshrl.u32 %v1755, 16
        %v2029 = vrot.slane %v2027, 3
        %v2030 = vshll.u32 %v1755, 16
        %v2032 = vrot.slane %v2030, 4
        %v2033 = vor.u32 %v2029, %v2032
        %v2034 = vsel %vm777, %v2025, %v2033
        %v2036 = vshrl.u32 %v1756, 16
        %v2038 = vrot.slane %v2036, 3
        %v2039 = vshll.u32 %v1756, 16
        %v2041 = vrot.slane %v2039, 4
        %v2042 = vor.u32 %v2038, %v2041
        %v2043 = vsel %vm777, %v1914, %v2042
        %v2045 = vshrl.u32 %v1757, 16
        %v2047 = vrot.slane %v2045, 3
        %v2048 = vshll.u32 %v1757, 16
        %v2050 = vrot.slane %v2048, 4
        %v2051 = vor.u32 %v2047, %v2050
        %v2052 = vsel %vm777, %v1931, %v2051
        %v2054 = vshrl.u32 %v1758, 16
        %v2056 = vrot.slane %v2054, 3
        %v2057 = vshll.u32 %v1758, 16
        %v2059 = vrot.slane %v2057, 4
        %v2060 = vor.u32 %v2056, %v2059
        %v2061 = vsel %vm777, %v1948, %v2060
        %v2063 = vshrl.u32 %v1759, 16
        %v2065 = vrot.slane %v2063, 3
        %v2066 = vshll.u32 %v1759, 16
        %v2068 = vrot.slane %v2066, 4
        %v2069 = vor.u32 %v2065, %v2068
        %v2070 = vsel %vm777, %v1965, %v2069
        %v2072 = vshrl.u32 %v1760, 16
        %v2074 = vrot.slane %v2072, 3
        %v2075 = vshll.u32 %v1760, 16
        %v2077 = vrot.slane %v2075, 4
        %v2078 = vor.u32 %v2074, %v2077
        %v2079 = vsel %vm777, %v1982, %v2078
        %v2081 = vshrl.u32 %v1761, 16
        %v2083 = vrot.slane %v2081, 3
        %v2084 = vshll.u32 %v1761, 16
        %v2086 = vrot.slane %v2084, 4
        %v2087 = vor.u32 %v2083, %v2086
        %v2088 = vsel %vm777, %v1999, %v2087
        %v2090 = vshrl.u32 %v1762, 16
        %v2092 = vrot.slane %v2090, 3
        %v2093 = vshll.u32 %v1762, 16
        %v2095 = vrot.slane %v2093, 4
        %v2096 = vor.u32 %v2092, %v2095
        %v2097 = vsel %vm777, %v2016, %v2096
        %v2099 = vshrl.u32 %v1763, 16
        %v2101 = vrot.slane %v2099, 3
        %v2102 = vshll.u32 %v1763, 16
        %v2104 = vrot.slane %v2102, 4
        %v2105 = vor.u32 %v2101, %v2104
        %v2106 = vsel %vm777, %v2033, %v2105
        %v2251 = vunpack.c.l.b16 %v1764
        %v2252 = vunpack.c.l.b16 %v1765
        %v2253 = vunpack.c.l.b16 %v1766
        %v2254 = vunpack.c.l.b16 %v1767
        %v2255 = vunpack.c.l.b16 %v1768
        %v2256 = vunpack.c.l.b16 %v1769
        %v2257 = vunpack.c.l.b16 %v1770
        %v2258 = vunpack.c.l.b16 %v1771
        %v2259 = vunpack.c.l.b16 %v1772
        %v2260 = vunpack.c.l.b16 %v1773
        %v2261 = vunpack.c.l.b16 %v1774
        %v2262 = vunpack.c.l.b16 %v1775
        %v2263 = vunpack.c.l.b16 %v1776
        %v2264 = vunpack.c.l.b16 %v1777
        %v2265 = vunpack.c.l.b16 %v1778
        %v2266 = vunpack.c.l.b16 %v1779
        %v2267 = vunpack.c.l.b16 %v1780
        %v2268 = vunpack.c.l.b16 %v1781
        %v2269 = vunpack.c.l.b16 %v1782
        %v2270 = vunpack.c.l.b16 %v1783
        %v2271 = vunpack.c.l.b16 %v1784
        %v2272 = vunpack.c.l.b16 %v1785
        %v2273 = vunpack.c.l.b16 %v1786
        %v2274 = vunpack.c.l.b16 %v1787
        %v2275 = vunpack.c.l.b16 %v1788
        %v2276 = vunpack.c.l.b16 %v1789
        %v2277 = vunpack.c.l.b16 %v1790
        %v2278 = vunpack.c.l.b16 %v1791
        %v2279 = vunpack.c.l.b16 %v1792
        %v2280 = vunpack.c.l.b16 %v1793
        %v2281 = vunpack.c.l.b16 %v1794
        %v2282 = vunpack.c.l.b16 %v1795
        %v2283 = vunpack.c.l.b16 %v1796
        %v2284 = vunpack.c.l.b16 %v1797
        %v2285 = vunpack.c.l.b16 %v1798
        %v2286 = vunpack.c.l.b16 %v1799
        %v2287 = vunpack.c.l.b16 %v1800
        %v2288 = vunpack.c.l.b16 %v1801
        %v2289 = vunpack.c.l.b16 %v1802
        %v2290 = vunpack.c.l.b16 %v1803
        %v2291 = vunpack.c.l.b16 %v1804
        %v2292 = vunpack.c.l.b16 %v1805
        %v2293 = vunpack.c.l.b16 %v1806
        %v2294 = vunpack.c.l.b16 %v1807
        %v2295 = vunpack.c.l.b16 %v1808
        %v2296 = vunpack.c.l.b16 %v1809
        %v2297 = vunpack.c.l.b16 %v1810
        %v2298 = vunpack.c.l.b16 %v1811
        %v2299 = vunpack.c.l.b16 %v1812
        %v2300 = vunpack.c.l.b16 %v1813
        %v2301 = vunpack.c.l.b16 %v1814
        %v2302 = vunpack.c.l.b16 %v1815
        %v2303 = vunpack.c.l.b16 %v1816
        %v2304 = vunpack.c.l.b16 %v1817
        %v2305 = vunpack.c.l.b16 %v1818
        %v2306 = vunpack.c.l.b16 %v1819
        %v2307 = vunpack.c.l.b16 %v1820
        %v2308 = vunpack.c.l.b16 %v1821
        %v2309 = vunpack.c.l.b16 %v1822
        %v2310 = vunpack.c.l.b16 %v1823
        %v2311 = vunpack.c.l.b16 %v1824
        %v2312 = vunpack.c.l.b16 %v1825
        %v2313 = vunpack.c.l.b16 %v1826
        %v2314 = vunpack.c.l.b16 %v1827
        %v2315 = vunpack.c.l.b16 %v1828
        %v2316 = vunpack.c.l.b16 %v1829
        %v2317 = vunpack.c.l.b16 %v1830
        %v2318 = vunpack.c.l.b16 %v1831
        %v2319 = vunpack.c.l.b16 %v1832
        %v2320 = vunpack.c.l.b16 %v1833
        %v2321 = vunpack.c.l.b16 %v1834
        %v2322 = vunpack.c.l.b16 %v1835
        %v2323 = vunpack.c.l.b16 %v1836
        %v2324 = vunpack.c.l.b16 %v1837
        %v2325 = vunpack.c.l.b16 %v1838
        %v2326 = vunpack.c.l.b16 %v1839
        %v2327 = vunpack.c.l.b16 %v1840
        %v2328 = vunpack.c.l.b16 %v1841
        %v2329 = vunpack.c.l.b16 %v1842
        %v2330 = vunpack.c.l.b16 %v1843
        %v2331 = vunpack.c.l.b16 %v1844
        %v2332 = vunpack.c.l.b16 %v1845
        %v2333 = vunpack.c.l.b16 %v1846
        %v2334 = vunpack.c.l.b16 %v1847
        %v2335 = vunpack.c.l.b16 %v1848
        %v2336 = vunpack.c.l.b16 %v1849
        %v2337 = vunpack.c.l.b16 %v1850
        %v2338 = vunpack.c.l.b16 %v1851
        %v2339 = vunpack.c.l.b16 %v1852
        %v2340 = vunpack.c.l.b16 %v1853
        %v2341 = vunpack.c.l.b16 %v1854
        %v2342 = vunpack.c.l.b16 %v1855
        %v2343 = vunpack.c.l.b16 %v1856
        %v2344 = vunpack.c.l.b16 %v1857
        %v2345 = vunpack.c.l.b16 %v1858
        %v2346 = vunpack.c.l.b16 %v1859
        %v2347 = vunpack.c.l.b16 %v1860
        %v2348 = vunpack.c.l.b16 %v1861
        %v2349 = vunpack.c.l.b16 %v1862
        %v2350 = vunpack.c.l.b16 %v1863
        %v2351 = vunpack.c.l.b16 %v1864
        %v2352 = vunpack.c.l.b16 %v1865
        %v2353 = vunpack.c.l.b16 %v1866
        %v2354 = vunpack.c.l.b16 %v1867
        %v2355 = vunpack.c.l.b16 %v1868
        %v2356 = vunpack.c.l.b16 %v1869
        %v2357 = vunpack.c.l.b16 %v1870
        %v2358 = vunpack.c.l.b16 %v1871
        %v2359 = vunpack.c.l.b16 %v1872
        %v2360 = vunpack.c.l.b16 %v1873
        %v2361 = vunpack.c.l.b16 %v1874
        %v2362 = vunpack.c.l.b16 %v1875
        %v2363 = vunpack.c.l.b16 %v1876
        %v2364 = vunpack.c.l.b16 %v1877
        %v2365 = vunpack.c.l.b16 %v1878
        %v2366 = vunpack.c.l.b16 %v1879
        %v2367 = vunpack.c.l.b16 %v1880
        %v2368 = vunpack.c.l.b16 %v1881
        %v2369 = vunpack.c.l.b16 %v1882
        %v2370 = vunpack.c.l.b16 %v1883
        %v2371 = vunpack.c.l.b16 %v1884
        %v2372 = vunpack.c.l.b16 %v1885
        %v2373 = vunpack.c.l.b16 %v1886
        %v2374 = vunpack.c.l.b16 %v1887
        %v2375 = vunpack.c.l.b16 %v1888
        %v2376 = vunpack.c.l.b16 %v1889
        %v2377 = vunpack.c.l.b16 %v1890
        %v2378 = vunpack.c.l.b16 %v1891
        %v2379 = vpack.c.b16 %v2252, %v2251
        %v2380 = vpack.c.b16 %v2254, %v2253
        %v2381 = vpack.c.b16 %v2256, %v2255
        %v2382 = vpack.c.b16 %v2258, %v2257
        %v2383 = vpack.c.b16 %v2260, %v2259
        %v2384 = vpack.c.b16 %v2262, %v2261
        %v2385 = vpack.c.b16 %v2264, %v2263
        %v2386 = vpack.c.b16 %v2266, %v2265
        %v2387 = vpack.c.b16 %v2268, %v2267
        %v2388 = vpack.c.b16 %v2270, %v2269
        %v2389 = vpack.c.b16 %v2272, %v2271
        %v2390 = vpack.c.b16 %v2274, %v2273
        %v2391 = vpack.c.b16 %v2276, %v2275
        %v2392 = vpack.c.b16 %v2278, %v2277
        %v2393 = vpack.c.b16 %v2280, %v2279
        %v2394 = vpack.c.b16 %v2282, %v2281
        %v2395 = vpack.c.b16 %v2284, %v2283
        %v2396 = vpack.c.b16 %v2286, %v2285
        %v2397 = vpack.c.b16 %v2288, %v2287
        %v2398 = vpack.c.b16 %v2290, %v2289
        %v2399 = vpack.c.b16 %v2292, %v2291
        %v2400 = vpack.c.b16 %v2294, %v2293
        %v2401 = vpack.c.b16 %v2296, %v2295
        %v2402 = vpack.c.b16 %v2298, %v2297
        %v2403 = vpack.c.b16 %v2300, %v2299
        %v2404 = vpack.c.b16 %v2302, %v2301
        %v2405 = vpack.c.b16 %v2304, %v2303
        %v2406 = vpack.c.b16 %v2306, %v2305
        %v2407 = vpack.c.b16 %v2308, %v2307
        %v2408 = vpack.c.b16 %v2310, %v2309
        %v2409 = vpack.c.b16 %v2312, %v2311
        %v2410 = vpack.c.b16 %v2314, %v2313
        %v2411 = vpack.c.b16 %v2316, %v2315
        %v2412 = vpack.c.b16 %v2318, %v2317
        %v2413 = vpack.c.b16 %v2320, %v2319
        %v2414 = vpack.c.b16 %v2322, %v2321
        %v2415 = vpack.c.b16 %v2324, %v2323
        %v2416 = vpack.c.b16 %v2326, %v2325
        %v2417 = vpack.c.b16 %v2328, %v2327
        %v2418 = vpack.c.b16 %v2330, %v2329
        %v2419 = vpack.c.b16 %v2332, %v2331
        %v2420 = vpack.c.b16 %v2334, %v2333
        %v2421 = vpack.c.b16 %v2336, %v2335
        %v2422 = vpack.c.b16 %v2338, %v2337
        %v2423 = vpack.c.b16 %v2340, %v2339
        %v2424 = vpack.c.b16 %v2342, %v2341
        %v2425 = vpack.c.b16 %v2344, %v2343
        %v2426 = vpack.c.b16 %v2346, %v2345
        %v2427 = vpack.c.b16 %v2348, %v2347
        %v2428 = vpack.c.b16 %v2350, %v2349
        %v2429 = vpack.c.b16 %v2352, %v2351
        %v2430 = vpack.c.b16 %v2354, %v2353
        %v2431 = vpack.c.b16 %v2356, %v2355
        %v2432 = vpack.c.b16 %v2358, %v2357
        %v2433 = vpack.c.b16 %v2360, %v2359
        %v2434 = vpack.c.b16 %v2362, %v2361
        %v2435 = vpack.c.b16 %v2364, %v2363
        %v2436 = vpack.c.b16 %v2366, %v2365
        %v2437 = vpack.c.b16 %v2368, %v2367
        %v2438 = vpack.c.b16 %v2370, %v2369
        %v2439 = vpack.c.b16 %v2372, %v2371
        %v2440 = vpack.c.b16 %v2374, %v2373
        %v2441 = vpack.c.b16 %v2376, %v2375
        %v2442 = vpack.c.b16 %v2378, %v2377
        %2507 = vmatprep.subr.bf16.mxu0 0
        %2508 = vmatpush1.bf16.msra.mxu0 %v2379
        %2509 = vmatprep.subr.bf16.mxu0 0
        %2510 = vmatpush1.bf16.msra.mxu0 %v2380
        %2511 = vmatprep.subr.bf16.mxu0 0
        %2512 = vmatpush1.bf16.msra.mxu0 %v2381
        %2513 = vmatprep.subr.bf16.mxu0 0
        %2514 = vmatpush1.bf16.msra.mxu0 %v2382
        %2515 = vmatprep.subr.bf16.mxu0 0
        %2516 = vmatpush1.bf16.msra.mxu0 %v2383
        %2517 = vmatprep.subr.bf16.mxu0 0
        %2518 = vmatpush1.bf16.msra.mxu0 %v2384
        %2519 = vmatprep.subr.bf16.mxu0 0
        %2520 = vmatpush1.bf16.msra.mxu0 %v2385
        %2521 = vmatprep.subr.bf16.mxu0 0
        %2522 = vmatpush1.bf16.msra.mxu0 %v2386
        %2523 = vmatprep.subr.bf16.mxu0 0
        %2524 = vmatpush1.bf16.msra.mxu0 %v2387
        %2525 = vmatprep.subr.bf16.mxu0 0
        %2526 = vmatpush1.bf16.msra.mxu0 %v2388
        %2527 = vmatprep.subr.bf16.mxu0 0
        %2528 = vmatpush1.bf16.msra.mxu0 %v2389
        %2529 = vmatprep.subr.bf16.mxu0 0
        %2530 = vmatpush1.bf16.msra.mxu0 %v2390
        %2531 = vmatprep.subr.bf16.mxu0 0
        %2532 = vmatpush1.bf16.msra.mxu0 %v2391
        %2533 = vmatprep.subr.bf16.mxu0 0
        %2534 = vmatpush1.bf16.msra.mxu0 %v2392
        %2535 = vmatprep.subr.bf16.mxu0 0
        %2536 = vmatpush1.bf16.msra.mxu0 %v2393
        %2537 = vmatprep.subr.bf16.mxu0 0
        %2538 = vmatpush1.bf16.msra.mxu0 %v2394
        %2539 = vmatprep.mubr.bf16.mxu0 %v1932
        %2540 = vmatmul.mubr.bf16.gmra.mrb[0].mxu0 %v1915
        %v2541 = vpop.f32.mrb[0].mxu0
        %v2542 = vadd.f32 %v1897, %v2541
        %v2543 = vpop.f32.mrb[0].mxu0
        %v2544 = vpop.f32.mrb[0].mxu0
        %v2545 = vadd.f32 %v1897, %v2544
        %v2546 = vpop.f32.mrb[0].mxu0
        %2547 = vmatprep.mubr.bf16.mxu0 %v2052
        %2548 = vmatmul.mubr.bf16.gmra.mrb[0].mxu0 %v2043
        %v2549 = vpop.f32.mrb[0].mxu0
        %v2550 = vadd.f32 %v1897, %v2549
        %v2551 = vpop.f32.mrb[0].mxu0
        %v2552 = vpop.f32.mrb[0].mxu0
        %v2553 = vadd.f32 %v1897, %v2552
        %v2554 = vpop.f32.mrb[0].mxu0
        %2555 = vdwg.mxu0
        %2556 = vmatprep.subr.bf16.mxu0 0
        %2557 = vmatpush1.bf16.msra.mxu0 %v2395
        %2558 = vmatprep.subr.bf16.mxu0 0
        %2559 = vmatpush1.bf16.msra.mxu0 %v2396
        %2560 = vmatprep.subr.bf16.mxu0 0
        %2561 = vmatpush1.bf16.msra.mxu0 %v2397
        %2562 = vmatprep.subr.bf16.mxu0 0
        %2563 = vmatpush1.bf16.msra.mxu0 %v2398
        %2564 = vmatprep.subr.bf16.mxu0 0
        %2565 = vmatpush1.bf16.msra.mxu0 %v2399
        %2566 = vmatprep.subr.bf16.mxu0 0
        %2567 = vmatpush1.bf16.msra.mxu0 %v2400
        %2568 = vmatprep.subr.bf16.mxu0 0
        %2569 = vmatpush1.bf16.msra.mxu0 %v2401
        %2570 = vmatprep.subr.bf16.mxu0 0
        %2571 = vmatpush1.bf16.msra.mxu0 %v2402
        %2572 = vmatprep.subr.bf16.mxu0 0
        %2573 = vmatpush1.bf16.msra.mxu0 %v2403
        %2574 = vmatprep.subr.bf16.mxu0 0
        %2575 = vmatpush1.bf16.msra.mxu0 %v2404
        %2576 = vmatprep.subr.bf16.mxu0 0
        %2577 = vmatpush1.bf16.msra.mxu0 %v2405
        %2578 = vmatprep.subr.bf16.mxu0 0
        %2579 = vmatpush1.bf16.msra.mxu0 %v2406
        %2580 = vmatprep.subr.bf16.mxu0 0
        %2581 = vmatpush1.bf16.msra.mxu0 %v2407
        %2582 = vmatprep.subr.bf16.mxu0 0
        %2583 = vmatpush1.bf16.msra.mxu0 %v2408
        %2584 = vmatprep.subr.bf16.mxu0 0
        %2585 = vmatpush1.bf16.msra.mxu0 %v2409
        %2586 = vmatprep.subr.bf16.mxu0 0
        %2587 = vmatpush1.bf16.msra.mxu0 %v2410
        %2588 = vmatprep.mubr.bf16.mxu0 %v1966
        %2589 = vmatmul.mubr.bf16.gmra.mrb[0].mxu0 %v1949
        %v2590 = vpop.f32.mrb[0].mxu0
        %v2591 = vadd.f32 %v2542, %v2590
        %v2592 = vpop.f32.mrb[0].mxu0
        %v2593 = vpop.f32.mrb[0].mxu0
        %v2594 = vadd.f32 %v2545, %v2593
        %v2595 = vpop.f32.mrb[0].mxu0
        %2596 = vmatprep.mubr.bf16.mxu0 %v2070
        %2597 = vmatmul.mubr.bf16.gmra.mrb[0].mxu0 %v2061
        %v2598 = vpop.f32.mrb[0].mxu0
        %v2599 = vadd.f32 %v2550, %v2598
        %v2600 = vpop.f32.mrb[0].mxu0
        %v2601 = vpop.f32.mrb[0].mxu0
        %v2602 = vadd.f32 %v2553, %v2601
        %v2603 = vpop.f32.mrb[0].mxu0
        %2604 = vdwg.mxu0
        %2605 = vmatprep.subr.bf16.mxu0 0
        %2606 = vmatpush1.bf16.msra.mxu0 %v2411
        %2607 = vmatprep.subr.bf16.mxu0 0
        %2608 = vmatpush1.bf16.msra.mxu0 %v2412
        %2609 = vmatprep.subr.bf16.mxu0 0
        %2610 = vmatpush1.bf16.msra.mxu0 %v2413
        %2611 = vmatprep.subr.bf16.mxu0 0
        %2612 = vmatpush1.bf16.msra.mxu0 %v2414
        %2613 = vmatprep.subr.bf16.mxu0 0
        %2614 = vmatpush1.bf16.msra.mxu0 %v2415
        %2615 = vmatprep.subr.bf16.mxu0 0
        %2616 = vmatpush1.bf16.msra.mxu0 %v2416
        %2617 = vmatprep.subr.bf16.mxu0 0
        %2618 = vmatpush1.bf16.msra.mxu0 %v2417
        %2619 = vmatprep.subr.bf16.mxu0 0
        %2620 = vmatpush1.bf16.msra.mxu0 %v2418
        %2621 = vmatprep.subr.bf16.mxu0 0
        %2622 = vmatpush1.bf16.msra.mxu0 %v2419
        %2623 = vmatprep.subr.bf16.mxu0 0
        %2624 = vmatpush1.bf16.msra.mxu0 %v2420
        %2625 = vmatprep.subr.bf16.mxu0 0
        %2626 = vmatpush1.bf16.msra.mxu0 %v2421
        %2627 = vmatprep.subr.bf16.mxu0 0
        %2628 = vmatpush1.bf16.msra.mxu0 %v2422
        %2629 = vmatprep.subr.bf16.mxu0 0
        %2630 = vmatpush1.bf16.msra.mxu0 %v2423
        %2631 = vmatprep.subr.bf16.mxu0 0
        %2632 = vmatpush1.bf16.msra.mxu0 %v2424
        %2633 = vmatprep.subr.bf16.mxu0 0
        %2634 = vmatpush1.bf16.msra.mxu0 %v2425
        %2635 = vmatprep.subr.bf16.mxu0 0
        %2636 = vmatpush1.bf16.msra.mxu0 %v2426
        %2637 = vmatprep.mubr.bf16.mxu0 %v2000
        %2638 = vmatmul.mubr.bf16.gmra.mrb[0].mxu0 %v1983
        %v2639 = vpop.f32.mrb[0].mxu0
        %v2640 = vadd.f32 %v2591, %v2639
        %v2641 = vpop.f32.mrb[0].mxu0
        %v2642 = vpop.f32.mrb[0].mxu0
        %v2643 = vadd.f32 %v2594, %v2642
        %v2644 = vpop.f32.mrb[0].mxu0
        %2645 = vmatprep.mubr.bf16.mxu0 %v2088
        %2646 = vmatmul.mubr.bf16.gmra.mrb[0].mxu0 %v2079
        %v2647 = vpop.f32.mrb[0].mxu0
        %v2648 = vadd.f32 %v2599, %v2647
        %v2649 = vpop.f32.mrb[0].mxu0
        %v2650 = vpop.f32.mrb[0].mxu0
        %v2651 = vadd.f32 %v2602, %v2650
        %v2652 = vpop.f32.mrb[0].mxu0
        %2653 = vdwg.mxu0
        %2654 = vmatprep.subr.bf16.mxu0 0
        %2655 = vmatpush1.bf16.msra.mxu0 %v2427
        %2656 = vmatprep.subr.bf16.mxu0 0
        %2657 = vmatpush1.bf16.msra.mxu0 %v2428
        %2658 = vmatprep.subr.bf16.mxu0 0
        %2659 = vmatpush1.bf16.msra.mxu0 %v2429
        %2660 = vmatprep.subr.bf16.mxu0 0
        %2661 = vmatpush1.bf16.msra.mxu0 %v2430
        %2662 = vmatprep.subr.bf16.mxu0 0
        %2663 = vmatpush1.bf16.msra.mxu0 %v2431
        %2664 = vmatprep.subr.bf16.mxu0 0
        %2665 = vmatpush1.bf16.msra.mxu0 %v2432
        %2666 = vmatprep.subr.bf16.mxu0 0
        %2667 = vmatpush1.bf16.msra.mxu0 %v2433
        %2668 = vmatprep.subr.bf16.mxu0 0
        %2669 = vmatpush1.bf16.msra.mxu0 %v2434
        %2670 = vmatprep.subr.bf16.mxu0 0
        %2671 = vmatpush1.bf16.msra.mxu0 %v2435
        %2672 = vmatprep.subr.bf16.mxu0 0
        %2673 = vmatpush1.bf16.msra.mxu0 %v2436
        %2674 = vmatprep.subr.bf16.mxu0 0
        %2675 = vmatpush1.bf16.msra.mxu0 %v2437
        %2676 = vmatprep.subr.bf16.mxu0 0
        %2677 = vmatpush1.bf16.msra.mxu0 %v2438
        %2678 = vmatprep.subr.bf16.mxu0 0
        %2679 = vmatpush1.bf16.msra.mxu0 %v2439
        %2680 = vmatprep.subr.bf16.mxu0 0
        %2681 = vmatpush1.bf16.msra.mxu0 %v2440
        %2682 = vmatprep.subr.bf16.mxu0 0
        %2683 = vmatpush1.bf16.msra.mxu0 %v2441
        %2684 = vmatprep.subr.bf16.mxu0 0
        %2685 = vmatpush1.bf16.msra.mxu0 %v2442
        %2686 = vmatprep.mubr.bf16.mxu0 %v2034
        %2687 = vmatmul.mubr.bf16.gmra.mrb[0].mxu0 %v2017
        %v2688 = vpop.f32.mrb[0].mxu0
        %v2689 = vadd.f32 %v2640, %v2688
        %v2690 = vpop.f32.mrb[0].mxu0
        %v2691 = vpop.f32.mrb[0].mxu0
        %v2692 = vadd.f32 %v2643, %v2691
        %v2693 = vpop.f32.mrb[0].mxu0
        %2694 = vmatprep.mubr.bf16.mxu0 %v2106
        %2695 = vmatmul.mubr.bf16.gmra.mrb[0].mxu0 %v2097
        %v2696 = vpop.f32.mrb[0].mxu0
        %v2697 = vadd.f32 %v2648, %v2696
        %v2698 = vpop.f32.mrb[0].mxu0
        %v2699 = vpop.f32.mrb[0].mxu0
        %v2700 = vadd.f32 %v2651, %v2699
        %v2701 = vpop.f32.mrb[0].mxu0
        %2702 = vdwg.mxu0
        %v2703 = vmax.f32 %v2689, 0.0
        %v2704 = vmax.f32 %v2692, 0.0
        %v2705 = vmax.f32 %v2697, 0.0
        %v2706 = vmax.f32 %v2700, 0.0
        %vm2707 = vcmp.lt.s32.totalorder %v1624, 28
        %vm2708 = vcmp.lt.s32.totalorder %v1625, 28
        %vm2709 = vcmp.lt.s32.totalorder %v1626, 28
        %vm2710 = vcmp.lt.s32.totalorder %v1627, 28
        %v2711 = vsel %vm2707, %v2703, 0.0
        %v2712 = vsel %vm2708, %v2704, 0.0
        %v2713 = vsel %vm2709, %v2705, 0.0
        %v2714 = vsel %vm2710, %v2706, 0.0
        %v2718 = vrot.slane %v2711, 1
        %v2719 = vrot.slane %v2712, 1
        %v2720 = vsel %vm493, %v2718, %v2719
        %v2721 = vrot.slane %v2713, 1
        %v2722 = vsel %vm493, %v2719, %v2721
        %v2728 = vrot.slane %v2711, 2
        %v2729 = vrot.slane %v2712, 2
        %v2730 = vsel %vm510, %v2728, %v2729
        %v2731 = vrot.slane %v2713, 2
        %v2732 = vsel %vm510, %v2729, %v2731
        %v2733 = vrot.slane %v2714, 2
        %v2734 = vsel %vm510, %v2731, %v2733
        %v2739 = vrot.slane %v2711, 3
        %v2740 = vrot.slane %v2712, 3
        %v2741 = vsel %vm528, %v2739, %v2740
        %v2742 = vrot.slane %v2713, 3
        %v2743 = vsel %vm528, %v2740, %v2742
        %v2744 = vrot.slane %v2714, 3
        %v2745 = vsel %vm528, %v2742, %v2744
        %v2750 = vrot.slane %v2711, 4
        %v2751 = vrot.slane %v2712, 4
        %v2752 = vsel %vm546, %v2750, %v2751
        %v2753 = vrot.slane %v2713, 4
        %v2754 = vsel %vm546, %v2751, %v2753
        %v2755 = vrot.slane %v2714, 4
        %v2756 = vsel %vm546, %v2753, %v2755
        %v2761 = vrot.slane %v2711, 5
        %v2762 = vrot.slane %v2712, 5
        %v2763 = vsel %vm564, %v2761, %v2762
        %v2764 = vrot.slane %v2713, 5
        %v2765 = vsel %vm564, %v2762, %v2764
        %v2766 = vrot.slane %v2714, 5
        %v2767 = vsel %vm564, %v2764, %v2766
        %v2772 = vrot.slane %v2711, 6
        %v2773 = vrot.slane %v2712, 6
        %v2774 = vsel %vm582, %v2772, %v2773
        %v2775 = vrot.slane %v2713, 6
        %v2776 = vsel %vm582, %v2773, %v2775
        %v2777 = vrot.slane %v2714, 6
        %v2778 = vsel %vm582, %v2775, %v2777
        %v2783 = vrot.slane %v2711, 7
        %v2784 = vrot.slane %v2712, 7
        %v2785 = vsel %vm600, %v2783, %v2784
        %v2786 = vrot.slane %v2713, 7
        %v2787 = vsel %vm600, %v2784, %v2786
        %v2788 = vrot.slane %v2714, 7
        %v2789 = vsel %vm600, %v2786, %v2788
        %v2794 = vpack.c.bf16 %v2711, 0.0
        %v2795 = vpack.c.bf16 %v2720, %v2718
        %v2796 = vpack.c.bf16 %v2730, %v2728
        %v2797 = vpack.c.bf16 %v2741, %v2739
        %v2798 = vpack.c.bf16 %v2752, %v2750
        %v2799 = vpack.c.bf16 %v2763, %v2761
        %v2800 = vpack.c.bf16 %v2774, %v2772
        %v2801 = vpack.c.bf16 %v2785, %v2783
        %v2802 = vpack.c.bf16 %v2713, %v2712
        %v2803 = vpack.c.bf16 %v2721, %v2722
        %v2804 = vpack.c.bf16 %v2734, %v2732
        %v2805 = vpack.c.bf16 %v2745, %v2743
        %v2806 = vpack.c.bf16 %v2756, %v2754
        %v2807 = vpack.c.bf16 %v2767, %v2765
        %v2808 = vpack.c.bf16 %v2778, %v2776
        %v2809 = vpack.c.bf16 %v2789, %v2787
        %v2810 = vld [vmem:[#allocation8] sm:$0xf]
        %v2811 = vld [vmem:[#allocation8 + $0x4] sm:$0xf]
        %v2812 = vld [vmem:[#allocation8 + $0x8] sm:$0xf]
        %v2813 = vld [vmem:[#allocation8 + $0xc] sm:$0xf]
        %v2814 = vld [vmem:[#allocation8 + $0x10] sm:$0xf]
        %v2815 = vld [vmem:[#allocation8 + $0x14] sm:$0xf]
        %v2816 = vld [vmem:[#allocation8 + $0x18] sm:$0xf]
        %v2817 = vld [vmem:[#allocation8 + $0x1c] sm:$0xf]
        %v2818 = vld [vmem:[#allocation8 + $0x20] sm:$0xf]
        %v2819 = vld [vmem:[#allocation8 + $0x24] sm:$0xf]
        %v2820 = vld [vmem:[#allocation8 + $0x28] sm:$0xf]
        %v2821 = vld [vmem:[#allocation8 + $0x2c] sm:$0xf]
        %v2822 = vld [vmem:[#allocation8 + $0x30] sm:$0xf]
        %v2823 = vld [vmem:[#allocation8 + $0x34] sm:$0xf]
        %v2824 = vld [vmem:[#allocation8 + $0x38] sm:$0xf]
        %v2825 = vld [vmem:[#allocation8 + $0x3c] sm:$0xf]
        %v2826 = vld [vmem:[#allocation8 + $0x40] sm:$0xf]
        %v2827 = vld [vmem:[#allocation8 + $0x44] sm:$0xf]
        %v2828 = vld [vmem:[#allocation8 + $0x48] sm:$0xf]
        %v2829 = vld [vmem:[#allocation8 + $0x4c] sm:$0xf]
        %v2830 = vld [vmem:[#allocation8 + $0x50] sm:$0xf]
        %v2831 = vld [vmem:[#allocation8 + $0x54] sm:$0xf]
        %v2832 = vld [vmem:[#allocation8 + $0x58] sm:$0xf]
        %v2833 = vld [vmem:[#allocation8 + $0x5c] sm:$0xf]
        %v2834 = vld [vmem:[#allocation8 + $0x60] sm:$0xf]
        %v2835 = vld [vmem:[#allocation8 + $0x64] sm:$0xf]
        %v2836 = vld [vmem:[#allocation8 + $0x68] sm:$0xf]
        %v2837 = vld [vmem:[#allocation8 + $0x6c] sm:$0xf]
        %v2838 = vld [vmem:[#allocation8 + $0x70] sm:$0xf]
        %v2839 = vld [vmem:[#allocation8 + $0x74] sm:$0xf]
        %v2840 = vld [vmem:[#allocation8 + $0x78] sm:$0xf]
        %v2841 = vld [vmem:[#allocation8 + $0x7c] sm:$0xf]
        %v2842 = vld [vmem:[#allocation8 + $0x80] sm:$0xf]
        %v2843 = vld [vmem:[#allocation8 + $0x84] sm:$0xf]
        %v2844 = vld [vmem:[#allocation8 + $0x88] sm:$0xf]
        %v2845 = vld [vmem:[#allocation8 + $0x8c] sm:$0xf]
        %v2846 = vld [vmem:[#allocation8 + $0x90] sm:$0xf]
        %v2847 = vld [vmem:[#allocation8 + $0x94] sm:$0xf]
        %v2848 = vld [vmem:[#allocation8 + $0x98] sm:$0xf]
        %v2849 = vld [vmem:[#allocation8 + $0x9c] sm:$0xf]
        %v2850 = vld [vmem:[#allocation8 + $0xa0] sm:$0xf]
        %v2851 = vld [vmem:[#allocation8 + $0xa4] sm:$0xf]
        %v2852 = vld [vmem:[#allocation8 + $0xa8] sm:$0xf]
        %v2853 = vld [vmem:[#allocation8 + $0xac] sm:$0xf]
        %v2854 = vld [vmem:[#allocation8 + $0xb0] sm:$0xf]
        %v2855 = vld [vmem:[#allocation8 + $0xb4] sm:$0xf]
        %v2856 = vld [vmem:[#allocation8 + $0xb8] sm:$0xf]
        %v2857 = vld [vmem:[#allocation8 + $0xbc] sm:$0xf]
        %v2858 = vld [vmem:[#allocation8 + $0xc0] sm:$0xf]
        %v2859 = vld [vmem:[#allocation8 + $0xc4] sm:$0xf]
        %v2860 = vld [vmem:[#allocation8 + $0xc8] sm:$0xf]
        %v2861 = vld [vmem:[#allocation8 + $0xcc] sm:$0xf]
        %v2862 = vld [vmem:[#allocation8 + $0xd0] sm:$0xf]
        %v2863 = vld [vmem:[#allocation8 + $0xd4] sm:$0xf]
        %v2864 = vld [vmem:[#allocation8 + $0xd8] sm:$0xf]
        %v2865 = vld [vmem:[#allocation8 + $0xdc] sm:$0xf]
        %v2866 = vld [vmem:[#allocation8 + $0xe0] sm:$0xf]
        %v2867 = vld [vmem:[#allocation8 + $0xe4] sm:$0xf]
        %v2868 = vld [vmem:[#allocation8 + $0xe8] sm:$0xf]
        %v2869 = vld [vmem:[#allocation8 + $0xec] sm:$0xf]
        %v2870 = vld [vmem:[#allocation8 + $0xf0] sm:$0xf]
        %v2871 = vld [vmem:[#allocation8 + $0xf4] sm:$0xf]
        %v2872 = vld [vmem:[#allocation8 + $0xf8] sm:$0xf]
        %v2873 = vld [vmem:[#allocation8 + $0xfc] sm:$0xf]
        %v2874 = vld [vmem:[#allocation8 + $0x100] sm:$0xf]
        %v2875 = vld [vmem:[#allocation8 + $0x104] sm:$0xf]
        %v2876 = vld [vmem:[#allocation8 + $0x108] sm:$0xf]
        %v2877 = vld [vmem:[#allocation8 + $0x10c] sm:$0xf]
        %v2878 = vld [vmem:[#allocation8 + $0x110] sm:$0xf]
        %v2879 = vld [vmem:[#allocation8 + $0x114] sm:$0xf]
        %v2880 = vld [vmem:[#allocation8 + $0x118] sm:$0xf]
        %v2881 = vld [vmem:[#allocation8 + $0x11c] sm:$0xf]
        %v2882 = vld [vmem:[#allocation8 + $0x120] sm:$0xf]
        %v2883 = vld [vmem:[#allocation8 + $0x124] sm:$0xf]
        %v2884 = vld [vmem:[#allocation8 + $0x128] sm:$0xf]
        %v2885 = vld [vmem:[#allocation8 + $0x12c] sm:$0xf]
        %v2886 = vld [vmem:[#allocation8 + $0x130] sm:$0xf]
        %v2887 = vld [vmem:[#allocation8 + $0x134] sm:$0xf]
        %v2888 = vld [vmem:[#allocation8 + $0x138] sm:$0xf]
        %v2889 = vld [vmem:[#allocation8 + $0x13c] sm:$0xf]
        %v2890 = vld [vmem:[#allocation8 + $0x140] sm:$0xf]
        %v2891 = vld [vmem:[#allocation8 + $0x144] sm:$0xf]
        %v2892 = vld [vmem:[#allocation8 + $0x148] sm:$0xf]
        %v2893 = vld [vmem:[#allocation8 + $0x14c] sm:$0xf]
        %v2894 = vld [vmem:[#allocation8 + $0x150] sm:$0xf]
        %v2895 = vld [vmem:[#allocation8 + $0x154] sm:$0xf]
        %v2896 = vld [vmem:[#allocation8 + $0x158] sm:$0xf]
        %v2897 = vld [vmem:[#allocation8 + $0x15c] sm:$0xf]
        %v2898 = vld [vmem:[#allocation8 + $0x160] sm:$0xf]
        %v2899 = vld [vmem:[#allocation8 + $0x164] sm:$0xf]
        %v2900 = vld [vmem:[#allocation8 + $0x168] sm:$0xf]
        %v2901 = vld [vmem:[#allocation8 + $0x16c] sm:$0xf]
        %v2902 = vld [vmem:[#allocation8 + $0x170] sm:$0xf]
        %v2903 = vld [vmem:[#allocation8 + $0x174] sm:$0xf]
        %v2904 = vld [vmem:[#allocation8 + $0x178] sm:$0xf]
        %v2905 = vld [vmem:[#allocation8 + $0x17c] sm:$0xf]
        %v2906 = vld [vmem:[#allocation8 + $0x180] sm:$0xf]
        %v2907 = vld [vmem:[#allocation8 + $0x184] sm:$0xf]
        %v2908 = vld [vmem:[#allocation8 + $0x188] sm:$0xf]
        %v2909 = vld [vmem:[#allocation8 + $0x18c] sm:$0xf]
        %v2910 = vld [vmem:[#allocation8 + $0x190] sm:$0xf]
        %v2911 = vld [vmem:[#allocation8 + $0x194] sm:$0xf]
        %v2912 = vld [vmem:[#allocation8 + $0x198] sm:$0xf]
        %v2913 = vld [vmem:[#allocation8 + $0x19c] sm:$0xf]
        %v2914 = vld [vmem:[#allocation8 + $0x1a0] sm:$0xf]
        %v2915 = vld [vmem:[#allocation8 + $0x1a4] sm:$0xf]
        %v2916 = vld [vmem:[#allocation8 + $0x1a8] sm:$0xf]
        %v2917 = vld [vmem:[#allocation8 + $0x1ac] sm:$0xf]
        %v2918 = vld [vmem:[#allocation8 + $0x1b0] sm:$0xf]
        %v2919 = vld [vmem:[#allocation8 + $0x1b4] sm:$0xf]
        %v2920 = vld [vmem:[#allocation8 + $0x1b8] sm:$0xf]
        %v2921 = vld [vmem:[#allocation8 + $0x1bc] sm:$0xf]
        %v2922 = vld [vmem:[#allocation8 + $0x1c0] sm:$0xf]
        %v2923 = vld [vmem:[#allocation8 + $0x1c4] sm:$0xf]
        %v2924 = vld [vmem:[#allocation8 + $0x1c8] sm:$0xf]
        %v2925 = vld [vmem:[#allocation8 + $0x1cc] sm:$0xf]
        %v2926 = vld [vmem:[#allocation8 + $0x1d0] sm:$0xf]
        %v2927 = vld [vmem:[#allocation8 + $0x1d4] sm:$0xf]
        %v2928 = vld [vmem:[#allocation8 + $0x1d8] sm:$0xf]
        %v2929 = vld [vmem:[#allocation8 + $0x1dc] sm:$0xf]
        %v2930 = vld [vmem:[#allocation8 + $0x1e0] sm:$0xf]
        %v2931 = vld [vmem:[#allocation8 + $0x1e4] sm:$0xf]
        %v2932 = vld [vmem:[#allocation8 + $0x1e8] sm:$0xf]
        %v2933 = vld [vmem:[#allocation8 + $0x1ec] sm:$0xf]
        %v2934 = vld [vmem:[#allocation8 + $0x1f0] sm:$0xf]
        %v2935 = vld [vmem:[#allocation8 + $0x1f4] sm:$0xf]
        %v2936 = vld [vmem:[#allocation8 + $0x1f8] sm:$0xf]
        %v2937 = vld [vmem:[#allocation8 + $0x1fc] sm:$0xf]
        %v2938 = vld [vmem:[%s6] sm:$0x1]
        %v2940 = vlaneseq
        %v2941 = vshrl.u32 %v2940, 7
        %v2942 = vsub.s32 0, %v2941
        %v2943 = vrot.slane %v2938, %v2942
        %v2946 = vshrl.u32 %v2794, 16
        %v2948 = vrot.slane %v2946, 3
        %v2949 = vshll.u32 %v2794, 16
        %v2951 = vrot.slane %v2949, 4
        %v2952 = vor.u32 %v2948, %v2951
        %v2954 = vshrl.u32 %v2802, 16
        %v2956 = vrot.slane %v2954, 3
        %v2957 = vshll.u32 %v2802, 16
        %v2959 = vrot.slane %v2957, 4
        %v2960 = vor.u32 %v2956, %v2959
        %v2961 = vsel %vm777, %v2952, %v2960
        %v2963 = vshrl.u32 %v2795, 16
        %v2965 = vrot.slane %v2963, 3
        %v2966 = vshll.u32 %v2795, 16
        %v2968 = vrot.slane %v2966, 4
        %v2969 = vor.u32 %v2965, %v2968
        %v2971 = vshrl.u32 %v2803, 16
        %v2973 = vrot.slane %v2971, 3
        %v2974 = vshll.u32 %v2803, 16
        %v2976 = vrot.slane %v2974, 4
        %v2977 = vor.u32 %v2973, %v2976
        %v2978 = vsel %vm777, %v2969, %v2977
        %v2980 = vshrl.u32 %v2796, 16
        %v2982 = vrot.slane %v2980, 3
        %v2983 = vshll.u32 %v2796, 16
        %v2985 = vrot.slane %v2983, 4
        %v2986 = vor.u32 %v2982, %v2985
        %v2988 = vshrl.u32 %v2804, 16
        %v2990 = vrot.slane %v2988, 3
        %v2991 = vshll.u32 %v2804, 16
        %v2993 = vrot.slane %v2991, 4
        %v2994 = vor.u32 %v2990, %v2993
        %v2995 = vsel %vm777, %v2986, %v2994
        %v2997 = vshrl.u32 %v2797, 16
        %v2999 = vrot.slane %v2997, 3
        %v3000 = vshll.u32 %v2797, 16
        %v3002 = vrot.slane %v3000, 4
        %v3003 = vor.u32 %v2999, %v3002
        %v3005 = vshrl.u32 %v2805, 16
        %v3007 = vrot.slane %v3005, 3
        %v3008 = vshll.u32 %v2805, 16
        %v3010 = vrot.slane %v3008, 4
        %v3011 = vor.u32 %v3007, %v3010
        %v3012 = vsel %vm777, %v3003, %v3011
        %v3014 = vshrl.u32 %v2798, 16
        %v3016 = vrot.slane %v3014, 3
        %v3017 = vshll.u32 %v2798, 16
        %v3019 = vrot.slane %v3017, 4
        %v3020 = vor.u32 %v3016, %v3019
        %v3022 = vshrl.u32 %v2806, 16
        %v3024 = vrot.slane %v3022, 3
        %v3025 = vshll.u32 %v2806, 16
        %v3027 = vrot.slane %v3025, 4
        %v3028 = vor.u32 %v3024, %v3027
        %v3029 = vsel %vm777, %v3020, %v3028
        %v3031 = vshrl.u32 %v2799, 16
        %v3033 = vrot.slane %v3031, 3
        %v3034 = vshll.u32 %v2799, 16
        %v3036 = vrot.slane %v3034, 4
        %v3037 = vor.u32 %v3033, %v3036
        %v3039 = vshrl.u32 %v2807, 16
        %v3041 = vrot.slane %v3039, 3
        %v3042 = vshll.u32 %v2807, 16
        %v3044 = vrot.slane %v3042, 4
        %v3045 = vor.u32 %v3041, %v3044
        %v3046 = vsel %vm777, %v3037, %v3045
        %v3048 = vshrl.u32 %v2800, 16
        %v3050 = vrot.slane %v3048, 3
        %v3051 = vshll.u32 %v2800, 16
        %v3053 = vrot.slane %v3051, 4
        %v3054 = vor.u32 %v3050, %v3053
        %v3056 = vshrl.u32 %v2808, 16
        %v3058 = vrot.slane %v3056, 3
        %v3059 = vshll.u32 %v2808, 16
        %v3061 = vrot.slane %v3059, 4
        %v3062 = vor.u32 %v3058, %v3061
        %v3063 = vsel %vm777, %v3054, %v3062
        %v3065 = vshrl.u32 %v2801, 16
        %v3067 = vrot.slane %v3065, 3
        %v3068 = vshll.u32 %v2801, 16
        %v3070 = vrot.slane %v3068, 4
        %v3071 = vor.u32 %v3067, %v3070
        %v3073 = vshrl.u32 %v2809, 16
        %v3075 = vrot.slane %v3073, 3
        %v3076 = vshll.u32 %v2809, 16
        %v3078 = vrot.slane %v3076, 4
        %v3079 = vor.u32 %v3075, %v3078
        %v3080 = vsel %vm777, %v3071, %v3079
        %v3225 = vunpack.c.l.b16 %v2810
        %v3226 = vunpack.c.l.b16 %v2811
        %v3227 = vunpack.c.l.b16 %v2812
        %v3228 = vunpack.c.l.b16 %v2813
        %v3229 = vunpack.c.l.b16 %v2814
        %v3230 = vunpack.c.l.b16 %v2815
        %v3231 = vunpack.c.l.b16 %v2816
        %v3232 = vunpack.c.l.b16 %v2817
        %v3233 = vunpack.c.l.b16 %v2818
        %v3234 = vunpack.c.l.b16 %v2819
        %v3235 = vunpack.c.l.b16 %v2820
        %v3236 = vunpack.c.l.b16 %v2821
        %v3237 = vunpack.c.l.b16 %v2822
        %v3238 = vunpack.c.l.b16 %v2823
        %v3239 = vunpack.c.l.b16 %v2824
        %v3240 = vunpack.c.l.b16 %v2825
        %v3241 = vunpack.c.l.b16 %v2826
        %v3242 = vunpack.c.l.b16 %v2827
        %v3243 = vunpack.c.l.b16 %v2828
        %v3244 = vunpack.c.l.b16 %v2829
        %v3245 = vunpack.c.l.b16 %v2830
        %v3246 = vunpack.c.l.b16 %v2831
        %v3247 = vunpack.c.l.b16 %v2832
        %v3248 = vunpack.c.l.b16 %v2833
        %v3249 = vunpack.c.l.b16 %v2834
        %v3250 = vunpack.c.l.b16 %v2835
        %v3251 = vunpack.c.l.b16 %v2836
        %v3252 = vunpack.c.l.b16 %v2837
        %v3253 = vunpack.c.l.b16 %v2838
        %v3254 = vunpack.c.l.b16 %v2839
        %v3255 = vunpack.c.l.b16 %v2840
        %v3256 = vunpack.c.l.b16 %v2841
        %v3257 = vunpack.c.l.b16 %v2842
        %v3258 = vunpack.c.l.b16 %v2843
        %v3259 = vunpack.c.l.b16 %v2844
        %v3260 = vunpack.c.l.b16 %v2845
        %v3261 = vunpack.c.l.b16 %v2846
        %v3262 = vunpack.c.l.b16 %v2847
        %v3263 = vunpack.c.l.b16 %v2848
        %v3264 = vunpack.c.l.b16 %v2849
        %v3265 = vunpack.c.l.b16 %v2850
        %v3266 = vunpack.c.l.b16 %v2851
        %v3267 = vunpack.c.l.b16 %v2852
        %v3268 = vunpack.c.l.b16 %v2853
        %v3269 = vunpack.c.l.b16 %v2854
        %v3270 = vunpack.c.l.b16 %v2855
        %v3271 = vunpack.c.l.b16 %v2856
        %v3272 = vunpack.c.l.b16 %v2857
        %v3273 = vunpack.c.l.b16 %v2858
        %v3274 = vunpack.c.l.b16 %v2859
        %v3275 = vunpack.c.l.b16 %v2860
        %v3276 = vunpack.c.l.b16 %v2861
        %v3277 = vunpack.c.l.b16 %v2862
        %v3278 = vunpack.c.l.b16 %v2863
        %v3279 = vunpack.c.l.b16 %v2864
        %v3280 = vunpack.c.l.b16 %v2865
        %v3281 = vunpack.c.l.b16 %v2866
        %v3282 = vunpack.c.l.b16 %v2867
        %v3283 = vunpack.c.l.b16 %v2868
        %v3284 = vunpack.c.l.b16 %v2869
        %v3285 = vunpack.c.l.b16 %v2870
        %v3286 = vunpack.c.l.b16 %v2871
        %v3287 = vunpack.c.l.b16 %v2872
        %v3288 = vunpack.c.l.b16 %v2873
        %v3289 = vunpack.c.l.b16 %v2874
        %v3290 = vunpack.c.l.b16 %v2875
        %v3291 = vunpack.c.l.b16 %v2876
        %v3292 = vunpack.c.l.b16 %v2877
        %v3293 = vunpack.c.l.b16 %v2878
        %v3294 = vunpack.c.l.b16 %v2879
        %v3295 = vunpack.c.l.b16 %v2880
        %v3296 = vunpack.c.l.b16 %v2881
        %v3297 = vunpack.c.l.b16 %v2882
        %v3298 = vunpack.c.l.b16 %v2883
        %v3299 = vunpack.c.l.b16 %v2884
        %v3300 = vunpack.c.l.b16 %v2885
        %v3301 = vunpack.c.l.b16 %v2886
        %v3302 = vunpack.c.l.b16 %v2887
        %v3303 = vunpack.c.l.b16 %v2888
        %v3304 = vunpack.c.l.b16 %v2889
        %v3305 = vunpack.c.l.b16 %v2890
        %v3306 = vunpack.c.l.b16 %v2891
        %v3307 = vunpack.c.l.b16 %v2892
        %v3308 = vunpack.c.l.b16 %v2893
        %v3309 = vunpack.c.l.b16 %v2894
        %v3310 = vunpack.c.l.b16 %v2895
        %v3311 = vunpack.c.l.b16 %v2896
        %v3312 = vunpack.c.l.b16 %v2897
        %v3313 = vunpack.c.l.b16 %v2898
        %v3314 = vunpack.c.l.b16 %v2899
        %v3315 = vunpack.c.l.b16 %v2900
        %v3316 = vunpack.c.l.b16 %v2901
        %v3317 = vunpack.c.l.b16 %v2902
        %v3318 = vunpack.c.l.b16 %v2903
        %v3319 = vunpack.c.l.b16 %v2904
        %v3320 = vunpack.c.l.b16 %v2905
        %v3321 = vunpack.c.l.b16 %v2906
        %v3322 = vunpack.c.l.b16 %v2907
        %v3323 = vunpack.c.l.b16 %v2908
        %v3324 = vunpack.c.l.b16 %v2909
        %v3325 = vunpack.c.l.b16 %v2910
        %v3326 = vunpack.c.l.b16 %v2911
        %v3327 = vunpack.c.l.b16 %v2912
        %v3328 = vunpack.c.l.b16 %v2913
        %v3329 = vunpack.c.l.b16 %v2914
        %v3330 = vunpack.c.l.b16 %v2915
        %v3331 = vunpack.c.l.b16 %v2916
        %v3332 = vunpack.c.l.b16 %v2917
        %v3333 = vunpack.c.l.b16 %v2918
        %v3334 = vunpack.c.l.b16 %v2919
        %v3335 = vunpack.c.l.b16 %v2920
        %v3336 = vunpack.c.l.b16 %v2921
        %v3337 = vunpack.c.l.b16 %v2922
        %v3338 = vunpack.c.l.b16 %v2923
        %v3339 = vunpack.c.l.b16 %v2924
        %v3340 = vunpack.c.l.b16 %v2925
        %v3341 = vunpack.c.l.b16 %v2926
        %v3342 = vunpack.c.l.b16 %v2927
        %v3343 = vunpack.c.l.b16 %v2928
        %v3344 = vunpack.c.l.b16 %v2929
        %v3345 = vunpack.c.l.b16 %v2930
        %v3346 = vunpack.c.l.b16 %v2931
        %v3347 = vunpack.c.l.b16 %v2932
        %v3348 = vunpack.c.l.b16 %v2933
        %v3349 = vunpack.c.l.b16 %v2934
        %v3350 = vunpack.c.l.b16 %v2935
        %v3351 = vunpack.c.l.b16 %v2936
        %v3352 = vunpack.c.l.b16 %v2937
        %v3353 = vpack.c.b16 %v3226, %v3225
        %v3354 = vpack.c.b16 %v3228, %v3227
        %v3355 = vpack.c.b16 %v3230, %v3229
        %v3356 = vpack.c.b16 %v3232, %v3231
        %v3357 = vpack.c.b16 %v3234, %v3233
        %v3358 = vpack.c.b16 %v3236, %v3235
        %v3359 = vpack.c.b16 %v3238, %v3237
        %v3360 = vpack.c.b16 %v3240, %v3239
        %v3361 = vpack.c.b16 %v3242, %v3241
        %v3362 = vpack.c.b16 %v3244, %v3243
        %v3363 = vpack.c.b16 %v3246, %v3245
        %v3364 = vpack.c.b16 %v3248, %v3247
        %v3365 = vpack.c.b16 %v3250, %v3249
        %v3366 = vpack.c.b16 %v3252, %v3251
        %v3367 = vpack.c.b16 %v3254, %v3253
        %v3368 = vpack.c.b16 %v3256, %v3255
        %v3369 = vpack.c.b16 %v3258, %v3257
        %v3370 = vpack.c.b16 %v3260, %v3259
        %v3371 = vpack.c.b16 %v3262, %v3261
        %v3372 = vpack.c.b16 %v3264, %v3263
        %v3373 = vpack.c.b16 %v3266, %v3265
        %v3374 = vpack.c.b16 %v3268, %v3267
        %v3375 = vpack.c.b16 %v3270, %v3269
        %v3376 = vpack.c.b16 %v3272, %v3271
        %v3377 = vpack.c.b16 %v3274, %v3273
        %v3378 = vpack.c.b16 %v3276, %v3275
        %v3379 = vpack.c.b16 %v3278, %v3277
        %v3380 = vpack.c.b16 %v3280, %v3279
        %v3381 = vpack.c.b16 %v3282, %v3281
        %v3382 = vpack.c.b16 %v3284, %v3283
        %v3383 = vpack.c.b16 %v3286, %v3285
        %v3384 = vpack.c.b16 %v3288, %v3287
        %v3385 = vpack.c.b16 %v3290, %v3289
        %v3386 = vpack.c.b16 %v3292, %v3291
        %v3387 = vpack.c.b16 %v3294, %v3293
        %v3388 = vpack.c.b16 %v3296, %v3295
        %v3389 = vpack.c.b16 %v3298, %v3297
        %v3390 = vpack.c.b16 %v3300, %v3299
        %v3391 = vpack.c.b16 %v3302, %v3301
        %v3392 = vpack.c.b16 %v3304, %v3303
        %v3393 = vpack.c.b16 %v3306, %v3305
        %v3394 = vpack.c.b16 %v3308, %v3307
        %v3395 = vpack.c.b16 %v3310, %v3309
        %v3396 = vpack.c.b16 %v3312, %v3311
        %v3397 = vpack.c.b16 %v3314, %v3313
        %v3398 = vpack.c.b16 %v3316, %v3315
        %v3399 = vpack.c.b16 %v3318, %v3317
        %v3400 = vpack.c.b16 %v3320, %v3319
        %v3401 = vpack.c.b16 %v3322, %v3321
        %v3402 = vpack.c.b16 %v3324, %v3323
        %v3403 = vpack.c.b16 %v3326, %v3325
        %v3404 = vpack.c.b16 %v3328, %v3327
        %v3405 = vpack.c.b16 %v3330, %v3329
        %v3406 = vpack.c.b16 %v3332, %v3331
        %v3407 = vpack.c.b16 %v3334, %v3333
        %v3408 = vpack.c.b16 %v3336, %v3335
        %v3409 = vpack.c.b16 %v3338, %v3337
        %v3410 = vpack.c.b16 %v3340, %v3339
        %v3411 = vpack.c.b16 %v3342, %v3341
        %v3412 = vpack.c.b16 %v3344, %v3343
        %v3413 = vpack.c.b16 %v3346, %v3345
        %v3414 = vpack.c.b16 %v3348, %v3347
        %v3415 = vpack.c.b16 %v3350, %v3349
        %v3416 = vpack.c.b16 %v3352, %v3351
        %3481 = vmatprep.subr.bf16.mxu0 0
        %3482 = vmatpush1.bf16.msra.mxu0 %v3353
        %3483 = vmatprep.subr.bf16.mxu0 0
        %3484 = vmatpush1.bf16.msra.mxu0 %v3354
        %3485 = vmatprep.subr.bf16.mxu0 0
        %3486 = vmatpush1.bf16.msra.mxu0 %v3355
        %3487 = vmatprep.subr.bf16.mxu0 0
        %3488 = vmatpush1.bf16.msra.mxu0 %v3356
        %3489 = vmatprep.subr.bf16.mxu0 0
        %3490 = vmatpush1.bf16.msra.mxu0 %v3357
        %3491 = vmatprep.subr.bf16.mxu0 0
        %3492 = vmatpush1.bf16.msra.mxu0 %v3358
        %3493 = vmatprep.subr.bf16.mxu0 0
        %3494 = vmatpush1.bf16.msra.mxu0 %v3359
        %3495 = vmatprep.subr.bf16.mxu0 0
        %3496 = vmatpush1.bf16.msra.mxu0 %v3360
        %3497 = vmatprep.subr.bf16.mxu0 0
        %3498 = vmatpush1.bf16.msra.mxu0 %v3361
        %3499 = vmatprep.subr.bf16.mxu0 0
        %3500 = vmatpush1.bf16.msra.mxu0 %v3362
        %3501 = vmatprep.subr.bf16.mxu0 0
        %3502 = vmatpush1.bf16.msra.mxu0 %v3363
        %3503 = vmatprep.subr.bf16.mxu0 0
        %3504 = vmatpush1.bf16.msra.mxu0 %v3364
        %3505 = vmatprep.subr.bf16.mxu0 0
        %3506 = vmatpush1.bf16.msra.mxu0 %v3365
        %3507 = vmatprep.subr.bf16.mxu0 0
        %3508 = vmatpush1.bf16.msra.mxu0 %v3366
        %3509 = vmatprep.subr.bf16.mxu0 0
        %3510 = vmatpush1.bf16.msra.mxu0 %v3367
        %3511 = vmatprep.subr.bf16.mxu0 0
        %3512 = vmatpush1.bf16.msra.mxu0 %v3368
        %3513 = vmatprep.mubr.bf16.mxu0 %v2978
        %3514 = vmatmul.mubr.bf16.gmra.mrb[0].mxu0 %v2961
        %v3515 = vpop.f32.mrb[0].mxu0
        %v3516 = vadd.f32 %v2943, %v3515
        %v3517 = vpop.f32.mrb[0].mxu0
        %v3518 = vpop.f32.mrb[0].mxu0
        %v3519 = vadd.f32 %v2943, %v3518
        %v3520 = vpop.f32.mrb[0].mxu0
        %3521 = vmatprep.mubr.bf16.mxu0 %v2977
        %3522 = vmatmul.mubr.bf16.gmra.mrb[0].mxu0 %v2960
        %v3523 = vpop.f32.mrb[0].mxu0
        %v3524 = vadd.f32 %v2943, %v3523
        %v3525 = vpop.f32.mrb[0].mxu0
        %v3526 = vpop.f32.mrb[0].mxu0
        %v3527 = vpop.f32.mrb[0].mxu0
        %3528 = vdwg.mxu0
        %3529 = vmatprep.subr.bf16.mxu0 0
        %3530 = vmatpush1.bf16.msra.mxu0 %v3369
        %3531 = vmatprep.subr.bf16.mxu0 0
        %3532 = vmatpush1.bf16.msra.mxu0 %v3370
        %3533 = vmatprep.subr.bf16.mxu0 0
        %3534 = vmatpush1.bf16.msra.mxu0 %v3371
        %3535 = vmatprep.subr.bf16.mxu0 0
        %3536 = vmatpush1.bf16.msra.mxu0 %v3372
        %3537 = vmatprep.subr.bf16.mxu0 0
        %3538 = vmatpush1.bf16.msra.mxu0 %v3373
        %3539 = vmatprep.subr.bf16.mxu0 0
        %3540 = vmatpush1.bf16.msra.mxu0 %v3374
        %3541 = vmatprep.subr.bf16.mxu0 0
        %3542 = vmatpush1.bf16.msra.mxu0 %v3375
        %3543 = vmatprep.subr.bf16.mxu0 0
        %3544 = vmatpush1.bf16.msra.mxu0 %v3376
        %3545 = vmatprep.subr.bf16.mxu0 0
        %3546 = vmatpush1.bf16.msra.mxu0 %v3377
        %3547 = vmatprep.subr.bf16.mxu0 0
        %3548 = vmatpush1.bf16.msra.mxu0 %v3378
        %3549 = vmatprep.subr.bf16.mxu0 0
        %3550 = vmatpush1.bf16.msra.mxu0 %v3379
        %3551 = vmatprep.subr.bf16.mxu0 0
        %3552 = vmatpush1.bf16.msra.mxu0 %v3380
        %3553 = vmatprep.subr.bf16.mxu0 0
        %3554 = vmatpush1.bf16.msra.mxu0 %v3381
        %3555 = vmatprep.subr.bf16.mxu0 0
        %3556 = vmatpush1.bf16.msra.mxu0 %v3382
        %3557 = vmatprep.subr.bf16.mxu0 0
        %3558 = vmatpush1.bf16.msra.mxu0 %v3383
        %3559 = vmatprep.subr.bf16.mxu0 0
        %3560 = vmatpush1.bf16.msra.mxu0 %v3384
        %3561 = vmatprep.mubr.bf16.mxu0 %v3012
        %3562 = vmatmul.mubr.bf16.gmra.mrb[0].mxu0 %v2995
        %v3563 = vpop.f32.mrb[0].mxu0
        %v3564 = vadd.f32 %v3516, %v3563
        %v3565 = vpop.f32.mrb[0].mxu0
        %v3566 = vpop.f32.mrb[0].mxu0
        %v3567 = vadd.f32 %v3519, %v3566
        %v3568 = vpop.f32.mrb[0].mxu0
        %3569 = vmatprep.mubr.bf16.mxu0 %v3011
        %3570 = vmatmul.mubr.bf16.gmra.mrb[0].mxu0 %v2994
        %v3571 = vpop.f32.mrb[0].mxu0
        %v3572 = vadd.f32 %v3524, %v3571
        %v3573 = vpop.f32.mrb[0].mxu0
        %v3574 = vpop.f32.mrb[0].mxu0
        %v3575 = vpop.f32.mrb[0].mxu0
        %3576 = vdwg.mxu0
        %3577 = vmatprep.subr.bf16.mxu0 0
        %3578 = vmatpush1.bf16.msra.mxu0 %v3385
        %3579 = vmatprep.subr.bf16.mxu0 0
        %3580 = vmatpush1.bf16.msra.mxu0 %v3386
        %3581 = vmatprep.subr.bf16.mxu0 0
        %3582 = vmatpush1.bf16.msra.mxu0 %v3387
        %3583 = vmatprep.subr.bf16.mxu0 0
        %3584 = vmatpush1.bf16.msra.mxu0 %v3388
        %3585 = vmatprep.subr.bf16.mxu0 0
        %3586 = vmatpush1.bf16.msra.mxu0 %v3389
        %3587 = vmatprep.subr.bf16.mxu0 0
        %3588 = vmatpush1.bf16.msra.mxu0 %v3390
        %3589 = vmatprep.subr.bf16.mxu0 0
        %3590 = vmatpush1.bf16.msra.mxu0 %v3391
        %3591 = vmatprep.subr.bf16.mxu0 0
        %3592 = vmatpush1.bf16.msra.mxu0 %v3392
        %3593 = vmatprep.subr.bf16.mxu0 0
        %3594 = vmatpush1.bf16.msra.mxu0 %v3393
        %3595 = vmatprep.subr.bf16.mxu0 0
        %3596 = vmatpush1.bf16.msra.mxu0 %v3394
        %3597 = vmatprep.subr.bf16.mxu0 0
        %3598 = vmatpush1.bf16.msra.mxu0 %v3395
        %3599 = vmatprep.subr.bf16.mxu0 0
        %3600 = vmatpush1.bf16.msra.mxu0 %v3396
        %3601 = vmatprep.subr.bf16.mxu0 0
        %3602 = vmatpush1.bf16.msra.mxu0 %v3397
        %3603 = vmatprep.subr.bf16.mxu0 0
        %3604 = vmatpush1.bf16.msra.mxu0 %v3398
        %3605 = vmatprep.subr.bf16.mxu0 0
        %3606 = vmatpush1.bf16.msra.mxu0 %v3399
        %3607 = vmatprep.subr.bf16.mxu0 0
        %3608 = vmatpush1.bf16.msra.mxu0 %v3400
        %3609 = vmatprep.mubr.bf16.mxu0 %v3046
        %3610 = vmatmul.mubr.bf16.gmra.mrb[0].mxu0 %v3029
        %v3611 = vpop.f32.mrb[0].mxu0
        %v3612 = vadd.f32 %v3564, %v3611
        %v3613 = vpop.f32.mrb[0].mxu0
        %v3614 = vpop.f32.mrb[0].mxu0
        %v3615 = vadd.f32 %v3567, %v3614
        %v3616 = vpop.f32.mrb[0].mxu0
        %3617 = vmatprep.mubr.bf16.mxu0 %v3045
        %3618 = vmatmul.mubr.bf16.gmra.mrb[0].mxu0 %v3028
        %v3619 = vpop.f32.mrb[0].mxu0
        %v3620 = vadd.f32 %v3572, %v3619
        %v3621 = vpop.f32.mrb[0].mxu0
        %v3622 = vpop.f32.mrb[0].mxu0
        %v3623 = vpop.f32.mrb[0].mxu0
        %3624 = vdwg.mxu0
        %3625 = vmatprep.subr.bf16.mxu0 0
        %3626 = vmatpush1.bf16.msra.mxu0 %v3401
        %3627 = vmatprep.subr.bf16.mxu0 0
        %3628 = vmatpush1.bf16.msra.mxu0 %v3402
        %3629 = vmatprep.subr.bf16.mxu0 0
        %3630 = vmatpush1.bf16.msra.mxu0 %v3403
        %3631 = vmatprep.subr.bf16.mxu0 0
        %3632 = vmatpush1.bf16.msra.mxu0 %v3404
        %3633 = vmatprep.subr.bf16.mxu0 0
        %3634 = vmatpush1.bf16.msra.mxu0 %v3405
        %3635 = vmatprep.subr.bf16.mxu0 0
        %3636 = vmatpush1.bf16.msra.mxu0 %v3406
        %3637 = vmatprep.subr.bf16.mxu0 0
        %3638 = vmatpush1.bf16.msra.mxu0 %v3407
        %3639 = vmatprep.subr.bf16.mxu0 0
        %3640 = vmatpush1.bf16.msra.mxu0 %v3408
        %3641 = vmatprep.subr.bf16.mxu0 0
        %3642 = vmatpush1.bf16.msra.mxu0 %v3409
        %3643 = vmatprep.subr.bf16.mxu0 0
        %3644 = vmatpush1.bf16.msra.mxu0 %v3410
        %3645 = vmatprep.subr.bf16.mxu0 0
        %3646 = vmatpush1.bf16.msra.mxu0 %v3411
        %3647 = vmatprep.subr.bf16.mxu0 0
        %3648 = vmatpush1.bf16.msra.mxu0 %v3412
        %3649 = vmatprep.subr.bf16.mxu0 0
        %3650 = vmatpush1.bf16.msra.mxu0 %v3413
        %3651 = vmatprep.subr.bf16.mxu0 0
        %3652 = vmatpush1.bf16.msra.mxu0 %v3414
        %3653 = vmatprep.subr.bf16.mxu0 0
        %3654 = vmatpush1.bf16.msra.mxu0 %v3415
        %3655 = vmatprep.subr.bf16.mxu0 0
        %3656 = vmatpush1.bf16.msra.mxu0 %v3416
        %3657 = vmatprep.mubr.bf16.mxu0 %v3080
        %3658 = vmatmul.mubr.bf16.gmra.mrb[0].mxu0 %v3063
        %v3659 = vpop.f32.mrb[0].mxu0
        %v3660 = vadd.f32 %v3612, %v3659
        %v3661 = vpop.f32.mrb[0].mxu0
        %v3662 = vpop.f32.mrb[0].mxu0
        %v3663 = vadd.f32 %v3615, %v3662
        %v3664 = vpop.f32.mrb[0].mxu0
        %3665 = vmatprep.mubr.bf16.mxu0 %v3079
        %3666 = vmatmul.mubr.bf16.gmra.mrb[0].mxu0 %v3062
        %v3667 = vpop.f32.mrb[0].mxu0
        %v3668 = vadd.f32 %v3620, %v3667
        %v3669 = vpop.f32.mrb[0].mxu0
        %v3670 = vpop.f32.mrb[0].mxu0
        %v3671 = vpop.f32.mrb[0].mxu0
        %3672 = vdwg.mxu0
        %v3673 = vmax.f32 %v3660, 0.0
        %v3674 = vmax.f32 %v3663, 0.0
        %v3675 = vmax.f32 %v3668, 0.0
        %vm3676 = vcmp.lt.s32.totalorder %v1624, 23
        %vm3677 = vcmp.lt.s32.totalorder %v1625, 23
        %vm3678 = vcmp.lt.s32.totalorder %v1626, 23
        %v3679 = vsel %vm3676, %v3673, 0.0
        %v3680 = vsel %vm3677, %v3674, 0.0
        %v3681 = vsel %vm3678, %v3675, 0.0
        %v3685 = vrot.slane %v3679, 1
        %v3686 = vrot.slane %v3680, 1
        %v3687 = vsel %vm493, %v3685, %v3686
        %v3688 = vrot.slane %v3681, 1
        %v3689 = vsel %vm493, %v3686, %v3688
        %v3695 = vrot.slane %v3679, 2
        %v3696 = vrot.slane %v3680, 2
        %v3697 = vsel %vm510, %v3695, %v3696
        %v3698 = vrot.slane %v3681, 2
        %v3699 = vsel %vm510, %v3696, %v3698
        %v3700 = vrot.slane 0.0, 2
        %v3701 = vsel %vm510, %v3698, %v3700
        %v3706 = vrot.slane %v3679, 3
        %v3707 = vrot.slane %v3680, 3
        %v3708 = vsel %vm528, %v3706, %v3707
        %v3709 = vrot.slane %v3681, 3
        %v3710 = vsel %vm528, %v3707, %v3709
        %v3711 = vrot.slane 0.0, 3
        %v3712 = vsel %vm528, %v3709, %v3711
        %v3717 = vrot.slane %v3679, 4
        %v3718 = vrot.slane %v3680, 4
        %v3719 = vsel %vm546, %v3717, %v3718
        %v3720 = vrot.slane %v3681, 4
        %v3721 = vsel %vm546, %v3718, %v3720
        %v3722 = vrot.slane 0.0, 4
        %v3723 = vsel %vm546, %v3720, %v3722
        %v3728 = vrot.slane %v3679, 5
        %v3729 = vrot.slane %v3680, 5
        %v3730 = vsel %vm564, %v3728, %v3729
        %v3731 = vrot.slane %v3681, 5
        %v3732 = vsel %vm564, %v3729, %v3731
        %v3733 = vrot.slane 0.0, 5
        %v3734 = vsel %vm564, %v3731, %v3733
        %v3739 = vrot.slane %v3679, 6
        %v3740 = vrot.slane %v3680, 6
        %v3741 = vsel %vm582, %v3739, %v3740
        %v3742 = vrot.slane %v3681, 6
        %v3743 = vsel %vm582, %v3740, %v3742
        %v3744 = vrot.slane 0.0, 6
        %v3745 = vsel %vm582, %v3742, %v3744
        %v3750 = vrot.slane %v3679, 7
        %v3751 = vrot.slane %v3680, 7
        %v3752 = vsel %vm600, %v3750, %v3751
        %v3753 = vrot.slane %v3681, 7
        %v3754 = vsel %vm600, %v3751, %v3753
        %v3755 = vrot.slane 0.0, 7
        %v3756 = vsel %vm600, %v3753, %v3755
        %v3761 = vpack.c.bf16 %v3679, 0.0
        %v3762 = vpack.c.bf16 %v3687, %v3685
        %v3763 = vpack.c.bf16 %v3697, %v3695
        %v3764 = vpack.c.bf16 %v3708, %v3706
        %v3765 = vpack.c.bf16 %v3719, %v3717
        %v3766 = vpack.c.bf16 %v3730, %v3728
        %v3767 = vpack.c.bf16 %v3741, %v3739
        %v3768 = vpack.c.bf16 %v3752, %v3750
        %v3769 = vpack.c.bf16 %v3681, %v3680
        %v3770 = vpack.c.bf16 %v3688, %v3689
        %v3771 = vpack.c.bf16 %v3701, %v3699
        %v3772 = vpack.c.bf16 %v3712, %v3710
        %v3773 = vpack.c.bf16 %v3723, %v3721
        %v3774 = vpack.c.bf16 %v3734, %v3732
        %v3775 = vpack.c.bf16 %v3745, %v3743
        %v3776 = vpack.c.bf16 %v3756, %v3754
        %v3777 = vld [vmem:[#allocation10] sm:$0xf]
        %v3778 = vld [vmem:[#allocation10 + $0x4] sm:$0xf]
        %v3779 = vld [vmem:[#allocation10 + $0x8] sm:$0xf]
        %v3780 = vld [vmem:[#allocation10 + $0xc] sm:$0xf]
        %v3781 = vld [vmem:[#allocation10 + $0x10] sm:$0xf]
        %v3782 = vld [vmem:[#allocation10 + $0x14] sm:$0xf]
        %v3783 = vld [vmem:[#allocation10 + $0x18] sm:$0xf]
        %v3784 = vld [vmem:[#allocation10 + $0x1c] sm:$0xf]
        %v3785 = vld [vmem:[#allocation10 + $0x20] sm:$0xf]
        %v3786 = vld [vmem:[#allocation10 + $0x24] sm:$0xf]
        %v3787 = vld [vmem:[#allocation10 + $0x28] sm:$0xf]
        %v3788 = vld [vmem:[#allocation10 + $0x2c] sm:$0xf]
        %v3789 = vld [vmem:[#allocation10 + $0x30] sm:$0xf]
        %v3790 = vld [vmem:[#allocation10 + $0x34] sm:$0xf]
        %v3791 = vld [vmem:[#allocation10 + $0x38] sm:$0xf]
        %v3792 = vld [vmem:[#allocation10 + $0x3c] sm:$0xf]
        %v3793 = vld [vmem:[#allocation10 + $0x40] sm:$0xf]
        %v3794 = vld [vmem:[#allocation10 + $0x44] sm:$0xf]
        %v3795 = vld [vmem:[#allocation10 + $0x48] sm:$0xf]
        %v3796 = vld [vmem:[#allocation10 + $0x4c] sm:$0xf]
        %v3797 = vld [vmem:[#allocation10 + $0x50] sm:$0xf]
        %v3798 = vld [vmem:[#allocation10 + $0x54] sm:$0xf]
        %v3799 = vld [vmem:[#allocation10 + $0x58] sm:$0xf]
        %v3800 = vld [vmem:[#allocation10 + $0x5c] sm:$0xf]
        %v3801 = vld [vmem:[#allocation10 + $0x60] sm:$0xf]
        %v3802 = vld [vmem:[#allocation10 + $0x64] sm:$0xf]
        %v3803 = vld [vmem:[#allocation10 + $0x68] sm:$0xf]
        %v3804 = vld [vmem:[#allocation10 + $0x6c] sm:$0xf]
        %v3805 = vld [vmem:[#allocation10 + $0x70] sm:$0xf]
        %v3806 = vld [vmem:[#allocation10 + $0x74] sm:$0xf]
        %v3807 = vld [vmem:[#allocation10 + $0x78] sm:$0xf]
        %v3808 = vld [vmem:[#allocation10 + $0x7c] sm:$0xf]
        %v3809 = vld [vmem:[#allocation10 + $0x80] sm:$0xf]
        %v3810 = vld [vmem:[#allocation10 + $0x84] sm:$0xf]
        %v3811 = vld [vmem:[#allocation10 + $0x88] sm:$0xf]
        %v3812 = vld [vmem:[#allocation10 + $0x8c] sm:$0xf]
        %v3813 = vld [vmem:[#allocation10 + $0x90] sm:$0xf]
        %v3814 = vld [vmem:[#allocation10 + $0x94] sm:$0xf]
        %v3815 = vld [vmem:[#allocation10 + $0x98] sm:$0xf]
        %v3816 = vld [vmem:[#allocation10 + $0x9c] sm:$0xf]
        %v3817 = vld [vmem:[#allocation10 + $0xa0] sm:$0xf]
        %v3818 = vld [vmem:[#allocation10 + $0xa4] sm:$0xf]
        %v3819 = vld [vmem:[#allocation10 + $0xa8] sm:$0xf]
        %v3820 = vld [vmem:[#allocation10 + $0xac] sm:$0xf]
        %v3821 = vld [vmem:[#allocation10 + $0xb0] sm:$0xf]
        %v3822 = vld [vmem:[#allocation10 + $0xb4] sm:$0xf]
        %v3823 = vld [vmem:[#allocation10 + $0xb8] sm:$0xf]
        %v3824 = vld [vmem:[#allocation10 + $0xbc] sm:$0xf]
        %v3825 = vld [vmem:[#allocation10 + $0xc0] sm:$0xf]
        %v3826 = vld [vmem:[#allocation10 + $0xc4] sm:$0xf]
        %v3827 = vld [vmem:[#allocation10 + $0xc8] sm:$0xf]
        %v3828 = vld [vmem:[#allocation10 + $0xcc] sm:$0xf]
        %v3829 = vld [vmem:[#allocation10 + $0xd0] sm:$0xf]
        %v3830 = vld [vmem:[#allocation10 + $0xd4] sm:$0xf]
        %v3831 = vld [vmem:[#allocation10 + $0xd8] sm:$0xf]
        %v3832 = vld [vmem:[#allocation10 + $0xdc] sm:$0xf]
        %v3833 = vld [vmem:[#allocation10 + $0xe0] sm:$0xf]
        %v3834 = vld [vmem:[#allocation10 + $0xe4] sm:$0xf]
        %v3835 = vld [vmem:[#allocation10 + $0xe8] sm:$0xf]
        %v3836 = vld [vmem:[#allocation10 + $0xec] sm:$0xf]
        %v3837 = vld [vmem:[#allocation10 + $0xf0] sm:$0xf]
        %v3838 = vld [vmem:[#allocation10 + $0xf4] sm:$0xf]
        %v3839 = vld [vmem:[#allocation10 + $0xf8] sm:$0xf]
        %v3840 = vld [vmem:[#allocation10 + $0xfc] sm:$0xf]
        %v3841 = vld [vmem:[#allocation10 + $0x100] sm:$0xf]
        %v3842 = vld [vmem:[#allocation10 + $0x104] sm:$0xf]
        %v3843 = vld [vmem:[#allocation10 + $0x108] sm:$0xf]
        %v3844 = vld [vmem:[#allocation10 + $0x10c] sm:$0xf]
        %v3845 = vld [vmem:[#allocation10 + $0x110] sm:$0xf]
        %v3846 = vld [vmem:[#allocation10 + $0x114] sm:$0xf]
        %v3847 = vld [vmem:[#allocation10 + $0x118] sm:$0xf]
        %v3848 = vld [vmem:[#allocation10 + $0x11c] sm:$0xf]
        %v3849 = vld [vmem:[#allocation10 + $0x120] sm:$0xf]
        %v3850 = vld [vmem:[#allocation10 + $0x124] sm:$0xf]
        %v3851 = vld [vmem:[#allocation10 + $0x128] sm:$0xf]
        %v3852 = vld [vmem:[#allocation10 + $0x12c] sm:$0xf]
        %v3853 = vld [vmem:[#allocation10 + $0x130] sm:$0xf]
        %v3854 = vld [vmem:[#allocation10 + $0x134] sm:$0xf]
        %v3855 = vld [vmem:[#allocation10 + $0x138] sm:$0xf]
        %v3856 = vld [vmem:[#allocation10 + $0x13c] sm:$0xf]
        %v3857 = vld [vmem:[#allocation10 + $0x140] sm:$0xf]
        %v3858 = vld [vmem:[#allocation10 + $0x144] sm:$0xf]
        %v3859 = vld [vmem:[#allocation10 + $0x148] sm:$0xf]
        %v3860 = vld [vmem:[#allocation10 + $0x14c] sm:$0xf]
        %v3861 = vld [vmem:[#allocation10 + $0x150] sm:$0xf]
        %v3862 = vld [vmem:[#allocation10 + $0x154] sm:$0xf]
        %v3863 = vld [vmem:[#allocation10 + $0x158] sm:$0xf]
        %v3864 = vld [vmem:[#allocation10 + $0x15c] sm:$0xf]
        %v3865 = vld [vmem:[#allocation10 + $0x160] sm:$0xf]
        %v3866 = vld [vmem:[#allocation10 + $0x164] sm:$0xf]
        %v3867 = vld [vmem:[#allocation10 + $0x168] sm:$0xf]
        %v3868 = vld [vmem:[#allocation10 + $0x16c] sm:$0xf]
        %v3869 = vld [vmem:[#allocation10 + $0x170] sm:$0xf]
        %v3870 = vld [vmem:[#allocation10 + $0x174] sm:$0xf]
        %v3871 = vld [vmem:[#allocation10 + $0x178] sm:$0xf]
        %v3872 = vld [vmem:[#allocation10 + $0x17c] sm:$0xf]
        %v3873 = vld [vmem:[#allocation10 + $0x180] sm:$0xf]
        %v3874 = vld [vmem:[#allocation10 + $0x184] sm:$0xf]
        %v3875 = vld [vmem:[#allocation10 + $0x188] sm:$0xf]
        %v3876 = vld [vmem:[#allocation10 + $0x18c] sm:$0xf]
        %v3877 = vld [vmem:[#allocation10 + $0x190] sm:$0xf]
        %v3878 = vld [vmem:[#allocation10 + $0x194] sm:$0xf]
        %v3879 = vld [vmem:[#allocation10 + $0x198] sm:$0xf]
        %v3880 = vld [vmem:[#allocation10 + $0x19c] sm:$0xf]
        %v3881 = vld [vmem:[#allocation10 + $0x1a0] sm:$0xf]
        %v3882 = vld [vmem:[#allocation10 + $0x1a4] sm:$0xf]
        %v3883 = vld [vmem:[#allocation10 + $0x1a8] sm:$0xf]
        %v3884 = vld [vmem:[#allocation10 + $0x1ac] sm:$0xf]
        %v3885 = vld [vmem:[#allocation10 + $0x1b0] sm:$0xf]
        %v3886 = vld [vmem:[#allocation10 + $0x1b4] sm:$0xf]
        %v3887 = vld [vmem:[#allocation10 + $0x1b8] sm:$0xf]
        %v3888 = vld [vmem:[#allocation10 + $0x1bc] sm:$0xf]
        %v3889 = vld [vmem:[#allocation10 + $0x1c0] sm:$0xf]
        %v3890 = vld [vmem:[#allocation10 + $0x1c4] sm:$0xf]
        %v3891 = vld [vmem:[#allocation10 + $0x1c8] sm:$0xf]
        %v3892 = vld [vmem:[#allocation10 + $0x1cc] sm:$0xf]
        %v3893 = vld [vmem:[#allocation10 + $0x1d0] sm:$0xf]
        %v3894 = vld [vmem:[#allocation10 + $0x1d4] sm:$0xf]
        %v3895 = vld [vmem:[#allocation10 + $0x1d8] sm:$0xf]
        %v3896 = vld [vmem:[#allocation10 + $0x1dc] sm:$0xf]
        %v3897 = vld [vmem:[#allocation10 + $0x1e0] sm:$0xf]
        %v3898 = vld [vmem:[#allocation10 + $0x1e4] sm:$0xf]
        %v3899 = vld [vmem:[#allocation10 + $0x1e8] sm:$0xf]
        %v3900 = vld [vmem:[#allocation10 + $0x1ec] sm:$0xf]
        %v3901 = vld [vmem:[#allocation10 + $0x1f0] sm:$0xf]
        %v3902 = vld [vmem:[#allocation10 + $0x1f4] sm:$0xf]
        %v3903 = vld [vmem:[#allocation10 + $0x1f8] sm:$0xf]
        %v3904 = vld [vmem:[#allocation10 + $0x1fc] sm:$0xf]
        %v3905 = vld [vmem:[%s8] sm:$0x1]
        %v3907 = vlaneseq
        %v3908 = vshrl.u32 %v3907, 7
        %v3909 = vsub.s32 0, %v3908
        %v3910 = vrot.slane %v3905, %v3909
        %v3913 = vshrl.u32 %v3761, 16
        %v3915 = vrot.slane %v3913, 3
        %v3916 = vshll.u32 %v3761, 16
        %v3918 = vrot.slane %v3916, 4
        %v3919 = vor.u32 %v3915, %v3918
        %v3921 = vshrl.u32 %v3769, 16
        %v3923 = vrot.slane %v3921, 3
        %v3924 = vshll.u32 %v3769, 16
        %v3926 = vrot.slane %v3924, 4
        %v3927 = vor.u32 %v3923, %v3926
        %v3928 = vsel %vm777, %v3919, %v3927
        %v3930 = vshrl.u32 %v3762, 16
        %v3932 = vrot.slane %v3930, 3
        %v3933 = vshll.u32 %v3762, 16
        %v3935 = vrot.slane %v3933, 4
        %v3936 = vor.u32 %v3932, %v3935
        %v3938 = vshrl.u32 %v3770, 16
        %v3940 = vrot.slane %v3938, 3
        %v3941 = vshll.u32 %v3770, 16
        %v3943 = vrot.slane %v3941, 4
        %v3944 = vor.u32 %v3940, %v3943
        %v3945 = vsel %vm777, %v3936, %v3944
        %v3947 = vshrl.u32 %v3763, 16
        %v3949 = vrot.slane %v3947, 3
        %v3950 = vshll.u32 %v3763, 16
        %v3952 = vrot.slane %v3950, 4
        %v3953 = vor.u32 %v3949, %v3952
        %v3955 = vshrl.u32 %v3771, 16
        %v3957 = vrot.slane %v3955, 3
        %v3958 = vshll.u32 %v3771, 16
        %v3960 = vrot.slane %v3958, 4
        %v3961 = vor.u32 %v3957, %v3960
        %v3962 = vsel %vm777, %v3953, %v3961
        %v3964 = vshrl.u32 %v3764, 16
        %v3966 = vrot.slane %v3964, 3
        %v3967 = vshll.u32 %v3764, 16
        %v3969 = vrot.slane %v3967, 4
        %v3970 = vor.u32 %v3966, %v3969
        %v3972 = vshrl.u32 %v3772, 16
        %v3974 = vrot.slane %v3972, 3
        %v3975 = vshll.u32 %v3772, 16
        %v3977 = vrot.slane %v3975, 4
        %v3978 = vor.u32 %v3974, %v3977
        %v3979 = vsel %vm777, %v3970, %v3978
        %v3981 = vshrl.u32 %v3765, 16
        %v3983 = vrot.slane %v3981, 3
        %v3984 = vshll.u32 %v3765, 16
        %v3986 = vrot.slane %v3984, 4
        %v3987 = vor.u32 %v3983, %v3986
        %v3989 = vshrl.u32 %v3773, 16
        %v3991 = vrot.slane %v3989, 3
        %v3992 = vshll.u32 %v3773, 16
        %v3994 = vrot.slane %v3992, 4
        %v3995 = vor.u32 %v3991, %v3994
        %v3996 = vsel %vm777, %v3987, %v3995
        %v3998 = vshrl.u32 %v3766, 16
        %v4000 = vrot.slane %v3998, 3
        %v4001 = vshll.u32 %v3766, 16
        %v4003 = vrot.slane %v4001, 4
        %v4004 = vor.u32 %v4000, %v4003
        %v4006 = vshrl.u32 %v3774, 16
        %v4008 = vrot.slane %v4006, 3
        %v4009 = vshll.u32 %v3774, 16
        %v4011 = vrot.slane %v4009, 4
        %v4012 = vor.u32 %v4008, %v4011
        %v4013 = vsel %vm777, %v4004, %v4012
        %v4015 = vshrl.u32 %v3767, 16
        %v4017 = vrot.slane %v4015, 3
        %v4018 = vshll.u32 %v3767, 16
        %v4020 = vrot.slane %v4018, 4
        %v4021 = vor.u32 %v4017, %v4020
        %v4023 = vshrl.u32 %v3775, 16
        %v4025 = vrot.slane %v4023, 3
        %v4026 = vshll.u32 %v3775, 16
        %v4028 = vrot.slane %v4026, 4
        %v4029 = vor.u32 %v4025, %v4028
        %v4030 = vsel %vm777, %v4021, %v4029
        %v4032 = vshrl.u32 %v3768, 16
        %v4034 = vrot.slane %v4032, 3
        %v4035 = vshll.u32 %v3768, 16
        %v4037 = vrot.slane %v4035, 4
        %v4038 = vor.u32 %v4034, %v4037
        %v4040 = vshrl.u32 %v3776, 16
        %v4042 = vrot.slane %v4040, 3
        %v4043 = vshll.u32 %v3776, 16
        %v4045 = vrot.slane %v4043, 4
        %v4046 = vor.u32 %v4042, %v4045
        %v4047 = vsel %vm777, %v4038, %v4046
        %v4192 = vunpack.c.l.b16 %v3777
        %v4193 = vunpack.c.l.b16 %v3778
        %v4194 = vunpack.c.l.b16 %v3779
        %v4195 = vunpack.c.l.b16 %v3780
        %v4196 = vunpack.c.l.b16 %v3781
        %v4197 = vunpack.c.l.b16 %v3782
        %v4198 = vunpack.c.l.b16 %v3783
        %v4199 = vunpack.c.l.b16 %v3784
        %v4200 = vunpack.c.l.b16 %v3785
        %v4201 = vunpack.c.l.b16 %v3786
        %v4202 = vunpack.c.l.b16 %v3787
        %v4203 = vunpack.c.l.b16 %v3788
        %v4204 = vunpack.c.l.b16 %v3789
        %v4205 = vunpack.c.l.b16 %v3790
        %v4206 = vunpack.c.l.b16 %v3791
        %v4207 = vunpack.c.l.b16 %v3792
        %v4208 = vunpack.c.l.b16 %v3793
        %v4209 = vunpack.c.l.b16 %v3794
        %v4210 = vunpack.c.l.b16 %v3795
        %v4211 = vunpack.c.l.b16 %v3796
        %v4212 = vunpack.c.l.b16 %v3797
        %v4213 = vunpack.c.l.b16 %v3798
        %v4214 = vunpack.c.l.b16 %v3799
        %v4215 = vunpack.c.l.b16 %v3800
        %v4216 = vunpack.c.l.b16 %v3801
        %v4217 = vunpack.c.l.b16 %v3802
        %v4218 = vunpack.c.l.b16 %v3803
        %v4219 = vunpack.c.l.b16 %v3804
        %v4220 = vunpack.c.l.b16 %v3805
        %v4221 = vunpack.c.l.b16 %v3806
        %v4222 = vunpack.c.l.b16 %v3807
        %v4223 = vunpack.c.l.b16 %v3808
        %v4224 = vunpack.c.l.b16 %v3809
        %v4225 = vunpack.c.l.b16 %v3810
        %v4226 = vunpack.c.l.b16 %v3811
        %v4227 = vunpack.c.l.b16 %v3812
        %v4228 = vunpack.c.l.b16 %v3813
        %v4229 = vunpack.c.l.b16 %v3814
        %v4230 = vunpack.c.l.b16 %v3815
        %v4231 = vunpack.c.l.b16 %v3816
        %v4232 = vunpack.c.l.b16 %v3817
        %v4233 = vunpack.c.l.b16 %v3818
        %v4234 = vunpack.c.l.b16 %v3819
        %v4235 = vunpack.c.l.b16 %v3820
        %v4236 = vunpack.c.l.b16 %v3821
        %v4237 = vunpack.c.l.b16 %v3822
        %v4238 = vunpack.c.l.b16 %v3823
        %v4239 = vunpack.c.l.b16 %v3824
        %v4240 = vunpack.c.l.b16 %v3825
        %v4241 = vunpack.c.l.b16 %v3826
        %v4242 = vunpack.c.l.b16 %v3827
        %v4243 = vunpack.c.l.b16 %v3828
        %v4244 = vunpack.c.l.b16 %v3829
        %v4245 = vunpack.c.l.b16 %v3830
        %v4246 = vunpack.c.l.b16 %v3831
        %v4247 = vunpack.c.l.b16 %v3832
        %v4248 = vunpack.c.l.b16 %v3833
        %v4249 = vunpack.c.l.b16 %v3834
        %v4250 = vunpack.c.l.b16 %v3835
        %v4251 = vunpack.c.l.b16 %v3836
        %v4252 = vunpack.c.l.b16 %v3837
        %v4253 = vunpack.c.l.b16 %v3838
        %v4254 = vunpack.c.l.b16 %v3839
        %v4255 = vunpack.c.l.b16 %v3840
        %v4256 = vunpack.c.l.b16 %v3841
        %v4257 = vunpack.c.l.b16 %v3842
        %v4258 = vunpack.c.l.b16 %v3843
        %v4259 = vunpack.c.l.b16 %v3844
        %v4260 = vunpack.c.l.b16 %v3845
        %v4261 = vunpack.c.l.b16 %v3846
        %v4262 = vunpack.c.l.b16 %v3847
        %v4263 = vunpack.c.l.b16 %v3848
        %v4264 = vunpack.c.l.b16 %v3849
        %v4265 = vunpack.c.l.b16 %v3850
        %v4266 = vunpack.c.l.b16 %v3851
        %v4267 = vunpack.c.l.b16 %v3852
        %v4268 = vunpack.c.l.b16 %v3853
        %v4269 = vunpack.c.l.b16 %v3854
        %v4270 = vunpack.c.l.b16 %v3855
        %v4271 = vunpack.c.l.b16 %v3856
        %v4272 = vunpack.c.l.b16 %v3857
        %v4273 = vunpack.c.l.b16 %v3858
        %v4274 = vunpack.c.l.b16 %v3859
        %v4275 = vunpack.c.l.b16 %v3860
        %v4276 = vunpack.c.l.b16 %v3861
        %v4277 = vunpack.c.l.b16 %v3862
        %v4278 = vunpack.c.l.b16 %v3863
        %v4279 = vunpack.c.l.b16 %v3864
        %v4280 = vunpack.c.l.b16 %v3865
        %v4281 = vunpack.c.l.b16 %v3866
        %v4282 = vunpack.c.l.b16 %v3867
        %v4283 = vunpack.c.l.b16 %v3868
        %v4284 = vunpack.c.l.b16 %v3869
        %v4285 = vunpack.c.l.b16 %v3870
        %v4286 = vunpack.c.l.b16 %v3871
        %v4287 = vunpack.c.l.b16 %v3872
        %v4288 = vunpack.c.l.b16 %v3873
        %v4289 = vunpack.c.l.b16 %v3874
        %v4290 = vunpack.c.l.b16 %v3875
        %v4291 = vunpack.c.l.b16 %v3876
        %v4292 = vunpack.c.l.b16 %v3877
        %v4293 = vunpack.c.l.b16 %v3878
        %v4294 = vunpack.c.l.b16 %v3879
        %v4295 = vunpack.c.l.b16 %v3880
        %v4296 = vunpack.c.l.b16 %v3881
        %v4297 = vunpack.c.l.b16 %v3882
        %v4298 = vunpack.c.l.b16 %v3883
        %v4299 = vunpack.c.l.b16 %v3884
        %v4300 = vunpack.c.l.b16 %v3885
        %v4301 = vunpack.c.l.b16 %v3886
        %v4302 = vunpack.c.l.b16 %v3887
        %v4303 = vunpack.c.l.b16 %v3888
        %v4304 = vunpack.c.l.b16 %v3889
        %v4305 = vunpack.c.l.b16 %v3890
        %v4306 = vunpack.c.l.b16 %v3891
        %v4307 = vunpack.c.l.b16 %v3892
        %v4308 = vunpack.c.l.b16 %v3893
        %v4309 = vunpack.c.l.b16 %v3894
        %v4310 = vunpack.c.l.b16 %v3895
        %v4311 = vunpack.c.l.b16 %v3896
        %v4312 = vunpack.c.l.b16 %v3897
        %v4313 = vunpack.c.l.b16 %v3898
        %v4314 = vunpack.c.l.b16 %v3899
        %v4315 = vunpack.c.l.b16 %v3900
        %v4316 = vunpack.c.l.b16 %v3901
        %v4317 = vunpack.c.l.b16 %v3902
        %v4318 = vunpack.c.l.b16 %v3903
        %v4319 = vunpack.c.l.b16 %v3904
        %v4320 = vpack.c.b16 %v4193, %v4192
        %v4321 = vpack.c.b16 %v4195, %v4194
        %v4322 = vpack.c.b16 %v4197, %v4196
        %v4323 = vpack.c.b16 %v4199, %v4198
        %v4324 = vpack.c.b16 %v4201, %v4200
        %v4325 = vpack.c.b16 %v4203, %v4202
        %v4326 = vpack.c.b16 %v4205, %v4204
        %v4327 = vpack.c.b16 %v4207, %v4206
        %v4328 = vpack.c.b16 %v4209, %v4208
        %v4329 = vpack.c.b16 %v4211, %v4210
        %v4330 = vpack.c.b16 %v4213, %v4212
        %v4331 = vpack.c.b16 %v4215, %v4214
        %v4332 = vpack.c.b16 %v4217, %v4216
        %v4333 = vpack.c.b16 %v4219, %v4218
        %v4334 = vpack.c.b16 %v4221, %v4220
        %v4335 = vpack.c.b16 %v4223, %v4222
        %v4336 = vpack.c.b16 %v4225, %v4224
        %v4337 = vpack.c.b16 %v4227, %v4226
        %v4338 = vpack.c.b16 %v4229, %v4228
        %v4339 = vpack.c.b16 %v4231, %v4230
        %v4340 = vpack.c.b16 %v4233, %v4232
        %v4341 = vpack.c.b16 %v4235, %v4234
        %v4342 = vpack.c.b16 %v4237, %v4236
        %v4343 = vpack.c.b16 %v4239, %v4238
        %v4344 = vpack.c.b16 %v4241, %v4240
        %v4345 = vpack.c.b16 %v4243, %v4242
        %v4346 = vpack.c.b16 %v4245, %v4244
        %v4347 = vpack.c.b16 %v4247, %v4246
        %v4348 = vpack.c.b16 %v4249, %v4248
        %v4349 = vpack.c.b16 %v4251, %v4250
        %v4350 = vpack.c.b16 %v4253, %v4252
        %v4351 = vpack.c.b16 %v4255, %v4254
        %v4352 = vpack.c.b16 %v4257, %v4256
        %v4353 = vpack.c.b16 %v4259, %v4258
        %v4354 = vpack.c.b16 %v4261, %v4260
        %v4355 = vpack.c.b16 %v4263, %v4262
        %v4356 = vpack.c.b16 %v4265, %v4264
        %v4357 = vpack.c.b16 %v4267, %v4266
        %v4358 = vpack.c.b16 %v4269, %v4268
        %v4359 = vpack.c.b16 %v4271, %v4270
        %v4360 = vpack.c.b16 %v4273, %v4272
        %v4361 = vpack.c.b16 %v4275, %v4274
        %v4362 = vpack.c.b16 %v4277, %v4276
        %v4363 = vpack.c.b16 %v4279, %v4278
        %v4364 = vpack.c.b16 %v4281, %v4280
        %v4365 = vpack.c.b16 %v4283, %v4282
        %v4366 = vpack.c.b16 %v4285, %v4284
        %v4367 = vpack.c.b16 %v4287, %v4286
        %v4368 = vpack.c.b16 %v4289, %v4288
        %v4369 = vpack.c.b16 %v4291, %v4290
        %v4370 = vpack.c.b16 %v4293, %v4292
        %v4371 = vpack.c.b16 %v4295, %v4294
        %v4372 = vpack.c.b16 %v4297, %v4296
        %v4373 = vpack.c.b16 %v4299, %v4298
        %v4374 = vpack.c.b16 %v4301, %v4300
        %v4375 = vpack.c.b16 %v4303, %v4302
        %v4376 = vpack.c.b16 %v4305, %v4304
        %v4377 = vpack.c.b16 %v4307, %v4306
        %v4378 = vpack.c.b16 %v4309, %v4308
        %v4379 = vpack.c.b16 %v4311, %v4310
        %v4380 = vpack.c.b16 %v4313, %v4312
        %v4381 = vpack.c.b16 %v4315, %v4314
        %v4382 = vpack.c.b16 %v4317, %v4316
        %v4383 = vpack.c.b16 %v4319, %v4318
        %4448 = vmatprep.subr.bf16.mxu0 0
        %4449 = vmatpush1.bf16.msra.mxu0 %v4320
        %4450 = vmatprep.subr.bf16.mxu0 0
        %4451 = vmatpush1.bf16.msra.mxu0 %v4321
        %4452 = vmatprep.subr.bf16.mxu0 0
        %4453 = vmatpush1.bf16.msra.mxu0 %v4322
        %4454 = vmatprep.subr.bf16.mxu0 0
        %4455 = vmatpush1.bf16.msra.mxu0 %v4323
        %4456 = vmatprep.subr.bf16.mxu0 0
        %4457 = vmatpush1.bf16.msra.mxu0 %v4324
        %4458 = vmatprep.subr.bf16.mxu0 0
        %4459 = vmatpush1.bf16.msra.mxu0 %v4325
        %4460 = vmatprep.subr.bf16.mxu0 0
        %4461 = vmatpush1.bf16.msra.mxu0 %v4326
        %4462 = vmatprep.subr.bf16.mxu0 0
        %4463 = vmatpush1.bf16.msra.mxu0 %v4327
        %4464 = vmatprep.subr.bf16.mxu0 0
        %4465 = vmatpush1.bf16.msra.mxu0 %v4328
        %4466 = vmatprep.subr.bf16.mxu0 0
        %4467 = vmatpush1.bf16.msra.mxu0 %v4329
        %4468 = vmatprep.subr.bf16.mxu0 0
        %4469 = vmatpush1.bf16.msra.mxu0 %v4330
        %4470 = vmatprep.subr.bf16.mxu0 0
        %4471 = vmatpush1.bf16.msra.mxu0 %v4331
        %4472 = vmatprep.subr.bf16.mxu0 0
        %4473 = vmatpush1.bf16.msra.mxu0 %v4332
        %4474 = vmatprep.subr.bf16.mxu0 0
        %4475 = vmatpush1.bf16.msra.mxu0 %v4333
        %4476 = vmatprep.subr.bf16.mxu0 0
        %4477 = vmatpush1.bf16.msra.mxu0 %v4334
        %4478 = vmatprep.subr.bf16.mxu0 0
        %4479 = vmatpush1.bf16.msra.mxu0 %v4335
        %4480 = vmatprep.mubr.bf16.mxu0 %v3945
        %4481 = vmatmul.mubr.bf16.gmra.mrb[0].mxu0 %v3928
        %v4482 = vpop.f32.mrb[0].mxu0
        %v4483 = vadd.f32 %v3910, %v4482
        %v4484 = vpop.f32.mrb[0].mxu0
        %v4485 = vpop.f32.mrb[0].mxu0
        %v4486 = vadd.f32 %v3910, %v4485
        %v4487 = vpop.f32.mrb[0].mxu0
        %4488 = vmatprep.mubr.bf16.mxu0 %v3944
        %4489 = vmatmul.mubr.bf16.gmra.mrb[0].mxu0 %v3927
        %v4490 = vpop.f32.mrb[0].mxu0
        %v4491 = vadd.f32 %v3910, %v4490
        %v4492 = vpop.f32.mrb[0].mxu0
        %v4493 = vpop.f32.mrb[0].mxu0
        %v4494 = vpop.f32.mrb[0].mxu0
        %4495 = vdwg.mxu0
        %4496 = vmatprep.subr.bf16.mxu0 0
        %4497 = vmatpush1.bf16.msra.mxu0 %v4336
        %4498 = vmatprep.subr.bf16.mxu0 0
        %4499 = vmatpush1.bf16.msra.mxu0 %v4337
        %4500 = vmatprep.subr.bf16.mxu0 0
        %4501 = vmatpush1.bf16.msra.mxu0 %v4338
        %4502 = vmatprep.subr.bf16.mxu0 0
        %4503 = vmatpush1.bf16.msra.mxu0 %v4339
        %4504 = vmatprep.subr.bf16.mxu0 0
        %4505 = vmatpush1.bf16.msra.mxu0 %v4340
        %4506 = vmatprep.subr.bf16.mxu0 0
        %4507 = vmatpush1.bf16.msra.mxu0 %v4341
        %4508 = vmatprep.subr.bf16.mxu0 0
        %4509 = vmatpush1.bf16.msra.mxu0 %v4342
        %4510 = vmatprep.subr.bf16.mxu0 0
        %4511 = vmatpush1.bf16.msra.mxu0 %v4343
        %4512 = vmatprep.subr.bf16.mxu0 0
        %4513 = vmatpush1.bf16.msra.mxu0 %v4344
        %4514 = vmatprep.subr.bf16.mxu0 0
        %4515 = vmatpush1.bf16.msra.mxu0 %v4345
        %4516 = vmatprep.subr.bf16.mxu0 0
        %4517 = vmatpush1.bf16.msra.mxu0 %v4346
        %4518 = vmatprep.subr.bf16.mxu0 0
        %4519 = vmatpush1.bf16.msra.mxu0 %v4347
        %4520 = vmatprep.subr.bf16.mxu0 0
        %4521 = vmatpush1.bf16.msra.mxu0 %v4348
        %4522 = vmatprep.subr.bf16.mxu0 0
        %4523 = vmatpush1.bf16.msra.mxu0 %v4349
        %4524 = vmatprep.subr.bf16.mxu0 0
        %4525 = vmatpush1.bf16.msra.mxu0 %v4350
        %4526 = vmatprep.subr.bf16.mxu0 0
        %4527 = vmatpush1.bf16.msra.mxu0 %v4351
        %4528 = vmatprep.mubr.bf16.mxu0 %v3979
        %4529 = vmatmul.mubr.bf16.gmra.mrb[0].mxu0 %v3962
        %v4530 = vpop.f32.mrb[0].mxu0
        %v4531 = vadd.f32 %v4483, %v4530
        %v4532 = vpop.f32.mrb[0].mxu0
        %v4533 = vpop.f32.mrb[0].mxu0
        %v4534 = vadd.f32 %v4486, %v4533
        %v4535 = vpop.f32.mrb[0].mxu0
        %4536 = vmatprep.mubr.bf16.mxu0 %v3978
        %4537 = vmatmul.mubr.bf16.gmra.mrb[0].mxu0 %v3961
        %v4538 = vpop.f32.mrb[0].mxu0
        %v4539 = vadd.f32 %v4491, %v4538
        %v4540 = vpop.f32.mrb[0].mxu0
        %v4541 = vpop.f32.mrb[0].mxu0
        %v4542 = vpop.f32.mrb[0].mxu0
        %4543 = vdwg.mxu0
        %4544 = vmatprep.subr.bf16.mxu0 0
        %4545 = vmatpush1.bf16.msra.mxu0 %v4352
        %4546 = vmatprep.subr.bf16.mxu0 0
        %4547 = vmatpush1.bf16.msra.mxu0 %v4353
        %4548 = vmatprep.subr.bf16.mxu0 0
        %4549 = vmatpush1.bf16.msra.mxu0 %v4354
        %4550 = vmatprep.subr.bf16.mxu0 0
        %4551 = vmatpush1.bf16.msra.mxu0 %v4355
        %4552 = vmatprep.subr.bf16.mxu0 0
        %4553 = vmatpush1.bf16.msra.mxu0 %v4356
        %4554 = vmatprep.subr.bf16.mxu0 0
        %4555 = vmatpush1.bf16.msra.mxu0 %v4357
        %4556 = vmatprep.subr.bf16.mxu0 0
        %4557 = vmatpush1.bf16.msra.mxu0 %v4358
        %4558 = vmatprep.subr.bf16.mxu0 0
        %4559 = vmatpush1.bf16.msra.mxu0 %v4359
        %4560 = vmatprep.subr.bf16.mxu0 0
        %4561 = vmatpush1.bf16.msra.mxu0 %v4360
        %4562 = vmatprep.subr.bf16.mxu0 0
        %4563 = vmatpush1.bf16.msra.mxu0 %v4361
        %4564 = vmatprep.subr.bf16.mxu0 0
        %4565 = vmatpush1.bf16.msra.mxu0 %v4362
        %4566 = vmatprep.subr.bf16.mxu0 0
        %4567 = vmatpush1.bf16.msra.mxu0 %v4363
        %4568 = vmatprep.subr.bf16.mxu0 0
        %4569 = vmatpush1.bf16.msra.mxu0 %v4364
        %4570 = vmatprep.subr.bf16.mxu0 0
        %4571 = vmatpush1.bf16.msra.mxu0 %v4365
        %4572 = vmatprep.subr.bf16.mxu0 0
        %4573 = vmatpush1.bf16.msra.mxu0 %v4366
        %4574 = vmatprep.subr.bf16.mxu0 0
        %4575 = vmatpush1.bf16.msra.mxu0 %v4367
        %4576 = vmatprep.mubr.bf16.mxu0 %v4013
        %4577 = vmatmul.mubr.bf16.gmra.mrb[0].mxu0 %v3996
        %v4578 = vpop.f32.mrb[0].mxu0
        %v4579 = vadd.f32 %v4531, %v4578
        %v4580 = vpop.f32.mrb[0].mxu0
        %v4581 = vpop.f32.mrb[0].mxu0
        %v4582 = vadd.f32 %v4534, %v4581
        %v4583 = vpop.f32.mrb[0].mxu0
        %4584 = vmatprep.mubr.bf16.mxu0 %v4012
        %4585 = vmatmul.mubr.bf16.gmra.mrb[0].mxu0 %v3995
        %v4586 = vpop.f32.mrb[0].mxu0
        %v4587 = vadd.f32 %v4539, %v4586
        %v4588 = vpop.f32.mrb[0].mxu0
        %v4589 = vpop.f32.mrb[0].mxu0
        %v4590 = vpop.f32.mrb[0].mxu0
        %4591 = vdwg.mxu0
        %4592 = vmatprep.subr.bf16.mxu0 0
        %4593 = vmatpush1.bf16.msra.mxu0 %v4368
        %4594 = vmatprep.subr.bf16.mxu0 0
        %4595 = vmatpush1.bf16.msra.mxu0 %v4369
        %4596 = vmatprep.subr.bf16.mxu0 0
        %4597 = vmatpush1.bf16.msra.mxu0 %v4370
        %4598 = vmatprep.subr.bf16.mxu0 0
        %4599 = vmatpush1.bf16.msra.mxu0 %v4371
        %4600 = vmatprep.subr.bf16.mxu0 0
        %4601 = vmatpush1.bf16.msra.mxu0 %v4372
        %4602 = vmatprep.subr.bf16.mxu0 0
        %4603 = vmatpush1.bf16.msra.mxu0 %v4373
        %4604 = vmatprep.subr.bf16.mxu0 0
        %4605 = vmatpush1.bf16.msra.mxu0 %v4374
        %4606 = vmatprep.subr.bf16.mxu0 0
        %4607 = vmatpush1.bf16.msra.mxu0 %v4375
        %4608 = vmatprep.subr.bf16.mxu0 0
        %4609 = vmatpush1.bf16.msra.mxu0 %v4376
        %4610 = vmatprep.subr.bf16.mxu0 0
        %4611 = vmatpush1.bf16.msra.mxu0 %v4377
        %4612 = vmatprep.subr.bf16.mxu0 0
        %4613 = vmatpush1.bf16.msra.mxu0 %v4378
        %4614 = vmatprep.subr.bf16.mxu0 0
        %4615 = vmatpush1.bf16.msra.mxu0 %v4379
        %4616 = vmatprep.subr.bf16.mxu0 0
        %4617 = vmatpush1.bf16.msra.mxu0 %v4380
        %4618 = vmatprep.subr.bf16.mxu0 0
        %4619 = vmatpush1.bf16.msra.mxu0 %v4381
        %4620 = vmatprep.subr.bf16.mxu0 0
        %4621 = vmatpush1.bf16.msra.mxu0 %v4382
        %4622 = vmatprep.subr.bf16.mxu0 0
        %4623 = vmatpush1.bf16.msra.mxu0 %v4383
        %4624 = vmatprep.mubr.bf16.mxu0 %v4047
        %4625 = vmatmul.mubr.bf16.gmra.mrb[0].mxu0 %v4030
        %v4626 = vpop.f32.mrb[0].mxu0
        %v4627 = vadd.f32 %v4579, %v4626
        %v4628 = vpop.f32.mrb[0].mxu0
        %v4629 = vpop.f32.mrb[0].mxu0
        %v4630 = vadd.f32 %v4582, %v4629
        %v4631 = vpop.f32.mrb[0].mxu0
        %4632 = vmatprep.mubr.bf16.mxu0 %v4046
        %4633 = vmatmul.mubr.bf16.gmra.mrb[0].mxu0 %v4029
        %v4634 = vpop.f32.mrb[0].mxu0
        %v4635 = vadd.f32 %v4587, %v4634
        %v4636 = vpop.f32.mrb[0].mxu0
        %v4637 = vpop.f32.mrb[0].mxu0
        %v4638 = vpop.f32.mrb[0].mxu0
        %4639 = vdwg.mxu0
        %v4640 = vmax.f32 %v4627, 0.0
        %v4641 = vmax.f32 %v4630, 0.0
        %v4642 = vmax.f32 %v4635, 0.0
        %vm4643 = vcmp.lt.s32.totalorder %v1624, 18
        %vm4644 = vcmp.lt.s32.totalorder %v1625, 18
        %vm4645 = vcmp.lt.s32.totalorder %v1626, 18
        %v4646 = vsel %vm4643, %v4640, 0.0
        %v4647 = vsel %vm4644, %v4641, 0.0
        %v4648 = vsel %vm4645, %v4642, 0.0
        %v4649 = vmax.f32 %v4646, %v4647
        %v4650 = vmax.f32 %v4649, %v4648
        %v4651 = vrot.slane %v4650, 4
        %v4652 = vmax.f32 %v4650, %v4651
        %v4653 = vrot.slane %v4652, 2
        %v4654 = vmax.f32 %v4652, %v4653
        %v4655 = vrot.slane %v4654, 1
        %v4656 = vmax.f32 %v4654, %v4655
        %vm4657 = vcmp.eq.s32.totalorder %v1624, 0
        %v4658 = vsel %vm4657, 1, 0
        %v4659 = vcvt.s32.f32 %v4658
        %v4660 = vmul.f32 %v4659, %v4656
        %v4661 = vadd.f32 %v4660, 0.0
        %s4662 = scalar_lea.vmem %s420, 56 [#allocation2]
        %v4663 = vld [vmem:[%s4662] sm:$0xff]
        %v4664 = vld [vmem:[%s4662 + $0x8] sm:$0xff]
        %v4665 = vld [vmem:[%s4662 + $0x10] sm:$0xff]
        %v4666 = vld [vmem:[%s4662 + $0x18] sm:$0xff]
        %v4667 = vld [vmem:[%s4662 + $0x20] sm:$0xff]
        %v4668 = vld [vmem:[%s4662 + $0x28] sm:$0xff]
        %v4669 = vld [vmem:[%s4662 + $0x30] sm:$0xff]
        %v4675 = vrot.slane %v4664, 1
        %v4676 = vrot.slane %v4665, 1
        %v4677 = vsel %vm493, %v4675, %v4676
        %v4678 = vrot.slane %v4666, 1
        %v4679 = vsel %vm493, %v4676, %v4678
        %v4680 = vrot.slane %v4667, 1
        %v4681 = vsel %vm493, %v4678, %v4680
        %v4682 = vrot.slane %v4668, 1
        %v4683 = vsel %vm493, %v4680, %v4682
        %v4691 = vrot.slane %v4664, 2
        %v4692 = vrot.slane %v4665, 2
        %v4693 = vsel %vm510, %v4691, %v4692
        %v4694 = vrot.slane %v4666, 2
        %v4695 = vsel %vm510, %v4692, %v4694
        %v4696 = vrot.slane %v4667, 2
        %v4697 = vsel %vm510, %v4694, %v4696
        %v4698 = vrot.slane %v4668, 2
        %v4699 = vsel %vm510, %v4696, %v4698
        %v4700 = vrot.slane %v4669, 2
        %v4701 = vsel %vm510, %v4698, %v4700
        %v4708 = vrot.slane %v4664, 3
        %v4709 = vrot.slane %v4665, 3
        %v4710 = vsel %vm528, %v4708, %v4709
        %v4711 = vrot.slane %v4666, 3
        %v4712 = vsel %vm528, %v4709, %v4711
        %v4713 = vrot.slane %v4667, 3
        %v4714 = vsel %vm528, %v4711, %v4713
        %v4715 = vrot.slane %v4668, 3
        %v4716 = vsel %vm528, %v4713, %v4715
        %v4717 = vrot.slane %v4669, 3
        %v4718 = vsel %vm528, %v4715, %v4717
        %v4725 = vrot.slane %v4664, 4
        %v4726 = vrot.slane %v4665, 4
        %v4727 = vsel %vm546, %v4725, %v4726
        %v4728 = vrot.slane %v4666, 4
        %v4729 = vsel %vm546, %v4726, %v4728
        %v4730 = vrot.slane %v4667, 4
        %v4731 = vsel %vm546, %v4728, %v4730
        %v4732 = vrot.slane %v4668, 4
        %v4733 = vsel %vm546, %v4730, %v4732
        %v4734 = vrot.slane %v4669, 4
        %v4735 = vsel %vm546, %v4732, %v4734
        %v4742 = vrot.slane %v4664, 5
        %v4743 = vrot.slane %v4665, 5
        %v4744 = vsel %vm564, %v4742, %v4743
        %v4745 = vrot.slane %v4666, 5
        %v4746 = vsel %vm564, %v4743, %v4745
        %v4747 = vrot.slane %v4667, 5
        %v4748 = vsel %vm564, %v4745, %v4747
        %v4749 = vrot.slane %v4668, 5
        %v4750 = vsel %vm564, %v4747, %v4749
        %v4751 = vrot.slane %v4669, 5
        %v4752 = vsel %vm564, %v4749, %v4751
        %v4759 = vrot.slane %v4664, 6
        %v4760 = vrot.slane %v4665, 6
        %v4761 = vsel %vm582, %v4759, %v4760
        %v4762 = vrot.slane %v4666, 6
        %v4763 = vsel %vm582, %v4760, %v4762
        %v4764 = vrot.slane %v4667, 6
        %v4765 = vsel %vm582, %v4762, %v4764
        %v4766 = vrot.slane %v4668, 6
        %v4767 = vsel %vm582, %v4764, %v4766
        %v4768 = vrot.slane %v4669, 6
        %v4769 = vsel %vm582, %v4766, %v4768
        %v4776 = vrot.slane %v4664, 7
        %v4777 = vrot.slane %v4665, 7
        %v4778 = vsel %vm600, %v4776, %v4777
        %v4779 = vrot.slane %v4666, 7
        %v4780 = vsel %vm600, %v4777, %v4779
        %v4781 = vrot.slane %v4667, 7
        %v4782 = vsel %vm600, %v4779, %v4781
        %v4783 = vrot.slane %v4668, 7
        %v4784 = vsel %vm600, %v4781, %v4783
        %v4785 = vrot.slane %v4669, 7
        %v4786 = vsel %vm600, %v4783, %v4785
        %v4793 = vpack.c.bf16 %v4664, %v4663
        %v4794 = vpack.c.bf16 %v4677, %v4675
        %v4795 = vpack.c.bf16 %v4693, %v4691
        %v4796 = vpack.c.bf16 %v4710, %v4708
        %v4797 = vpack.c.bf16 %v4727, %v4725
        %v4798 = vpack.c.bf16 %v4744, %v4742
        %v4799 = vpack.c.bf16 %v4761, %v4759
        %v4800 = vpack.c.bf16 %v4778, %v4776
        %v4801 = vpack.c.bf16 %v4666, %v4665
        %v4802 = vpack.c.bf16 %v4681, %v4679
        %v4803 = vpack.c.bf16 %v4697, %v4695
        %v4804 = vpack.c.bf16 %v4714, %v4712
        %v4805 = vpack.c.bf16 %v4731, %v4729
        %v4806 = vpack.c.bf16 %v4748, %v4746
        %v4807 = vpack.c.bf16 %v4765, %v4763
        %v4808 = vpack.c.bf16 %v4782, %v4780
        %v4809 = vpack.c.bf16 %v4668, %v4667
        %v4810 = vpack.c.bf16 %v4682, %v4683
        %v4811 = vpack.c.bf16 %v4701, %v4699
        %v4812 = vpack.c.bf16 %v4718, %v4716
        %v4813 = vpack.c.bf16 %v4735, %v4733
        %v4814 = vpack.c.bf16 %v4752, %v4750
        %v4815 = vpack.c.bf16 %v4769, %v4767
        %v4816 = vpack.c.bf16 %v4786, %v4784
        %v4818 = vshrl.u32 %v4793, 16
        %v4820 = vrot.slane %v4818, 3
        %v4821 = vshll.u32 %v4793, 16
        %v4823 = vrot.slane %v4821, 4
        %v4824 = vor.u32 %v4820, %v4823
        %v4826 = vshrl.u32 %v4801, 16
        %v4828 = vrot.slane %v4826, 3
        %v4829 = vshll.u32 %v4801, 16
        %v4831 = vrot.slane %v4829, 4
        %v4832 = vor.u32 %v4828, %v4831
        %v4833 = vsel %vm777, %v4824, %v4832
        %v4835 = vshrl.u32 %v4794, 16
        %v4837 = vrot.slane %v4835, 3
        %v4838 = vshll.u32 %v4794, 16
        %v4840 = vrot.slane %v4838, 4
        %v4841 = vor.u32 %v4837, %v4840
        %v4843 = vshrl.u32 %v4802, 16
        %v4845 = vrot.slane %v4843, 3
        %v4846 = vshll.u32 %v4802, 16
        %v4848 = vrot.slane %v4846, 4
        %v4849 = vor.u32 %v4845, %v4848
        %v4850 = vsel %vm777, %v4841, %v4849
        %v4852 = vshrl.u32 %v4795, 16
        %v4854 = vrot.slane %v4852, 3
        %v4855 = vshll.u32 %v4795, 16
        %v4857 = vrot.slane %v4855, 4
        %v4858 = vor.u32 %v4854, %v4857
        %v4860 = vshrl.u32 %v4803, 16
        %v4862 = vrot.slane %v4860, 3
        %v4863 = vshll.u32 %v4803, 16
        %v4865 = vrot.slane %v4863, 4
        %v4866 = vor.u32 %v4862, %v4865
        %v4867 = vsel %vm777, %v4858, %v4866
        %v4869 = vshrl.u32 %v4796, 16
        %v4871 = vrot.slane %v4869, 3
        %v4872 = vshll.u32 %v4796, 16
        %v4874 = vrot.slane %v4872, 4
        %v4875 = vor.u32 %v4871, %v4874
        %v4877 = vshrl.u32 %v4804, 16
        %v4879 = vrot.slane %v4877, 3
        %v4880 = vshll.u32 %v4804, 16
        %v4882 = vrot.slane %v4880, 4
        %v4883 = vor.u32 %v4879, %v4882
        %v4884 = vsel %vm777, %v4875, %v4883
        %v4886 = vshrl.u32 %v4797, 16
        %v4888 = vrot.slane %v4886, 3
        %v4889 = vshll.u32 %v4797, 16
        %v4891 = vrot.slane %v4889, 4
        %v4892 = vor.u32 %v4888, %v4891
        %v4894 = vshrl.u32 %v4805, 16
        %v4896 = vrot.slane %v4894, 3
        %v4897 = vshll.u32 %v4805, 16
        %v4899 = vrot.slane %v4897, 4
        %v4900 = vor.u32 %v4896, %v4899
        %v4901 = vsel %vm777, %v4892, %v4900
        %v4903 = vshrl.u32 %v4798, 16
        %v4905 = vrot.slane %v4903, 3
        %v4906 = vshll.u32 %v4798, 16
        %v4908 = vrot.slane %v4906, 4
        %v4909 = vor.u32 %v4905, %v4908
        %v4911 = vshrl.u32 %v4806, 16
        %v4913 = vrot.slane %v4911, 3
        %v4914 = vshll.u32 %v4806, 16
        %v4916 = vrot.slane %v4914, 4
        %v4917 = vor.u32 %v4913, %v4916
        %v4918 = vsel %vm777, %v4909, %v4917
        %v4920 = vshrl.u32 %v4799, 16
        %v4922 = vrot.slane %v4920, 3
        %v4923 = vshll.u32 %v4799, 16
        %v4925 = vrot.slane %v4923, 4
        %v4926 = vor.u32 %v4922, %v4925
        %v4928 = vshrl.u32 %v4807, 16
        %v4930 = vrot.slane %v4928, 3
        %v4931 = vshll.u32 %v4807, 16
        %v4933 = vrot.slane %v4931, 4
        %v4934 = vor.u32 %v4930, %v4933
        %v4935 = vsel %vm777, %v4926, %v4934
        %v4937 = vshrl.u32 %v4800, 16
        %v4939 = vrot.slane %v4937, 3
        %v4940 = vshll.u32 %v4800, 16
        %v4942 = vrot.slane %v4940, 4
        %v4943 = vor.u32 %v4939, %v4942
        %v4945 = vshrl.u32 %v4808, 16
        %v4947 = vrot.slane %v4945, 3
        %v4948 = vshll.u32 %v4808, 16
        %v4950 = vrot.slane %v4948, 4
        %v4951 = vor.u32 %v4947, %v4950
        %v4952 = vsel %vm777, %v4943, %v4951
        %v4954 = vshrl.u32 %v4809, 16
        %v4956 = vrot.slane %v4954, 3
        %v4957 = vshll.u32 %v4809, 16
        %v4959 = vrot.slane %v4957, 4
        %v4960 = vor.u32 %v4956, %v4959
        %v4961 = vsel %vm777, %v4832, %v4960
        %v4963 = vshrl.u32 %v4810, 16
        %v4965 = vrot.slane %v4963, 3
        %v4966 = vshll.u32 %v4810, 16
        %v4968 = vrot.slane %v4966, 4
        %v4969 = vor.u32 %v4965, %v4968
        %v4970 = vsel %vm777, %v4849, %v4969
        %v4972 = vshrl.u32 %v4811, 16
        %v4974 = vrot.slane %v4972, 3
        %v4975 = vshll.u32 %v4811, 16
        %v4977 = vrot.slane %v4975, 4
        %v4978 = vor.u32 %v4974, %v4977
        %v4979 = vsel %vm777, %v4866, %v4978
        %v4981 = vshrl.u32 %v4812, 16
        %v4983 = vrot.slane %v4981, 3
        %v4984 = vshll.u32 %v4812, 16
        %v4986 = vrot.slane %v4984, 4
        %v4987 = vor.u32 %v4983, %v4986
        %v4988 = vsel %vm777, %v4883, %v4987
        %v4990 = vshrl.u32 %v4813, 16
        %v4992 = vrot.slane %v4990, 3
        %v4993 = vshll.u32 %v4813, 16
        %v4995 = vrot.slane %v4993, 4
        %v4996 = vor.u32 %v4992, %v4995
        %v4997 = vsel %vm777, %v4900, %v4996
        %v4999 = vshrl.u32 %v4814, 16
        %v5001 = vrot.slane %v4999, 3
        %v5002 = vshll.u32 %v4814, 16
        %v5004 = vrot.slane %v5002, 4
        %v5005 = vor.u32 %v5001, %v5004
        %v5006 = vsel %vm777, %v4917, %v5005
        %v5008 = vshrl.u32 %v4815, 16
        %v5010 = vrot.slane %v5008, 3
        %v5011 = vshll.u32 %v4815, 16
        %v5013 = vrot.slane %v5011, 4
        %v5014 = vor.u32 %v5010, %v5013
        %v5015 = vsel %vm777, %v4934, %v5014
        %v5017 = vshrl.u32 %v4816, 16
        %v5019 = vrot.slane %v5017, 3
        %v5020 = vshll.u32 %v4816, 16
        %v5022 = vrot.slane %v5020, 4
        %v5023 = vor.u32 %v5019, %v5022
        %v5024 = vsel %vm777, %v4951, %v5023
        %5049 = vmatprep.subr.bf16.mxu0 0
        %5050 = vmatpush1.bf16.msra.mxu0 %v1266
        %5051 = vmatprep.subr.bf16.mxu0 0
        %5052 = vmatpush1.bf16.msra.mxu0 %v1267
        %5053 = vmatprep.subr.bf16.mxu0 0
        %5054 = vmatpush1.bf16.msra.mxu0 %v1268
        %5055 = vmatprep.subr.bf16.mxu0 0
        %5056 = vmatpush1.bf16.msra.mxu0 %v1269
        %5057 = vmatprep.subr.bf16.mxu0 0
        %5058 = vmatpush1.bf16.msra.mxu0 %v1270
        %5059 = vmatprep.subr.bf16.mxu0 0
        %5060 = vmatpush1.bf16.msra.mxu0 %v1271
        %5061 = vmatprep.subr.bf16.mxu0 0
        %5062 = vmatpush1.bf16.msra.mxu0 %v1272
        %5063 = vmatprep.subr.bf16.mxu0 0
        %5064 = vmatpush1.bf16.msra.mxu0 %v1273
        %5065 = vmatprep.subr.bf16.mxu0 0
        %5066 = vmatpush1.bf16.msra.mxu0 %v1274
        %5067 = vmatprep.subr.bf16.mxu0 0
        %5068 = vmatpush1.bf16.msra.mxu0 %v1275
        %5069 = vmatprep.subr.bf16.mxu0 0
        %5070 = vmatpush1.bf16.msra.mxu0 %v1276
        %5071 = vmatprep.subr.bf16.mxu0 0
        %5072 = vmatpush1.bf16.msra.mxu0 %v1277
        %5073 = vmatprep.subr.bf16.mxu0 0
        %5074 = vmatpush1.bf16.msra.mxu0 %v1278
        %5075 = vmatprep.subr.bf16.mxu0 0
        %5076 = vmatpush1.bf16.msra.mxu0 %v1279
        %5077 = vmatprep.subr.bf16.mxu0 0
        %5078 = vmatpush1.bf16.msra.mxu0 %v1280
        %5079 = vmatprep.subr.bf16.mxu0 0
        %5080 = vmatpush1.bf16.msra.mxu0 %v1281
        %5081 = vmatprep.mubr.bf16.mxu0 %v4850
        %5082 = vmatmul.mubr.bf16.gmra.mrb[0].mxu0 %v4833
        %v5083 = vpop.f32.mrb[0].mxu0
        %v5084 = vadd.f32 %v775, %v5083
        %v5085 = vpop.f32.mrb[0].mxu0
        %v5086 = vpop.f32.mrb[0].mxu0
        %v5087 = vadd.f32 %v775, %v5086
        %v5088 = vpop.f32.mrb[0].mxu0
        %5089 = vmatprep.mubr.bf16.mxu0 %v4970
        %5090 = vmatmul.mubr.bf16.gmra.mrb[0].mxu0 %v4961
        %v5091 = vpop.f32.mrb[0].mxu0
        %v5092 = vadd.f32 %v775, %v5091
        %v5093 = vpop.f32.mrb[0].mxu0
        %v5094 = vpop.f32.mrb[0].mxu0
        %v5095 = vadd.f32 %v775, %v5094
        %v5096 = vpop.f32.mrb[0].mxu0
        %5097 = vmatprep.mubr.bf16.mxu0 %v4969
        %5098 = vmatmul.mubr.bf16.gmra.mrb[0].mxu0 %v4960
        %v5099 = vpop.f32.mrb[0].mxu0
        %v5100 = vadd.f32 %v775, %v5099
        %v5101 = vpop.f32.mrb[0].mxu0
        %v5102 = vpop.f32.mrb[0].mxu0
        %v5103 = vpop.f32.mrb[0].mxu0
        %5104 = vdwg.mxu0
        %5105 = vmatprep.subr.bf16.mxu0 0
        %5106 = vmatpush1.bf16.msra.mxu0 %v1282
        %5107 = vmatprep.subr.bf16.mxu0 0
        %5108 = vmatpush1.bf16.msra.mxu0 %v1283
        %5109 = vmatprep.subr.bf16.mxu0 0
        %5110 = vmatpush1.bf16.msra.mxu0 %v1284
        %5111 = vmatprep.subr.bf16.mxu0 0
        %5112 = vmatpush1.bf16.msra.mxu0 %v1285
        %5113 = vmatprep.subr.bf16.mxu0 0
        %5114 = vmatpush1.bf16.msra.mxu0 %v1286
        %5115 = vmatprep.subr.bf16.mxu0 0
        %5116 = vmatpush1.bf16.msra.mxu0 %v1287
        %5117 = vmatprep.subr.bf16.mxu0 0
        %5118 = vmatpush1.bf16.msra.mxu0 %v1288
        %5119 = vmatprep.subr.bf16.mxu0 0
        %5120 = vmatpush1.bf16.msra.mxu0 %v1289
        %5121 = vmatprep.subr.bf16.mxu0 0
        %5122 = vmatpush1.bf16.msra.mxu0 %v1290
        %5123 = vmatprep.subr.bf16.mxu0 0
        %5124 = vmatpush1.bf16.msra.mxu0 %v1291
        %5125 = vmatprep.subr.bf16.mxu0 0
        %5126 = vmatpush1.bf16.msra.mxu0 %v1292
        %5127 = vmatprep.subr.bf16.mxu0 0
        %5128 = vmatpush1.bf16.msra.mxu0 %v1293
        %5129 = vmatprep.subr.bf16.mxu0 0
        %5130 = vmatpush1.bf16.msra.mxu0 %v1294
        %5131 = vmatprep.subr.bf16.mxu0 0
        %5132 = vmatpush1.bf16.msra.mxu0 %v1295
        %5133 = vmatprep.subr.bf16.mxu0 0
        %5134 = vmatpush1.bf16.msra.mxu0 %v1296
        %5135 = vmatprep.subr.bf16.mxu0 0
        %5136 = vmatpush1.bf16.msra.mxu0 %v1297
        %5137 = vmatprep.mubr.bf16.mxu0 %v4884
        %5138 = vmatmul.mubr.bf16.gmra.mrb[0].mxu0 %v4867
        %v5139 = vpop.f32.mrb[0].mxu0
        %v5140 = vadd.f32 %v5084, %v5139
        %v5141 = vpop.f32.mrb[0].mxu0
        %v5142 = vpop.f32.mrb[0].mxu0
        %v5143 = vadd.f32 %v5087, %v5142
        %v5144 = vpop.f32.mrb[0].mxu0
        %5145 = vmatprep.mubr.bf16.mxu0 %v4988
        %5146 = vmatmul.mubr.bf16.gmra.mrb[0].mxu0 %v4979
        %v5147 = vpop.f32.mrb[0].mxu0
        %v5148 = vadd.f32 %v5092, %v5147
        %v5149 = vpop.f32.mrb[0].mxu0
        %v5150 = vpop.f32.mrb[0].mxu0
        %v5151 = vadd.f32 %v5095, %v5150
        %v5152 = vpop.f32.mrb[0].mxu0
        %5153 = vmatprep.mubr.bf16.mxu0 %v4987
        %5154 = vmatmul.mubr.bf16.gmra.mrb[0].mxu0 %v4978
        %v5155 = vpop.f32.mrb[0].mxu0
        %v5156 = vadd.f32 %v5100, %v5155
        %v5157 = vpop.f32.mrb[0].mxu0
        %v5158 = vpop.f32.mrb[0].mxu0
        %v5159 = vpop.f32.mrb[0].mxu0
        %5160 = vdwg.mxu0
        %5161 = vmatprep.subr.bf16.mxu0 0
        %5162 = vmatpush1.bf16.msra.mxu0 %v1298
        %5163 = vmatprep.subr.bf16.mxu0 0
        %5164 = vmatpush1.bf16.msra.mxu0 %v1299
        %5165 = vmatprep.subr.bf16.mxu0 0
        %5166 = vmatpush1.bf16.msra.mxu0 %v1300
        %5167 = vmatprep.subr.bf16.mxu0 0
        %5168 = vmatpush1.bf16.msra.mxu0 %v1301
        %5169 = vmatprep.subr.bf16.mxu0 0
        %5170 = vmatpush1.bf16.msra.mxu0 %v1302
        %5171 = vmatprep.subr.bf16.mxu0 0
        %5172 = vmatpush1.bf16.msra.mxu0 %v1303
        %5173 = vmatprep.subr.bf16.mxu0 0
        %5174 = vmatpush1.bf16.msra.mxu0 %v1304
        %5175 = vmatprep.subr.bf16.mxu0 0
        %5176 = vmatpush1.bf16.msra.mxu0 %v1305
        %5177 = vmatprep.subr.bf16.mxu0 0
        %5178 = vmatpush1.bf16.msra.mxu0 %v1306
        %5179 = vmatprep.subr.bf16.mxu0 0
        %5180 = vmatpush1.bf16.msra.mxu0 %v1307
        %5181 = vmatprep.subr.bf16.mxu0 0
        %5182 = vmatpush1.bf16.msra.mxu0 %v1308
        %5183 = vmatprep.subr.bf16.mxu0 0
        %5184 = vmatpush1.bf16.msra.mxu0 %v1309
        %5185 = vmatprep.subr.bf16.mxu0 0
        %5186 = vmatpush1.bf16.msra.mxu0 %v1310
        %5187 = vmatprep.subr.bf16.mxu0 0
        %5188 = vmatpush1.bf16.msra.mxu0 %v1311
        %5189 = vmatprep.subr.bf16.mxu0 0
        %5190 = vmatpush1.bf16.msra.mxu0 %v1312
        %5191 = vmatprep.subr.bf16.mxu0 0
        %5192 = vmatpush1.bf16.msra.mxu0 %v1313
        %5193 = vmatprep.mubr.bf16.mxu0 %v4918
        %5194 = vmatmul.mubr.bf16.gmra.mrb[0].mxu0 %v4901
        %v5195 = vpop.f32.mrb[0].mxu0
        %v5196 = vadd.f32 %v5140, %v5195
        %v5197 = vpop.f32.mrb[0].mxu0
        %v5198 = vpop.f32.mrb[0].mxu0
        %v5199 = vadd.f32 %v5143, %v5198
        %v5200 = vpop.f32.mrb[0].mxu0
        %5201 = vmatprep.mubr.bf16.mxu0 %v5006
        %5202 = vmatmul.mubr.bf16.gmra.mrb[0].mxu0 %v4997
        %v5203 = vpop.f32.mrb[0].mxu0
        %v5204 = vadd.f32 %v5148, %v5203
        %v5205 = vpop.f32.mrb[0].mxu0
        %v5206 = vpop.f32.mrb[0].mxu0
        %v5207 = vadd.f32 %v5151, %v5206
        %v5208 = vpop.f32.mrb[0].mxu0
        %5209 = vmatprep.mubr.bf16.mxu0 %v5005
        %5210 = vmatmul.mubr.bf16.gmra.mrb[0].mxu0 %v4996
        %v5211 = vpop.f32.mrb[0].mxu0
        %v5212 = vadd.f32 %v5156, %v5211
        %v5213 = vpop.f32.mrb[0].mxu0
        %v5214 = vpop.f32.mrb[0].mxu0
        %v5215 = vpop.f32.mrb[0].mxu0
        %5216 = vdwg.mxu0
        %5217 = vmatprep.subr.bf16.mxu0 0
        %5218 = vmatpush1.bf16.msra.mxu0 %v1314
        %5219 = vmatprep.subr.bf16.mxu0 0
        %5220 = vmatpush1.bf16.msra.mxu0 %v1315
        %5221 = vmatprep.subr.bf16.mxu0 0
        %5222 = vmatpush1.bf16.msra.mxu0 %v1316
        %5223 = vmatprep.subr.bf16.mxu0 0
        %5224 = vmatpush1.bf16.msra.mxu0 %v1317
        %5225 = vmatprep.subr.bf16.mxu0 0
        %5226 = vmatpush1.bf16.msra.mxu0 %v1318
        %5227 = vmatprep.subr.bf16.mxu0 0
        %5228 = vmatpush1.bf16.msra.mxu0 %v1319
        %5229 = vmatprep.subr.bf16.mxu0 0
        %5230 = vmatpush1.bf16.msra.mxu0 %v1320
        %5231 = vmatprep.subr.bf16.mxu0 0
        %5232 = vmatpush1.bf16.msra.mxu0 %v1321
        %5233 = vmatprep.subr.bf16.mxu0 0
        %5234 = vmatpush1.bf16.msra.mxu0 %v1322
        %5235 = vmatprep.subr.bf16.mxu0 0
        %5236 = vmatpush1.bf16.msra.mxu0 %v1323
        %5237 = vmatprep.subr.bf16.mxu0 0
        %5238 = vmatpush1.bf16.msra.mxu0 %v1324
        %5239 = vmatprep.subr.bf16.mxu0 0
        %5240 = vmatpush1.bf16.msra.mxu0 %v1325
        %5241 = vmatprep.subr.bf16.mxu0 0
        %5242 = vmatpush1.bf16.msra.mxu0 %v1326
        %5243 = vmatprep.subr.bf16.mxu0 0
        %5244 = vmatpush1.bf16.msra.mxu0 %v1327
        %5245 = vmatprep.subr.bf16.mxu0 0
        %5246 = vmatpush1.bf16.msra.mxu0 %v1328
        %5247 = vmatprep.subr.bf16.mxu0 0
        %5248 = vmatpush1.bf16.msra.mxu0 %v1329
        %5249 = vmatprep.mubr.bf16.mxu0 %v4952
        %5250 = vmatmul.mubr.bf16.gmra.mrb[0].mxu0 %v4935
        %v5251 = vpop.f32.mrb[0].mxu0
        %v5252 = vadd.f32 %v5196, %v5251
        %v5253 = vpop.f32.mrb[0].mxu0
        %v5254 = vpop.f32.mrb[0].mxu0
        %v5255 = vadd.f32 %v5199, %v5254
        %v5256 = vpop.f32.mrb[0].mxu0
        %5257 = vmatprep.mubr.bf16.mxu0 %v5024
        %5258 = vmatmul.mubr.bf16.gmra.mrb[0].mxu0 %v5015
        %v5259 = vpop.f32.mrb[0].mxu0
        %v5260 = vadd.f32 %v5204, %v5259
        %v5261 = vpop.f32.mrb[0].mxu0
        %v5262 = vpop.f32.mrb[0].mxu0
        %v5263 = vadd.f32 %v5207, %v5262
        %v5264 = vpop.f32.mrb[0].mxu0
        %5265 = vmatprep.mubr.bf16.mxu0 %v5023
        %5266 = vmatmul.mubr.bf16.gmra.mrb[0].mxu0 %v5014
        %v5267 = vpop.f32.mrb[0].mxu0
        %v5268 = vadd.f32 %v5212, %v5267
        %v5269 = vpop.f32.mrb[0].mxu0
        %v5270 = vpop.f32.mrb[0].mxu0
        %v5271 = vpop.f32.mrb[0].mxu0
        %5272 = vdwg.mxu0
        %v5273 = vmax.f32 %v5252, 0.0
        %v5274 = vmax.f32 %v5255, 0.0
        %v5275 = vmax.f32 %v5260, 0.0
        %v5276 = vmax.f32 %v5263, 0.0
        %v5277 = vmax.f32 %v5268, 0.0
        %v5278 = vsel %vm1629, %v5273, 0.0
        %v5279 = vsel %vm1630, %v5274, 0.0
        %v5280 = vsel %vm1631, %v5275, 0.0
        %v5281 = vsel %vm1632, %v5276, 0.0
        %v5282 = vsel %vm1633, %v5277, 0.0
        %v5287 = vrot.slane %v5278, 1
        %v5288 = vrot.slane %v5279, 1
        %v5289 = vsel %vm493, %v5287, %v5288
        %v5290 = vrot.slane %v5280, 1
        %v5291 = vsel %vm493, %v5288, %v5290
        %v5292 = vrot.slane %v5281, 1
        %v5293 = vsel %vm493, %v5290, %v5292
        %v5300 = vrot.slane %v5278, 2
        %v5301 = vrot.slane %v5279, 2
        %v5302 = vsel %vm510, %v5300, %v5301
        %v5303 = vrot.slane %v5280, 2
        %v5304 = vsel %vm510, %v5301, %v5303
        %v5305 = vrot.slane %v5281, 2
        %v5306 = vsel %vm510, %v5303, %v5305
        %v5307 = vrot.slane %v5282, 2
        %v5308 = vsel %vm510, %v5305, %v5307
        %v5314 = vrot.slane %v5278, 3
        %v5315 = vrot.slane %v5279, 3
        %v5316 = vsel %vm528, %v5314, %v5315
        %v5317 = vrot.slane %v5280, 3
        %v5318 = vsel %vm528, %v5315, %v5317
        %v5319 = vrot.slane %v5281, 3
        %v5320 = vsel %vm528, %v5317, %v5319
        %v5321 = vrot.slane %v5282, 3
        %v5322 = vsel %vm528, %v5319, %v5321
        %v5328 = vrot.slane %v5278, 4
        %v5329 = vrot.slane %v5279, 4
        %v5330 = vsel %vm546, %v5328, %v5329
        %v5331 = vrot.slane %v5280, 4
        %v5332 = vsel %vm546, %v5329, %v5331
        %v5333 = vrot.slane %v5281, 4
        %v5334 = vsel %vm546, %v5331, %v5333
        %v5335 = vrot.slane %v5282, 4
        %v5336 = vsel %vm546, %v5333, %v5335
        %v5342 = vrot.slane %v5278, 5
        %v5343 = vrot.slane %v5279, 5
        %v5344 = vsel %vm564, %v5342, %v5343
        %v5345 = vrot.slane %v5280, 5
        %v5346 = vsel %vm564, %v5343, %v5345
        %v5347 = vrot.slane %v5281, 5
        %v5348 = vsel %vm564, %v5345, %v5347
        %v5349 = vrot.slane %v5282, 5
        %v5350 = vsel %vm564, %v5347, %v5349
        %v5356 = vrot.slane %v5278, 6
        %v5357 = vrot.slane %v5279, 6
        %v5358 = vsel %vm582, %v5356, %v5357
        %v5359 = vrot.slane %v5280, 6
        %v5360 = vsel %vm582, %v5357, %v5359
        %v5361 = vrot.slane %v5281, 6
        %v5362 = vsel %vm582, %v5359, %v5361
        %v5363 = vrot.slane %v5282, 6
        %v5364 = vsel %vm582, %v5361, %v5363
        %v5370 = vrot.slane %v5278, 7
        %v5371 = vrot.slane %v5279, 7
        %v5372 = vsel %vm600, %v5370, %v5371
        %v5373 = vrot.slane %v5280, 7
        %v5374 = vsel %vm600, %v5371, %v5373
        %v5375 = vrot.slane %v5281, 7
        %v5376 = vsel %vm600, %v5373, %v5375
        %v5377 = vrot.slane %v5282, 7
        %v5378 = vsel %vm600, %v5375, %v5377
        %v5384 = vpack.c.bf16 %v5278, 0.0
        %v5385 = vpack.c.bf16 %v5289, %v5287
        %v5386 = vpack.c.bf16 %v5302, %v5300
        %v5387 = vpack.c.bf16 %v5316, %v5314
        %v5388 = vpack.c.bf16 %v5330, %v5328
        %v5389 = vpack.c.bf16 %v5344, %v5342
        %v5390 = vpack.c.bf16 %v5358, %v5356
        %v5391 = vpack.c.bf16 %v5372, %v5370
        %v5392 = vpack.c.bf16 %v5280, %v5279
        %v5393 = vpack.c.bf16 %v5293, %v5291
        %v5394 = vpack.c.bf16 %v5306, %v5304
        %v5395 = vpack.c.bf16 %v5320, %v5318
        %v5396 = vpack.c.bf16 %v5334, %v5332
        %v5397 = vpack.c.bf16 %v5348, %v5346
        %v5398 = vpack.c.bf16 %v5362, %v5360
        %v5399 = vpack.c.bf16 %v5376, %v5374
        %v5400 = vpack.c.bf16 %v5281, %v5281
        %v5401 = vpack.c.bf16 %v5292, %v5292
        %v5402 = vpack.c.bf16 %v5308, %v5308
        %v5403 = vpack.c.bf16 %v5322, %v5322
        %v5404 = vpack.c.bf16 %v5336, %v5336
        %v5405 = vpack.c.bf16 %v5350, %v5350
        %v5406 = vpack.c.bf16 %v5364, %v5364
        %v5407 = vpack.c.bf16 %v5378, %v5378
        %v5409 = vshrl.u32 %v5384, 16
        %v5411 = vrot.slane %v5409, 3
        %v5412 = vshll.u32 %v5384, 16
        %v5414 = vrot.slane %v5412, 4
        %v5415 = vor.u32 %v5411, %v5414
        %v5417 = vshrl.u32 %v5392, 16
        %v5419 = vrot.slane %v5417, 3
        %v5420 = vshll.u32 %v5392, 16
        %v5422 = vrot.slane %v5420, 4
        %v5423 = vor.u32 %v5419, %v5422
        %v5424 = vsel %vm777, %v5415, %v5423
        %v5426 = vshrl.u32 %v5385, 16
        %v5428 = vrot.slane %v5426, 3
        %v5429 = vshll.u32 %v5385, 16
        %v5431 = vrot.slane %v5429, 4
        %v5432 = vor.u32 %v5428, %v5431
        %v5434 = vshrl.u32 %v5393, 16
        %v5436 = vrot.slane %v5434, 3
        %v5437 = vshll.u32 %v5393, 16
        %v5439 = vrot.slane %v5437, 4
        %v5440 = vor.u32 %v5436, %v5439
        %v5441 = vsel %vm777, %v5432, %v5440
        %v5443 = vshrl.u32 %v5386, 16
        %v5445 = vrot.slane %v5443, 3
        %v5446 = vshll.u32 %v5386, 16
        %v5448 = vrot.slane %v5446, 4
        %v5449 = vor.u32 %v5445, %v5448
        %v5451 = vshrl.u32 %v5394, 16
        %v5453 = vrot.slane %v5451, 3
        %v5454 = vshll.u32 %v5394, 16
        %v5456 = vrot.slane %v5454, 4
        %v5457 = vor.u32 %v5453, %v5456
        %v5458 = vsel %vm777, %v5449, %v5457
        %v5460 = vshrl.u32 %v5387, 16
        %v5462 = vrot.slane %v5460, 3
        %v5463 = vshll.u32 %v5387, 16
        %v5465 = vrot.slane %v5463, 4
        %v5466 = vor.u32 %v5462, %v5465
        %v5468 = vshrl.u32 %v5395, 16
        %v5470 = vrot.slane %v5468, 3
        %v5471 = vshll.u32 %v5395, 16
        %v5473 = vrot.slane %v5471, 4
        %v5474 = vor.u32 %v5470, %v5473
        %v5475 = vsel %vm777, %v5466, %v5474
        %v5477 = vshrl.u32 %v5388, 16
        %v5479 = vrot.slane %v5477, 3
        %v5480 = vshll.u32 %v5388, 16
        %v5482 = vrot.slane %v5480, 4
        %v5483 = vor.u32 %v5479, %v5482
        %v5485 = vshrl.u32 %v5396, 16
        %v5487 = vrot.slane %v5485, 3
        %v5488 = vshll.u32 %v5396, 16
        %v5490 = vrot.slane %v5488, 4
        %v5491 = vor.u32 %v5487, %v5490
        %v5492 = vsel %vm777, %v5483, %v5491
        %v5494 = vshrl.u32 %v5389, 16
        %v5496 = vrot.slane %v5494, 3
        %v5497 = vshll.u32 %v5389, 16
        %v5499 = vrot.slane %v5497, 4
        %v5500 = vor.u32 %v5496, %v5499
        %v5502 = vshrl.u32 %v5397, 16
        %v5504 = vrot.slane %v5502, 3
        %v5505 = vshll.u32 %v5397, 16
        %v5507 = vrot.slane %v5505, 4
        %v5508 = vor.u32 %v5504, %v5507
        %v5509 = vsel %vm777, %v5500, %v5508
        %v5511 = vshrl.u32 %v5390, 16
        %v5513 = vrot.slane %v5511, 3
        %v5514 = vshll.u32 %v5390, 16
        %v5516 = vrot.slane %v5514, 4
        %v5517 = vor.u32 %v5513, %v5516
        %v5519 = vshrl.u32 %v5398, 16
        %v5521 = vrot.slane %v5519, 3
        %v5522 = vshll.u32 %v5398, 16
        %v5524 = vrot.slane %v5522, 4
        %v5525 = vor.u32 %v5521, %v5524
        %v5526 = vsel %vm777, %v5517, %v5525
        %v5528 = vshrl.u32 %v5391, 16
        %v5530 = vrot.slane %v5528, 3
        %v5531 = vshll.u32 %v5391, 16
        %v5533 = vrot.slane %v5531, 4
        %v5534 = vor.u32 %v5530, %v5533
        %v5536 = vshrl.u32 %v5399, 16
        %v5538 = vrot.slane %v5536, 3
        %v5539 = vshll.u32 %v5399, 16
        %v5541 = vrot.slane %v5539, 4
        %v5542 = vor.u32 %v5538, %v5541
        %v5543 = vsel %vm777, %v5534, %v5542
        %v5545 = vshrl.u32 %v5400, 16
        %v5547 = vrot.slane %v5545, 3
        %v5548 = vshll.u32 %v5400, 16
        %v5550 = vrot.slane %v5548, 4
        %v5551 = vor.u32 %v5547, %v5550
        %v5552 = vsel %vm777, %v5423, %v5551
        %v5554 = vshrl.u32 %v5401, 16
        %v5556 = vrot.slane %v5554, 3
        %v5557 = vshll.u32 %v5401, 16
        %v5559 = vrot.slane %v5557, 4
        %v5560 = vor.u32 %v5556, %v5559
        %v5561 = vsel %vm777, %v5440, %v5560
        %v5563 = vshrl.u32 %v5402, 16
        %v5565 = vrot.slane %v5563, 3
        %v5566 = vshll.u32 %v5402, 16
        %v5568 = vrot.slane %v5566, 4
        %v5569 = vor.u32 %v5565, %v5568
        %v5570 = vsel %vm777, %v5457, %v5569
        %v5572 = vshrl.u32 %v5403, 16
        %v5574 = vrot.slane %v5572, 3
        %v5575 = vshll.u32 %v5403, 16
        %v5577 = vrot.slane %v5575, 4
        %v5578 = vor.u32 %v5574, %v5577
        %v5579 = vsel %vm777, %v5474, %v5578
        %v5581 = vshrl.u32 %v5404, 16
        %v5583 = vrot.slane %v5581, 3
        %v5584 = vshll.u32 %v5404, 16
        %v5586 = vrot.slane %v5584, 4
        %v5587 = vor.u32 %v5583, %v5586
        %v5588 = vsel %vm777, %v5491, %v5587
        %v5590 = vshrl.u32 %v5405, 16
        %v5592 = vrot.slane %v5590, 3
        %v5593 = vshll.u32 %v5405, 16
        %v5595 = vrot.slane %v5593, 4
        %v5596 = vor.u32 %v5592, %v5595
        %v5597 = vsel %vm777, %v5508, %v5596
        %v5599 = vshrl.u32 %v5406, 16
        %v5601 = vrot.slane %v5599, 3
        %v5602 = vshll.u32 %v5406, 16
        %v5604 = vrot.slane %v5602, 4
        %v5605 = vor.u32 %v5601, %v5604
        %v5606 = vsel %vm777, %v5525, %v5605
        %v5608 = vshrl.u32 %v5407, 16
        %v5610 = vrot.slane %v5608, 3
        %v5611 = vshll.u32 %v5407, 16
        %v5613 = vrot.slane %v5611, 4
        %v5614 = vor.u32 %v5610, %v5613
        %v5615 = vsel %vm777, %v5542, %v5614
        %5632 = vmatprep.subr.bf16.mxu0 0
        %5633 = vmatpush1.bf16.msra.mxu0 %v2379
        %5634 = vmatprep.subr.bf16.mxu0 0
        %5635 = vmatpush1.bf16.msra.mxu0 %v2380
        %5636 = vmatprep.subr.bf16.mxu0 0
        %5637 = vmatpush1.bf16.msra.mxu0 %v2381
        %5638 = vmatprep.subr.bf16.mxu0 0
        %5639 = vmatpush1.bf16.msra.mxu0 %v2382
        %5640 = vmatprep.subr.bf16.mxu0 0
        %5641 = vmatpush1.bf16.msra.mxu0 %v2383
        %5642 = vmatprep.subr.bf16.mxu0 0
        %5643 = vmatpush1.bf16.msra.mxu0 %v2384
        %5644 = vmatprep.subr.bf16.mxu0 0
        %5645 = vmatpush1.bf16.msra.mxu0 %v2385
        %5646 = vmatprep.subr.bf16.mxu0 0
        %5647 = vmatpush1.bf16.msra.mxu0 %v2386
        %5648 = vmatprep.subr.bf16.mxu0 0
        %5649 = vmatpush1.bf16.msra.mxu0 %v2387
        %5650 = vmatprep.subr.bf16.mxu0 0
        %5651 = vmatpush1.bf16.msra.mxu0 %v2388
        %5652 = vmatprep.subr.bf16.mxu0 0
        %5653 = vmatpush1.bf16.msra.mxu0 %v2389
        %5654 = vmatprep.subr.bf16.mxu0 0
        %5655 = vmatpush1.bf16.msra.mxu0 %v2390
        %5656 = vmatprep.subr.bf16.mxu0 0
        %5657 = vmatpush1.bf16.msra.mxu0 %v2391
        %5658 = vmatprep.subr.bf16.mxu0 0
        %5659 = vmatpush1.bf16.msra.mxu0 %v2392
        %5660 = vmatprep.subr.bf16.mxu0 0
        %5661 = vmatpush1.bf16.msra.mxu0 %v2393
        %5662 = vmatprep.subr.bf16.mxu0 0
        %5663 = vmatpush1.bf16.msra.mxu0 %v2394
        %5664 = vmatprep.mubr.bf16.mxu0 %v5441
        %5665 = vmatmul.mubr.bf16.gmra.mrb[0].mxu0 %v5424
        %v5666 = vpop.f32.mrb[0].mxu0
        %v5667 = vadd.f32 %v1897, %v5666
        %v5668 = vpop.f32.mrb[0].mxu0
        %v5669 = vpop.f32.mrb[0].mxu0
        %v5670 = vadd.f32 %v1897, %v5669
        %v5671 = vpop.f32.mrb[0].mxu0
        %5672 = vmatprep.mubr.bf16.mxu0 %v5561
        %5673 = vmatmul.mubr.bf16.gmra.mrb[0].mxu0 %v5552
        %v5674 = vpop.f32.mrb[0].mxu0
        %v5675 = vadd.f32 %v1897, %v5674
        %v5676 = vpop.f32.mrb[0].mxu0
        %v5677 = vpop.f32.mrb[0].mxu0
        %v5678 = vadd.f32 %v1897, %v5677
        %v5679 = vpop.f32.mrb[0].mxu0
        %5680 = vdwg.mxu0
        %5681 = vmatprep.subr.bf16.mxu0 0
        %5682 = vmatpush1.bf16.msra.mxu0 %v2395
        %5683 = vmatprep.subr.bf16.mxu0 0
        %5684 = vmatpush1.bf16.msra.mxu0 %v2396
        %5685 = vmatprep.subr.bf16.mxu0 0
        %5686 = vmatpush1.bf16.msra.mxu0 %v2397
        %5687 = vmatprep.subr.bf16.mxu0 0
        %5688 = vmatpush1.bf16.msra.mxu0 %v2398
        %5689 = vmatprep.subr.bf16.mxu0 0
        %5690 = vmatpush1.bf16.msra.mxu0 %v2399
        %5691 = vmatprep.subr.bf16.mxu0 0
        %5692 = vmatpush1.bf16.msra.mxu0 %v2400
        %5693 = vmatprep.subr.bf16.mxu0 0
        %5694 = vmatpush1.bf16.msra.mxu0 %v2401
        %5695 = vmatprep.subr.bf16.mxu0 0
        %5696 = vmatpush1.bf16.msra.mxu0 %v2402
        %5697 = vmatprep.subr.bf16.mxu0 0
        %5698 = vmatpush1.bf16.msra.mxu0 %v2403
        %5699 = vmatprep.subr.bf16.mxu0 0
        %5700 = vmatpush1.bf16.msra.mxu0 %v2404
        %5701 = vmatprep.subr.bf16.mxu0 0
        %5702 = vmatpush1.bf16.msra.mxu0 %v2405
        %5703 = vmatprep.subr.bf16.mxu0 0
        %5704 = vmatpush1.bf16.msra.mxu0 %v2406
        %5705 = vmatprep.subr.bf16.mxu0 0
        %5706 = vmatpush1.bf16.msra.mxu0 %v2407
        %5707 = vmatprep.subr.bf16.mxu0 0
        %5708 = vmatpush1.bf16.msra.mxu0 %v2408
        %5709 = vmatprep.subr.bf16.mxu0 0
        %5710 = vmatpush1.bf16.msra.mxu0 %v2409
        %5711 = vmatprep.subr.bf16.mxu0 0
        %5712 = vmatpush1.bf16.msra.mxu0 %v2410
        %5713 = vmatprep.mubr.bf16.mxu0 %v5475
        %5714 = vmatmul.mubr.bf16.gmra.mrb[0].mxu0 %v5458
        %v5715 = vpop.f32.mrb[0].mxu0
        %v5716 = vadd.f32 %v5667, %v5715
        %v5717 = vpop.f32.mrb[0].mxu0
        %v5718 = vpop.f32.mrb[0].mxu0
        %v5719 = vadd.f32 %v5670, %v5718
        %v5720 = vpop.f32.mrb[0].mxu0
        %5721 = vmatprep.mubr.bf16.mxu0 %v5579
        %5722 = vmatmul.mubr.bf16.gmra.mrb[0].mxu0 %v5570
        %v5723 = vpop.f32.mrb[0].mxu0
        %v5724 = vadd.f32 %v5675, %v5723
        %v5725 = vpop.f32.mrb[0].mxu0
        %v5726 = vpop.f32.mrb[0].mxu0
        %v5727 = vadd.f32 %v5678, %v5726
        %v5728 = vpop.f32.mrb[0].mxu0
        %5729 = vdwg.mxu0
        %5730 = vmatprep.subr.bf16.mxu0 0
        %5731 = vmatpush1.bf16.msra.mxu0 %v2411
        %5732 = vmatprep.subr.bf16.mxu0 0
        %5733 = vmatpush1.bf16.msra.mxu0 %v2412
        %5734 = vmatprep.subr.bf16.mxu0 0
        %5735 = vmatpush1.bf16.msra.mxu0 %v2413
        %5736 = vmatprep.subr.bf16.mxu0 0
        %5737 = vmatpush1.bf16.msra.mxu0 %v2414
        %5738 = vmatprep.subr.bf16.mxu0 0
        %5739 = vmatpush1.bf16.msra.mxu0 %v2415
        %5740 = vmatprep.subr.bf16.mxu0 0
        %5741 = vmatpush1.bf16.msra.mxu0 %v2416
        %5742 = vmatprep.subr.bf16.mxu0 0
        %5743 = vmatpush1.bf16.msra.mxu0 %v2417
        %5744 = vmatprep.subr.bf16.mxu0 0
        %5745 = vmatpush1.bf16.msra.mxu0 %v2418
        %5746 = vmatprep.subr.bf16.mxu0 0
        %5747 = vmatpush1.bf16.msra.mxu0 %v2419
        %5748 = vmatprep.subr.bf16.mxu0 0
        %5749 = vmatpush1.bf16.msra.mxu0 %v2420
        %5750 = vmatprep.subr.bf16.mxu0 0
        %5751 = vmatpush1.bf16.msra.mxu0 %v2421
        %5752 = vmatprep.subr.bf16.mxu0 0
        %5753 = vmatpush1.bf16.msra.mxu0 %v2422
        %5754 = vmatprep.subr.bf16.mxu0 0
        %5755 = vmatpush1.bf16.msra.mxu0 %v2423
        %5756 = vmatprep.subr.bf16.mxu0 0
        %5757 = vmatpush1.bf16.msra.mxu0 %v2424
        %5758 = vmatprep.subr.bf16.mxu0 0
        %5759 = vmatpush1.bf16.msra.mxu0 %v2425
        %5760 = vmatprep.subr.bf16.mxu0 0
        %5761 = vmatpush1.bf16.msra.mxu0 %v2426
        %5762 = vmatprep.mubr.bf16.mxu0 %v5509
        %5763 = vmatmul.mubr.bf16.gmra.mrb[0].mxu0 %v5492
        %v5764 = vpop.f32.mrb[0].mxu0
        %v5765 = vadd.f32 %v5716, %v5764
        %v5766 = vpop.f32.mrb[0].mxu0
        %v5767 = vpop.f32.mrb[0].mxu0
        %v5768 = vadd.f32 %v5719, %v5767
        %v5769 = vpop.f32.mrb[0].mxu0
        %5770 = vmatprep.mubr.bf16.mxu0 %v5597
        %5771 = vmatmul.mubr.bf16.gmra.mrb[0].mxu0 %v5588
        %v5772 = vpop.f32.mrb[0].mxu0
        %v5773 = vadd.f32 %v5724, %v5772
        %v5774 = vpop.f32.mrb[0].mxu0
        %v5775 = vpop.f32.mrb[0].mxu0
        %v5776 = vadd.f32 %v5727, %v5775
        %v5777 = vpop.f32.mrb[0].mxu0
        %5778 = vdwg.mxu0
        %5779 = vmatprep.subr.bf16.mxu0 0
        %5780 = vmatpush1.bf16.msra.mxu0 %v2427
        %5781 = vmatprep.subr.bf16.mxu0 0
        %5782 = vmatpush1.bf16.msra.mxu0 %v2428
        %5783 = vmatprep.subr.bf16.mxu0 0
        %5784 = vmatpush1.bf16.msra.mxu0 %v2429
        %5785 = vmatprep.subr.bf16.mxu0 0
        %5786 = vmatpush1.bf16.msra.mxu0 %v2430
        %5787 = vmatprep.subr.bf16.mxu0 0
        %5788 = vmatpush1.bf16.msra.mxu0 %v2431
        %5789 = vmatprep.subr.bf16.mxu0 0
        %5790 = vmatpush1.bf16.msra.mxu0 %v2432
        %5791 = vmatprep.subr.bf16.mxu0 0
        %5792 = vmatpush1.bf16.msra.mxu0 %v2433
        %5793 = vmatprep.subr.bf16.mxu0 0
        %5794 = vmatpush1.bf16.msra.mxu0 %v2434
        %5795 = vmatprep.subr.bf16.mxu0 0
        %5796 = vmatpush1.bf16.msra.mxu0 %v2435
        %5797 = vmatprep.subr.bf16.mxu0 0
        %5798 = vmatpush1.bf16.msra.mxu0 %v2436
        %5799 = vmatprep.subr.bf16.mxu0 0
        %5800 = vmatpush1.bf16.msra.mxu0 %v2437
        %5801 = vmatprep.subr.bf16.mxu0 0
        %5802 = vmatpush1.bf16.msra.mxu0 %v2438
        %5803 = vmatprep.subr.bf16.mxu0 0
        %5804 = vmatpush1.bf16.msra.mxu0 %v2439
        %5805 = vmatprep.subr.bf16.mxu0 0
        %5806 = vmatpush1.bf16.msra.mxu0 %v2440
        %5807 = vmatprep.subr.bf16.mxu0 0
        %5808 = vmatpush1.bf16.msra.mxu0 %v2441
        %5809 = vmatprep.subr.bf16.mxu0 0
        %5810 = vmatpush1.bf16.msra.mxu0 %v2442
        %5811 = vmatprep.mubr.bf16.mxu0 %v5543
        %5812 = vmatmul.mubr.bf16.gmra.mrb[0].mxu0 %v5526
        %v5813 = vpop.f32.mrb[0].mxu0
        %v5814 = vadd.f32 %v5765, %v5813
        %v5815 = vpop.f32.mrb[0].mxu0
        %v5816 = vpop.f32.mrb[0].mxu0
        %v5817 = vadd.f32 %v5768, %v5816
        %v5818 = vpop.f32.mrb[0].mxu0
        %5819 = vmatprep.mubr.bf16.mxu0 %v5615
        %5820 = vmatmul.mubr.bf16.gmra.mrb[0].mxu0 %v5606
        %v5821 = vpop.f32.mrb[0].mxu0
        %v5822 = vadd.f32 %v5773, %v5821
        %v5823 = vpop.f32.mrb[0].mxu0
        %v5824 = vpop.f32.mrb[0].mxu0
        %v5825 = vadd.f32 %v5776, %v5824
        %v5826 = vpop.f32.mrb[0].mxu0
        %5827 = vdwg.mxu0
        %v5828 = vmax.f32 %v5814, 0.0
        %v5829 = vmax.f32 %v5817, 0.0
        %v5830 = vmax.f32 %v5822, 0.0
        %v5831 = vmax.f32 %v5825, 0.0
        %v5832 = vsel %vm2707, %v5828, 0.0
        %v5833 = vsel %vm2708, %v5829, 0.0
        %v5834 = vsel %vm2709, %v5830, 0.0
        %v5835 = vsel %vm2710, %v5831, 0.0
        %v5839 = vrot.slane %v5832, 1
        %v5840 = vrot.slane %v5833, 1
        %v5841 = vsel %vm493, %v5839, %v5840
        %v5842 = vrot.slane %v5834, 1
        %v5843 = vsel %vm493, %v5840, %v5842
        %v5849 = vrot.slane %v5832, 2
        %v5850 = vrot.slane %v5833, 2
        %v5851 = vsel %vm510, %v5849, %v5850
        %v5852 = vrot.slane %v5834, 2
        %v5853 = vsel %vm510, %v5850, %v5852
        %v5854 = vrot.slane %v5835, 2
        %v5855 = vsel %vm510, %v5852, %v5854
        %v5860 = vrot.slane %v5832, 3
        %v5861 = vrot.slane %v5833, 3
        %v5862 = vsel %vm528, %v5860, %v5861
        %v5863 = vrot.slane %v5834, 3
        %v5864 = vsel %vm528, %v5861, %v5863
        %v5865 = vrot.slane %v5835, 3
        %v5866 = vsel %vm528, %v5863, %v5865
        %v5871 = vrot.slane %v5832, 4
        %v5872 = vrot.slane %v5833, 4
        %v5873 = vsel %vm546, %v5871, %v5872
        %v5874 = vrot.slane %v5834, 4
        %v5875 = vsel %vm546, %v5872, %v5874
        %v5876 = vrot.slane %v5835, 4
        %v5877 = vsel %vm546, %v5874, %v5876
        %v5882 = vrot.slane %v5832, 5
        %v5883 = vrot.slane %v5833, 5
        %v5884 = vsel %vm564, %v5882, %v5883
        %v5885 = vrot.slane %v5834, 5
        %v5886 = vsel %vm564, %v5883, %v5885
        %v5887 = vrot.slane %v5835, 5
        %v5888 = vsel %vm564, %v5885, %v5887
        %v5893 = vrot.slane %v5832, 6
        %v5894 = vrot.slane %v5833, 6
        %v5895 = vsel %vm582, %v5893, %v5894
        %v5896 = vrot.slane %v5834, 6
        %v5897 = vsel %vm582, %v5894, %v5896
        %v5898 = vrot.slane %v5835, 6
        %v5899 = vsel %vm582, %v5896, %v5898
        %v5904 = vrot.slane %v5832, 7
        %v5905 = vrot.slane %v5833, 7
        %v5906 = vsel %vm600, %v5904, %v5905
        %v5907 = vrot.slane %v5834, 7
        %v5908 = vsel %vm600, %v5905, %v5907
        %v5909 = vrot.slane %v5835, 7
        %v5910 = vsel %vm600, %v5907, %v5909
        %v5915 = vpack.c.bf16 %v5832, 0.0
        %v5916 = vpack.c.bf16 %v5841, %v5839
        %v5917 = vpack.c.bf16 %v5851, %v5849
        %v5918 = vpack.c.bf16 %v5862, %v5860
        %v5919 = vpack.c.bf16 %v5873, %v5871
        %v5920 = vpack.c.bf16 %v5884, %v5882
        %v5921 = vpack.c.bf16 %v5895, %v5893
        %v5922 = vpack.c.bf16 %v5906, %v5904
        %v5923 = vpack.c.bf16 %v5834, %v5833
        %v5924 = vpack.c.bf16 %v5842, %v5843
        %v5925 = vpack.c.bf16 %v5855, %v5853
        %v5926 = vpack.c.bf16 %v5866, %v5864
        %v5927 = vpack.c.bf16 %v5877, %v5875
        %v5928 = vpack.c.bf16 %v5888, %v5886
        %v5929 = vpack.c.bf16 %v5899, %v5897
        %v5930 = vpack.c.bf16 %v5910, %v5908
        %v5932 = vshrl.u32 %v5915, 16
        %v5934 = vrot.slane %v5932, 3
        %v5935 = vshll.u32 %v5915, 16
        %v5937 = vrot.slane %v5935, 4
        %v5938 = vor.u32 %v5934, %v5937
        %v5940 = vshrl.u32 %v5923, 16
        %v5942 = vrot.slane %v5940, 3
        %v5943 = vshll.u32 %v5923, 16
        %v5945 = vrot.slane %v5943, 4
        %v5946 = vor.u32 %v5942, %v5945
        %v5947 = vsel %vm777, %v5938, %v5946
        %v5949 = vshrl.u32 %v5916, 16
        %v5951 = vrot.slane %v5949, 3
        %v5952 = vshll.u32 %v5916, 16
        %v5954 = vrot.slane %v5952, 4
        %v5955 = vor.u32 %v5951, %v5954
        %v5957 = vshrl.u32 %v5924, 16
        %v5959 = vrot.slane %v5957, 3
        %v5960 = vshll.u32 %v5924, 16
        %v5962 = vrot.slane %v5960, 4
        %v5963 = vor.u32 %v5959, %v5962
        %v5964 = vsel %vm777, %v5955, %v5963
        %v5966 = vshrl.u32 %v5917, 16
        %v5968 = vrot.slane %v5966, 3
        %v5969 = vshll.u32 %v5917, 16
        %v5971 = vrot.slane %v5969, 4
        %v5972 = vor.u32 %v5968, %v5971
        %v5974 = vshrl.u32 %v5925, 16
        %v5976 = vrot.slane %v5974, 3
        %v5977 = vshll.u32 %v5925, 16
        %v5979 = vrot.slane %v5977, 4
        %v5980 = vor.u32 %v5976, %v5979
        %v5981 = vsel %vm777, %v5972, %v5980
        %v5983 = vshrl.u32 %v5918, 16
        %v5985 = vrot.slane %v5983, 3
        %v5986 = vshll.u32 %v5918, 16
        %v5988 = vrot.slane %v5986, 4
        %v5989 = vor.u32 %v5985, %v5988
        %v5991 = vshrl.u32 %v5926, 16
        %v5993 = vrot.slane %v5991, 3
        %v5994 = vshll.u32 %v5926, 16
        %v5996 = vrot.slane %v5994, 4
        %v5997 = vor.u32 %v5993, %v5996
        %v5998 = vsel %vm777, %v5989, %v5997
        %v6000 = vshrl.u32 %v5919, 16
        %v6002 = vrot.slane %v6000, 3
        %v6003 = vshll.u32 %v5919, 16
        %v6005 = vrot.slane %v6003, 4
        %v6006 = vor.u32 %v6002, %v6005
        %v6008 = vshrl.u32 %v5927, 16
        %v6010 = vrot.slane %v6008, 3
        %v6011 = vshll.u32 %v5927, 16
        %v6013 = vrot.slane %v6011, 4
        %v6014 = vor.u32 %v6010, %v6013
        %v6015 = vsel %vm777, %v6006, %v6014
        %v6017 = vshrl.u32 %v5920, 16
        %v6019 = vrot.slane %v6017, 3
        %v6020 = vshll.u32 %v5920, 16
        %v6022 = vrot.slane %v6020, 4
        %v6023 = vor.u32 %v6019, %v6022
        %v6025 = vshrl.u32 %v5928, 16
        %v6027 = vrot.slane %v6025, 3
        %v6028 = vshll.u32 %v5928, 16
        %v6030 = vrot.slane %v6028, 4
        %v6031 = vor.u32 %v6027, %v6030
        %v6032 = vsel %vm777, %v6023, %v6031
        %v6034 = vshrl.u32 %v5921, 16
        %v6036 = vrot.slane %v6034, 3
        %v6037 = vshll.u32 %v5921, 16
        %v6039 = vrot.slane %v6037, 4
        %v6040 = vor.u32 %v6036, %v6039
        %v6042 = vshrl.u32 %v5929, 16
        %v6044 = vrot.slane %v6042, 3
        %v6045 = vshll.u32 %v5929, 16
        %v6047 = vrot.slane %v6045, 4
        %v6048 = vor.u32 %v6044, %v6047
        %v6049 = vsel %vm777, %v6040, %v6048
        %v6051 = vshrl.u32 %v5922, 16
        %v6053 = vrot.slane %v6051, 3
        %v6054 = vshll.u32 %v5922, 16
        %v6056 = vrot.slane %v6054, 4
        %v6057 = vor.u32 %v6053, %v6056
        %v6059 = vshrl.u32 %v5930, 16
        %v6061 = vrot.slane %v6059, 3
        %v6062 = vshll.u32 %v5930, 16
        %v6064 = vrot.slane %v6062, 4
        %v6065 = vor.u32 %v6061, %v6064
        %v6066 = vsel %vm777, %v6057, %v6065
        %6083 = vmatprep.subr.bf16.mxu0 0
        %6084 = vmatpush1.bf16.msra.mxu0 %v3353
        %6085 = vmatprep.subr.bf16.mxu0 0
        %6086 = vmatpush1.bf16.msra.mxu0 %v3354
        %6087 = vmatprep.subr.bf16.mxu0 0
        %6088 = vmatpush1.bf16.msra.mxu0 %v3355
        %6089 = vmatprep.subr.bf16.mxu0 0
        %6090 = vmatpush1.bf16.msra.mxu0 %v3356
        %6091 = vmatprep.subr.bf16.mxu0 0
        %6092 = vmatpush1.bf16.msra.mxu0 %v3357
        %6093 = vmatprep.subr.bf16.mxu0 0
        %6094 = vmatpush1.bf16.msra.mxu0 %v3358
        %6095 = vmatprep.subr.bf16.mxu0 0
        %6096 = vmatpush1.bf16.msra.mxu0 %v3359
        %6097 = vmatprep.subr.bf16.mxu0 0
        %6098 = vmatpush1.bf16.msra.mxu0 %v3360
        %6099 = vmatprep.subr.bf16.mxu0 0
        %6100 = vmatpush1.bf16.msra.mxu0 %v3361
        %6101 = vmatprep.subr.bf16.mxu0 0
        %6102 = vmatpush1.bf16.msra.mxu0 %v3362
        %6103 = vmatprep.subr.bf16.mxu0 0
        %6104 = vmatpush1.bf16.msra.mxu0 %v3363
        %6105 = vmatprep.subr.bf16.mxu0 0
        %6106 = vmatpush1.bf16.msra.mxu0 %v3364
        %6107 = vmatprep.subr.bf16.mxu0 0
        %6108 = vmatpush1.bf16.msra.mxu0 %v3365
        %6109 = vmatprep.subr.bf16.mxu0 0
        %6110 = vmatpush1.bf16.msra.mxu0 %v3366
        %6111 = vmatprep.subr.bf16.mxu0 0
        %6112 = vmatpush1.bf16.msra.mxu0 %v3367
        %6113 = vmatprep.subr.bf16.mxu0 0
        %6114 = vmatpush1.bf16.msra.mxu0 %v3368
        %6115 = vmatprep.mubr.bf16.mxu0 %v5964
        %6116 = vmatmul.mubr.bf16.gmra.mrb[0].mxu0 %v5947
        %v6117 = vpop.f32.mrb[0].mxu0
        %v6118 = vadd.f32 %v2943, %v6117
        %v6119 = vpop.f32.mrb[0].mxu0
        %v6120 = vpop.f32.mrb[0].mxu0
        %v6121 = vadd.f32 %v2943, %v6120
        %v6122 = vpop.f32.mrb[0].mxu0
        %6123 = vmatprep.mubr.bf16.mxu0 %v5963
        %6124 = vmatmul.mubr.bf16.gmra.mrb[0].mxu0 %v5946
        %v6125 = vpop.f32.mrb[0].mxu0
        %v6126 = vadd.f32 %v2943, %v6125
        %v6127 = vpop.f32.mrb[0].mxu0
        %v6128 = vpop.f32.mrb[0].mxu0
        %v6129 = vpop.f32.mrb[0].mxu0
        %6130 = vdwg.mxu0
        %6131 = vmatprep.subr.bf16.mxu0 0
        %6132 = vmatpush1.bf16.msra.mxu0 %v3369
        %6133 = vmatprep.subr.bf16.mxu0 0
        %6134 = vmatpush1.bf16.msra.mxu0 %v3370
        %6135 = vmatprep.subr.bf16.mxu0 0
        %6136 = vmatpush1.bf16.msra.mxu0 %v3371
        %6137 = vmatprep.subr.bf16.mxu0 0
        %6138 = vmatpush1.bf16.msra.mxu0 %v3372
        %6139 = vmatprep.subr.bf16.mxu0 0
        %6140 = vmatpush1.bf16.msra.mxu0 %v3373
        %6141 = vmatprep.subr.bf16.mxu0 0
        %6142 = vmatpush1.bf16.msra.mxu0 %v3374
        %6143 = vmatprep.subr.bf16.mxu0 0
        %6144 = vmatpush1.bf16.msra.mxu0 %v3375
        %6145 = vmatprep.subr.bf16.mxu0 0
        %6146 = vmatpush1.bf16.msra.mxu0 %v3376
        %6147 = vmatprep.subr.bf16.mxu0 0
        %6148 = vmatpush1.bf16.msra.mxu0 %v3377
        %6149 = vmatprep.subr.bf16.mxu0 0
        %6150 = vmatpush1.bf16.msra.mxu0 %v3378
        %6151 = vmatprep.subr.bf16.mxu0 0
        %6152 = vmatpush1.bf16.msra.mxu0 %v3379
        %6153 = vmatprep.subr.bf16.mxu0 0
        %6154 = vmatpush1.bf16.msra.mxu0 %v3380
        %6155 = vmatprep.subr.bf16.mxu0 0
        %6156 = vmatpush1.bf16.msra.mxu0 %v3381
        %6157 = vmatprep.subr.bf16.mxu0 0
        %6158 = vmatpush1.bf16.msra.mxu0 %v3382
        %6159 = vmatprep.subr.bf16.mxu0 0
        %6160 = vmatpush1.bf16.msra.mxu0 %v3383
        %6161 = vmatprep.subr.bf16.mxu0 0
        %6162 = vmatpush1.bf16.msra.mxu0 %v3384
        %6163 = vmatprep.mubr.bf16.mxu0 %v5998
        %6164 = vmatmul.mubr.bf16.gmra.mrb[0].mxu0 %v5981
        %v6165 = vpop.f32.mrb[0].mxu0
        %v6166 = vadd.f32 %v6118, %v6165
        %v6167 = vpop.f32.mrb[0].mxu0
        %v6168 = vpop.f32.mrb[0].mxu0
        %v6169 = vadd.f32 %v6121, %v6168
        %v6170 = vpop.f32.mrb[0].mxu0
        %6171 = vmatprep.mubr.bf16.mxu0 %v5997
        %6172 = vmatmul.mubr.bf16.gmra.mrb[0].mxu0 %v5980
        %v6173 = vpop.f32.mrb[0].mxu0
        %v6174 = vadd.f32 %v6126, %v6173
        %v6175 = vpop.f32.mrb[0].mxu0
        %v6176 = vpop.f32.mrb[0].mxu0
        %v6177 = vpop.f32.mrb[0].mxu0
        %6178 = vdwg.mxu0
        %6179 = vmatprep.subr.bf16.mxu0 0
        %6180 = vmatpush1.bf16.msra.mxu0 %v3385
        %6181 = vmatprep.subr.bf16.mxu0 0
        %6182 = vmatpush1.bf16.msra.mxu0 %v3386
        %6183 = vmatprep.subr.bf16.mxu0 0
        %6184 = vmatpush1.bf16.msra.mxu0 %v3387
        %6185 = vmatprep.subr.bf16.mxu0 0
        %6186 = vmatpush1.bf16.msra.mxu0 %v3388
        %6187 = vmatprep.subr.bf16.mxu0 0
        %6188 = vmatpush1.bf16.msra.mxu0 %v3389
        %6189 = vmatprep.subr.bf16.mxu0 0
        %6190 = vmatpush1.bf16.msra.mxu0 %v3390
        %6191 = vmatprep.subr.bf16.mxu0 0
        %6192 = vmatpush1.bf16.msra.mxu0 %v3391
        %6193 = vmatprep.subr.bf16.mxu0 0
        %6194 = vmatpush1.bf16.msra.mxu0 %v3392
        %6195 = vmatprep.subr.bf16.mxu0 0
        %6196 = vmatpush1.bf16.msra.mxu0 %v3393
        %6197 = vmatprep.subr.bf16.mxu0 0
        %6198 = vmatpush1.bf16.msra.mxu0 %v3394
        %6199 = vmatprep.subr.bf16.mxu0 0
        %6200 = vmatpush1.bf16.msra.mxu0 %v3395
        %6201 = vmatprep.subr.bf16.mxu0 0
        %6202 = vmatpush1.bf16.msra.mxu0 %v3396
        %6203 = vmatprep.subr.bf16.mxu0 0
        %6204 = vmatpush1.bf16.msra.mxu0 %v3397
        %6205 = vmatprep.subr.bf16.mxu0 0
        %6206 = vmatpush1.bf16.msra.mxu0 %v3398
        %6207 = vmatprep.subr.bf16.mxu0 0
        %6208 = vmatpush1.bf16.msra.mxu0 %v3399
        %6209 = vmatprep.subr.bf16.mxu0 0
        %6210 = vmatpush1.bf16.msra.mxu0 %v3400
        %6211 = vmatprep.mubr.bf16.mxu0 %v6032
        %6212 = vmatmul.mubr.bf16.gmra.mrb[0].mxu0 %v6015
        %v6213 = vpop.f32.mrb[0].mxu0
        %v6214 = vadd.f32 %v6166, %v6213
        %v6215 = vpop.f32.mrb[0].mxu0
        %v6216 = vpop.f32.mrb[0].mxu0
        %v6217 = vadd.f32 %v6169, %v6216
        %v6218 = vpop.f32.mrb[0].mxu0
        %6219 = vmatprep.mubr.bf16.mxu0 %v6031
        %6220 = vmatmul.mubr.bf16.gmra.mrb[0].mxu0 %v6014
        %v6221 = vpop.f32.mrb[0].mxu0
        %v6222 = vadd.f32 %v6174, %v6221
        %v6223 = vpop.f32.mrb[0].mxu0
        %v6224 = vpop.f32.mrb[0].mxu0
        %v6225 = vpop.f32.mrb[0].mxu0
        %6226 = vdwg.mxu0
        %6227 = vmatprep.subr.bf16.mxu0 0
        %6228 = vmatpush1.bf16.msra.mxu0 %v3401
        %6229 = vmatprep.subr.bf16.mxu0 0
        %6230 = vmatpush1.bf16.msra.mxu0 %v3402
        %6231 = vmatprep.subr.bf16.mxu0 0
        %6232 = vmatpush1.bf16.msra.mxu0 %v3403
        %6233 = vmatprep.subr.bf16.mxu0 0
        %6234 = vmatpush1.bf16.msra.mxu0 %v3404
        %6235 = vmatprep.subr.bf16.mxu0 0
        %6236 = vmatpush1.bf16.msra.mxu0 %v3405
        %6237 = vmatprep.subr.bf16.mxu0 0
        %6238 = vmatpush1.bf16.msra.mxu0 %v3406
        %6239 = vmatprep.subr.bf16.mxu0 0
        %6240 = vmatpush1.bf16.msra.mxu0 %v3407
        %6241 = vmatprep.subr.bf16.mxu0 0
        %6242 = vmatpush1.bf16.msra.mxu0 %v3408
        %6243 = vmatprep.subr.bf16.mxu0 0
        %6244 = vmatpush1.bf16.msra.mxu0 %v3409
        %6245 = vmatprep.subr.bf16.mxu0 0
        %6246 = vmatpush1.bf16.msra.mxu0 %v3410
        %6247 = vmatprep.subr.bf16.mxu0 0
        %6248 = vmatpush1.bf16.msra.mxu0 %v3411
        %6249 = vmatprep.subr.bf16.mxu0 0
        %6250 = vmatpush1.bf16.msra.mxu0 %v3412
        %6251 = vmatprep.subr.bf16.mxu0 0
        %6252 = vmatpush1.bf16.msra.mxu0 %v3413
        %6253 = vmatprep.subr.bf16.mxu0 0
        %6254 = vmatpush1.bf16.msra.mxu0 %v3414
        %6255 = vmatprep.subr.bf16.mxu0 0
        %6256 = vmatpush1.bf16.msra.mxu0 %v3415
        %6257 = vmatprep.subr.bf16.mxu0 0
        %6258 = vmatpush1.bf16.msra.mxu0 %v3416
        %6259 = vmatprep.mubr.bf16.mxu0 %v6066
        %6260 = vmatmul.mubr.bf16.gmra.mrb[0].mxu0 %v6049
        %v6261 = vpop.f32.mrb[0].mxu0
        %v6262 = vadd.f32 %v6214, %v6261
        %v6263 = vpop.f32.mrb[0].mxu0
        %v6264 = vpop.f32.mrb[0].mxu0
        %v6265 = vadd.f32 %v6217, %v6264
        %v6266 = vpop.f32.mrb[0].mxu0
        %6267 = vmatprep.mubr.bf16.mxu0 %v6065
        %6268 = vmatmul.mubr.bf16.gmra.mrb[0].mxu0 %v6048
        %v6269 = vpop.f32.mrb[0].mxu0
        %v6270 = vadd.f32 %v6222, %v6269
        %v6271 = vpop.f32.mrb[0].mxu0
        %v6272 = vpop.f32.mrb[0].mxu0
        %v6273 = vpop.f32.mrb[0].mxu0
        %6274 = vdwg.mxu0
        %v6275 = vmax.f32 %v6262, 0.0
        %v6276 = vmax.f32 %v6265, 0.0
        %v6277 = vmax.f32 %v6270, 0.0
        %v6278 = vsel %vm3676, %v6275, 0.0
        %v6279 = vsel %vm3677, %v6276, 0.0
        %v6280 = vsel %vm3678, %v6277, 0.0
        %v6284 = vrot.slane %v6278, 1
        %v6285 = vrot.slane %v6279, 1
        %v6286 = vsel %vm493, %v6284, %v6285
        %v6287 = vrot.slane %v6280, 1
        %v6288 = vsel %vm493, %v6285, %v6287
        %v6293 = vrot.slane %v6278, 2
        %v6294 = vrot.slane %v6279, 2
        %v6295 = vsel %vm510, %v6293, %v6294
        %v6296 = vrot.slane %v6280, 2
        %v6297 = vsel %vm510, %v6294, %v6296
        %v6298 = vsel %vm510, %v6296, %v3700
        %v6303 = vrot.slane %v6278, 3
        %v6304 = vrot.slane %v6279, 3
        %v6305 = vsel %vm528, %v6303, %v6304
        %v6306 = vrot.slane %v6280, 3
        %v6307 = vsel %vm528, %v6304, %v6306
        %v6308 = vsel %vm528, %v6306, %v3711
        %v6313 = vrot.slane %v6278, 4
        %v6314 = vrot.slane %v6279, 4
        %v6315 = vsel %vm546, %v6313, %v6314
        %v6316 = vrot.slane %v6280, 4
        %v6317 = vsel %vm546, %v6314, %v6316
        %v6318 = vsel %vm546, %v6316, %v3722
        %v6323 = vrot.slane %v6278, 5
        %v6324 = vrot.slane %v6279, 5
        %v6325 = vsel %vm564, %v6323, %v6324
        %v6326 = vrot.slane %v6280, 5
        %v6327 = vsel %vm564, %v6324, %v6326
        %v6328 = vsel %vm564, %v6326, %v3733
        %v6333 = vrot.slane %v6278, 6
        %v6334 = vrot.slane %v6279, 6
        %v6335 = vsel %vm582, %v6333, %v6334
        %v6336 = vrot.slane %v6280, 6
        %v6337 = vsel %vm582, %v6334, %v6336
        %v6338 = vsel %vm582, %v6336, %v3744
        %v6343 = vrot.slane %v6278, 7
        %v6344 = vrot.slane %v6279, 7
        %v6345 = vsel %vm600, %v6343, %v6344
        %v6346 = vrot.slane %v6280, 7
        %v6347 = vsel %vm600, %v6344, %v6346
        %v6348 = vsel %vm600, %v6346, %v3755
        %v6353 = vpack.c.bf16 %v6278, 0.0
        %v6354 = vpack.c.bf16 %v6286, %v6284
        %v6355 = vpack.c.bf16 %v6295, %v6293
        %v6356 = vpack.c.bf16 %v6305, %v6303
        %v6357 = vpack.c.bf16 %v6315, %v6313
        %v6358 = vpack.c.bf16 %v6325, %v6323
        %v6359 = vpack.c.bf16 %v6335, %v6333
        %v6360 = vpack.c.bf16 %v6345, %v6343
        %v6361 = vpack.c.bf16 %v6280, %v6279
        %v6362 = vpack.c.bf16 %v6287, %v6288
        %v6363 = vpack.c.bf16 %v6298, %v6297
        %v6364 = vpack.c.bf16 %v6308, %v6307
        %v6365 = vpack.c.bf16 %v6318, %v6317
        %v6366 = vpack.c.bf16 %v6328, %v6327
        %v6367 = vpack.c.bf16 %v6338, %v6337
        %v6368 = vpack.c.bf16 %v6348, %v6347
        %v6370 = vshrl.u32 %v6353, 16
        %v6372 = vrot.slane %v6370, 3
        %v6373 = vshll.u32 %v6353, 16
        %v6375 = vrot.slane %v6373, 4
        %v6376 = vor.u32 %v6372, %v6375
        %v6378 = vshrl.u32 %v6361, 16
        %v6380 = vrot.slane %v6378, 3
        %v6381 = vshll.u32 %v6361, 16
        %v6383 = vrot.slane %v6381, 4
        %v6384 = vor.u32 %v6380, %v6383
        %v6385 = vsel %vm777, %v6376, %v6384
        %v6387 = vshrl.u32 %v6354, 16
        %v6389 = vrot.slane %v6387, 3
        %v6390 = vshll.u32 %v6354, 16
        %v6392 = vrot.slane %v6390, 4
        %v6393 = vor.u32 %v6389, %v6392
        %v6395 = vshrl.u32 %v6362, 16
        %v6397 = vrot.slane %v6395, 3
        %v6398 = vshll.u32 %v6362, 16
        %v6400 = vrot.slane %v6398, 4
        %v6401 = vor.u32 %v6397, %v6400
        %v6402 = vsel %vm777, %v6393, %v6401
        %v6404 = vshrl.u32 %v6355, 16
        %v6406 = vrot.slane %v6404, 3
        %v6407 = vshll.u32 %v6355, 16
        %v6409 = vrot.slane %v6407, 4
        %v6410 = vor.u32 %v6406, %v6409
        %v6412 = vshrl.u32 %v6363, 16
        %v6414 = vrot.slane %v6412, 3
        %v6415 = vshll.u32 %v6363, 16
        %v6417 = vrot.slane %v6415, 4
        %v6418 = vor.u32 %v6414, %v6417
        %v6419 = vsel %vm777, %v6410, %v6418
        %v6421 = vshrl.u32 %v6356, 16
        %v6423 = vrot.slane %v6421, 3
        %v6424 = vshll.u32 %v6356, 16
        %v6426 = vrot.slane %v6424, 4
        %v6427 = vor.u32 %v6423, %v6426
        %v6429 = vshrl.u32 %v6364, 16
        %v6431 = vrot.slane %v6429, 3
        %v6432 = vshll.u32 %v6364, 16
        %v6434 = vrot.slane %v6432, 4
        %v6435 = vor.u32 %v6431, %v6434
        %v6436 = vsel %vm777, %v6427, %v6435
        %v6438 = vshrl.u32 %v6357, 16
        %v6440 = vrot.slane %v6438, 3
        %v6441 = vshll.u32 %v6357, 16
        %v6443 = vrot.slane %v6441, 4
        %v6444 = vor.u32 %v6440, %v6443
        %v6446 = vshrl.u32 %v6365, 16
        %v6448 = vrot.slane %v6446, 3
        %v6449 = vshll.u32 %v6365, 16
        %v6451 = vrot.slane %v6449, 4
        %v6452 = vor.u32 %v6448, %v6451
        %v6453 = vsel %vm777, %v6444, %v6452
        %v6455 = vshrl.u32 %v6358, 16
        %v6457 = vrot.slane %v6455, 3
        %v6458 = vshll.u32 %v6358, 16
        %v6460 = vrot.slane %v6458, 4
        %v6461 = vor.u32 %v6457, %v6460
        %v6463 = vshrl.u32 %v6366, 16
        %v6465 = vrot.slane %v6463, 3
        %v6466 = vshll.u32 %v6366, 16
        %v6468 = vrot.slane %v6466, 4
        %v6469 = vor.u32 %v6465, %v6468
        %v6470 = vsel %vm777, %v6461, %v6469
        %v6472 = vshrl.u32 %v6359, 16
        %v6474 = vrot.slane %v6472, 3
        %v6475 = vshll.u32 %v6359, 16
        %v6477 = vrot.slane %v6475, 4
        %v6478 = vor.u32 %v6474, %v6477
        %v6480 = vshrl.u32 %v6367, 16
        %v6482 = vrot.slane %v6480, 3
        %v6483 = vshll.u32 %v6367, 16
        %v6485 = vrot.slane %v6483, 4
        %v6486 = vor.u32 %v6482, %v6485
        %v6487 = vsel %vm777, %v6478, %v6486
        %v6489 = vshrl.u32 %v6360, 16
        %v6491 = vrot.slane %v6489, 3
        %v6492 = vshll.u32 %v6360, 16
        %v6494 = vrot.slane %v6492, 4
        %v6495 = vor.u32 %v6491, %v6494
        %v6497 = vshrl.u32 %v6368, 16
        %v6499 = vrot.slane %v6497, 3
        %v6500 = vshll.u32 %v6368, 16
        %v6502 = vrot.slane %v6500, 4
        %v6503 = vor.u32 %v6499, %v6502
        %v6504 = vsel %vm777, %v6495, %v6503
        %6521 = vmatprep.subr.bf16.mxu0 0
        %6522 = vmatpush1.bf16.msra.mxu0 %v4320
        %6523 = vmatprep.subr.bf16.mxu0 0
        %6524 = vmatpush1.bf16.msra.mxu0 %v4321
        %6525 = vmatprep.subr.bf16.mxu0 0
        %6526 = vmatpush1.bf16.msra.mxu0 %v4322
        %6527 = vmatprep.subr.bf16.mxu0 0
        %6528 = vmatpush1.bf16.msra.mxu0 %v4323
        %6529 = vmatprep.subr.bf16.mxu0 0
        %6530 = vmatpush1.bf16.msra.mxu0 %v4324
        %6531 = vmatprep.subr.bf16.mxu0 0
        %6532 = vmatpush1.bf16.msra.mxu0 %v4325
        %6533 = vmatprep.subr.bf16.mxu0 0
        %6534 = vmatpush1.bf16.msra.mxu0 %v4326
        %6535 = vmatprep.subr.bf16.mxu0 0
        %6536 = vmatpush1.bf16.msra.mxu0 %v4327
        %6537 = vmatprep.subr.bf16.mxu0 0
        %6538 = vmatpush1.bf16.msra.mxu0 %v4328
        %6539 = vmatprep.subr.bf16.mxu0 0
        %6540 = vmatpush1.bf16.msra.mxu0 %v4329
        %6541 = vmatprep.subr.bf16.mxu0 0
        %6542 = vmatpush1.bf16.msra.mxu0 %v4330
        %6543 = vmatprep.subr.bf16.mxu0 0
        %6544 = vmatpush1.bf16.msra.mxu0 %v4331
        %6545 = vmatprep.subr.bf16.mxu0 0
        %6546 = vmatpush1.bf16.msra.mxu0 %v4332
        %6547 = vmatprep.subr.bf16.mxu0 0
        %6548 = vmatpush1.bf16.msra.mxu0 %v4333
        %6549 = vmatprep.subr.bf16.mxu0 0
        %6550 = vmatpush1.bf16.msra.mxu0 %v4334
        %6551 = vmatprep.subr.bf16.mxu0 0
        %6552 = vmatpush1.bf16.msra.mxu0 %v4335
        %6553 = vmatprep.mubr.bf16.mxu0 %v6402
        %6554 = vmatmul.mubr.bf16.gmra.mrb[0].mxu0 %v6385
        %v6555 = vpop.f32.mrb[0].mxu0
        %v6556 = vadd.f32 %v3910, %v6555
        %v6557 = vpop.f32.mrb[0].mxu0
        %v6558 = vpop.f32.mrb[0].mxu0
        %v6559 = vadd.f32 %v3910, %v6558
        %v6560 = vpop.f32.mrb[0].mxu0
        %6561 = vmatprep.mubr.bf16.mxu0 %v6401
        %6562 = vmatmul.mubr.bf16.gmra.mrb[0].mxu0 %v6384
        %v6563 = vpop.f32.mrb[0].mxu0
        %v6564 = vadd.f32 %v3910, %v6563
        %v6565 = vpop.f32.mrb[0].mxu0
        %v6566 = vpop.f32.mrb[0].mxu0
        %v6567 = vpop.f32.mrb[0].mxu0
        %6568 = vdwg.mxu0
        %6569 = vmatprep.subr.bf16.mxu0 0
        %6570 = vmatpush1.bf16.msra.mxu0 %v4336
        %6571 = vmatprep.subr.bf16.mxu0 0
        %6572 = vmatpush1.bf16.msra.mxu0 %v4337
        %6573 = vmatprep.subr.bf16.mxu0 0
        %6574 = vmatpush1.bf16.msra.mxu0 %v4338
        %6575 = vmatprep.subr.bf16.mxu0 0
        %6576 = vmatpush1.bf16.msra.mxu0 %v4339
        %6577 = vmatprep.subr.bf16.mxu0 0
        %6578 = vmatpush1.bf16.msra.mxu0 %v4340
        %6579 = vmatprep.subr.bf16.mxu0 0
        %6580 = vmatpush1.bf16.msra.mxu0 %v4341
        %6581 = vmatprep.subr.bf16.mxu0 0
        %6582 = vmatpush1.bf16.msra.mxu0 %v4342
        %6583 = vmatprep.subr.bf16.mxu0 0
        %6584 = vmatpush1.bf16.msra.mxu0 %v4343
        %6585 = vmatprep.subr.bf16.mxu0 0
        %6586 = vmatpush1.bf16.msra.mxu0 %v4344
        %6587 = vmatprep.subr.bf16.mxu0 0
        %6588 = vmatpush1.bf16.msra.mxu0 %v4345
        %6589 = vmatprep.subr.bf16.mxu0 0
        %6590 = vmatpush1.bf16.msra.mxu0 %v4346
        %6591 = vmatprep.subr.bf16.mxu0 0
        %6592 = vmatpush1.bf16.msra.mxu0 %v4347
        %6593 = vmatprep.subr.bf16.mxu0 0
        %6594 = vmatpush1.bf16.msra.mxu0 %v4348
        %6595 = vmatprep.subr.bf16.mxu0 0
        %6596 = vmatpush1.bf16.msra.mxu0 %v4349
        %6597 = vmatprep.subr.bf16.mxu0 0
        %6598 = vmatpush1.bf16.msra.mxu0 %v4350
        %6599 = vmatprep.subr.bf16.mxu0 0
        %6600 = vmatpush1.bf16.msra.mxu0 %v4351
        %6601 = vmatprep.mubr.bf16.mxu0 %v6436
        %6602 = vmatmul.mubr.bf16.gmra.mrb[0].mxu0 %v6419
        %v6603 = vpop.f32.mrb[0].mxu0
        %v6604 = vadd.f32 %v6556, %v6603
        %v6605 = vpop.f32.mrb[0].mxu0
        %v6606 = vpop.f32.mrb[0].mxu0
        %v6607 = vadd.f32 %v6559, %v6606
        %v6608 = vpop.f32.mrb[0].mxu0
        %6609 = vmatprep.mubr.bf16.mxu0 %v6435
        %6610 = vmatmul.mubr.bf16.gmra.mrb[0].mxu0 %v6418
        %v6611 = vpop.f32.mrb[0].mxu0
        %v6612 = vadd.f32 %v6564, %v6611
        %v6613 = vpop.f32.mrb[0].mxu0
        %v6614 = vpop.f32.mrb[0].mxu0
        %v6615 = vpop.f32.mrb[0].mxu0
        %6616 = vdwg.mxu0
        %6617 = vmatprep.subr.bf16.mxu0 0
        %6618 = vmatpush1.bf16.msra.mxu0 %v4352
        %6619 = vmatprep.subr.bf16.mxu0 0
        %6620 = vmatpush1.bf16.msra.mxu0 %v4353
        %6621 = vmatprep.subr.bf16.mxu0 0
        %6622 = vmatpush1.bf16.msra.mxu0 %v4354
        %6623 = vmatprep.subr.bf16.mxu0 0
        %6624 = vmatpush1.bf16.msra.mxu0 %v4355
        %6625 = vmatprep.subr.bf16.mxu0 0
        %6626 = vmatpush1.bf16.msra.mxu0 %v4356
        %6627 = vmatprep.subr.bf16.mxu0 0
        %6628 = vmatpush1.bf16.msra.mxu0 %v4357
        %6629 = vmatprep.subr.bf16.mxu0 0
        %6630 = vmatpush1.bf16.msra.mxu0 %v4358
        %6631 = vmatprep.subr.bf16.mxu0 0
        %6632 = vmatpush1.bf16.msra.mxu0 %v4359
        %6633 = vmatprep.subr.bf16.mxu0 0
        %6634 = vmatpush1.bf16.msra.mxu0 %v4360
        %6635 = vmatprep.subr.bf16.mxu0 0
        %6636 = vmatpush1.bf16.msra.mxu0 %v4361
        %6637 = vmatprep.subr.bf16.mxu0 0
        %6638 = vmatpush1.bf16.msra.mxu0 %v4362
        %6639 = vmatprep.subr.bf16.mxu0 0
        %6640 = vmatpush1.bf16.msra.mxu0 %v4363
        %6641 = vmatprep.subr.bf16.mxu0 0
        %6642 = vmatpush1.bf16.msra.mxu0 %v4364
        %6643 = vmatprep.subr.bf16.mxu0 0
        %6644 = vmatpush1.bf16.msra.mxu0 %v4365
        %6645 = vmatprep.subr.bf16.mxu0 0
        %6646 = vmatpush1.bf16.msra.mxu0 %v4366
        %6647 = vmatprep.subr.bf16.mxu0 0
        %6648 = vmatpush1.bf16.msra.mxu0 %v4367
        %6649 = vmatprep.mubr.bf16.mxu0 %v6470
        %6650 = vmatmul.mubr.bf16.gmra.mrb[0].mxu0 %v6453
        %v6651 = vpop.f32.mrb[0].mxu0
        %v6652 = vadd.f32 %v6604, %v6651
        %v6653 = vpop.f32.mrb[0].mxu0
        %v6654 = vpop.f32.mrb[0].mxu0
        %v6655 = vadd.f32 %v6607, %v6654
        %v6656 = vpop.f32.mrb[0].mxu0
        %6657 = vmatprep.mubr.bf16.mxu0 %v6469
        %6658 = vmatmul.mubr.bf16.gmra.mrb[0].mxu0 %v6452
        %v6659 = vpop.f32.mrb[0].mxu0
        %v6660 = vadd.f32 %v6612, %v6659
        %v6661 = vpop.f32.mrb[0].mxu0
        %v6662 = vpop.f32.mrb[0].mxu0
        %v6663 = vpop.f32.mrb[0].mxu0
        %6664 = vdwg.mxu0
        %6665 = vmatprep.subr.bf16.mxu0 0
        %6666 = vmatpush1.bf16.msra.mxu0 %v4368
        %6667 = vmatprep.subr.bf16.mxu0 0
        %6668 = vmatpush1.bf16.msra.mxu0 %v4369
        %6669 = vmatprep.subr.bf16.mxu0 0
        %6670 = vmatpush1.bf16.msra.mxu0 %v4370
        %6671 = vmatprep.subr.bf16.mxu0 0
        %6672 = vmatpush1.bf16.msra.mxu0 %v4371
        %6673 = vmatprep.subr.bf16.mxu0 0
        %6674 = vmatpush1.bf16.msra.mxu0 %v4372
        %6675 = vmatprep.subr.bf16.mxu0 0
        %6676 = vmatpush1.bf16.msra.mxu0 %v4373
        %6677 = vmatprep.subr.bf16.mxu0 0
        %6678 = vmatpush1.bf16.msra.mxu0 %v4374
        %6679 = vmatprep.subr.bf16.mxu0 0
        %6680 = vmatpush1.bf16.msra.mxu0 %v4375
        %6681 = vmatprep.subr.bf16.mxu0 0
        %6682 = vmatpush1.bf16.msra.mxu0 %v4376
        %6683 = vmatprep.subr.bf16.mxu0 0
        %6684 = vmatpush1.bf16.msra.mxu0 %v4377
        %6685 = vmatprep.subr.bf16.mxu0 0
        %6686 = vmatpush1.bf16.msra.mxu0 %v4378
        %6687 = vmatprep.subr.bf16.mxu0 0
        %6688 = vmatpush1.bf16.msra.mxu0 %v4379
        %6689 = vmatprep.subr.bf16.mxu0 0
        %6690 = vmatpush1.bf16.msra.mxu0 %v4380
        %6691 = vmatprep.subr.bf16.mxu0 0
        %6692 = vmatpush1.bf16.msra.mxu0 %v4381
        %6693 = vmatprep.subr.bf16.mxu0 0
        %6694 = vmatpush1.bf16.msra.mxu0 %v4382
        %6695 = vmatprep.subr.bf16.mxu0 0
        %6696 = vmatpush1.bf16.msra.mxu0 %v4383
        %6697 = vmatprep.mubr.bf16.mxu0 %v6504
        %6698 = vmatmul.mubr.bf16.gmra.mrb[0].mxu0 %v6487
        %v6699 = vpop.f32.mrb[0].mxu0
        %v6700 = vadd.f32 %v6652, %v6699
        %v6701 = vpop.f32.mrb[0].mxu0
        %v6702 = vpop.f32.mrb[0].mxu0
        %v6703 = vadd.f32 %v6655, %v6702
        %v6704 = vpop.f32.mrb[0].mxu0
        %6705 = vmatprep.mubr.bf16.mxu0 %v6503
        %6706 = vmatmul.mubr.bf16.gmra.mrb[0].mxu0 %v6486
        %v6707 = vpop.f32.mrb[0].mxu0
        %v6708 = vadd.f32 %v6660, %v6707
        %v6709 = vpop.f32.mrb[0].mxu0
        %v6710 = vpop.f32.mrb[0].mxu0
        %v6711 = vpop.f32.mrb[0].mxu0
        %6712 = vdwg.mxu0
        %v6713 = vmax.f32 %v6700, 0.0
        %v6714 = vmax.f32 %v6703, 0.0
        %v6715 = vmax.f32 %v6708, 0.0
        %v6716 = vsel %vm4643, %v6713, 0.0
        %v6717 = vsel %vm4644, %v6714, 0.0
        %v6718 = vsel %vm4645, %v6715, 0.0
        %v6719 = vmax.f32 %v6716, %v6717
        %v6720 = vmax.f32 %v6719, %v6718
        %v6721 = vrot.slane %v6720, 4
        %v6722 = vmax.f32 %v6720, %v6721
        %v6723 = vrot.slane %v6722, 2
        %v6724 = vmax.f32 %v6722, %v6723
        %v6725 = vrot.slane %v6724, 1
        %v6726 = vmax.f32 %v6724, %v6725
        %vm6727 = vcmp.eq.s32.totalorder %v1624, 1
        %v6728 = vsel %vm6727, 1, 0
        %v6729 = vcvt.s32.f32 %v6728
        %v6730 = vmul.f32 %v6729, %v6726
        %v6731 = vadd.f32 %v4661, %v6730
        %v6732 = vpack.c.bf16 %v6731, %v6731
        %v6733 = vld [vmem:[#allocation11] sm:$0xf]
        %v6734 = vld [vmem:[#allocation11 + $0x4] sm:$0xf]
        %v6735 = vld [vmem:[#allocation11 + $0x8] sm:$0xf]
        %v6736 = vld [vmem:[#allocation11 + $0xc] sm:$0xf]
        %v6737 = vld [vmem:[#allocation11 + $0x10] sm:$0xf]
        %v6738 = vld [vmem:[#allocation11 + $0x14] sm:$0xf]
        %v6739 = vld [vmem:[#allocation11 + $0x18] sm:$0xf]
        %v6740 = vld [vmem:[#allocation11 + $0x1c] sm:$0xf]
        %v6741 = vld [vmem:[#allocation11 + $0x20] sm:$0xf]
        %v6742 = vld [vmem:[#allocation11 + $0x24] sm:$0xf]
        %v6743 = vld [vmem:[#allocation11 + $0x28] sm:$0xf]
        %v6744 = vld [vmem:[#allocation11 + $0x2c] sm:$0xf]
        %v6745 = vld [vmem:[#allocation11 + $0x30] sm:$0xf]
        %v6746 = vld [vmem:[#allocation11 + $0x34] sm:$0xf]
        %v6747 = vld [vmem:[#allocation11 + $0x38] sm:$0xf]
        %v6748 = vld [vmem:[#allocation11 + $0x3c] sm:$0xf]
        %v6749 = vld [vmem:[%s10] sm:$0x1]
        %v6751 = vlaneseq
        %v6752 = vshrl.u32 %v6751, 7
        %v6753 = vsub.s32 0, %v6752
        %v6754 = vrot.slane %v6749, %v6753
        %v6772 = vunpack.c.l.b16 %v6733
        %v6773 = vunpack.c.l.b16 %v6734
        %v6774 = vunpack.c.l.b16 %v6735
        %v6775 = vunpack.c.l.b16 %v6736
        %v6776 = vunpack.c.l.b16 %v6737
        %v6777 = vunpack.c.l.b16 %v6738
        %v6778 = vunpack.c.l.b16 %v6739
        %v6779 = vunpack.c.l.b16 %v6740
        %v6780 = vunpack.c.l.b16 %v6741
        %v6781 = vunpack.c.l.b16 %v6742
        %v6782 = vunpack.c.l.b16 %v6743
        %v6783 = vunpack.c.l.b16 %v6744
        %v6784 = vunpack.c.l.b16 %v6745
        %v6785 = vunpack.c.l.b16 %v6746
        %v6786 = vunpack.c.l.b16 %v6747
        %v6787 = vunpack.c.l.b16 %v6748
        %v6788 = vpack.c.b16 %v6773, %v6772
        %v6789 = vpack.c.b16 %v6775, %v6774
        %v6790 = vpack.c.b16 %v6777, %v6776
        %v6791 = vpack.c.b16 %v6779, %v6778
        %v6792 = vpack.c.b16 %v6781, %v6780
        %v6793 = vpack.c.b16 %v6783, %v6782
        %v6794 = vpack.c.b16 %v6785, %v6784
        %v6795 = vpack.c.b16 %v6787, %v6786
        %6804 = vmatprep.subr.bf16.mxu0 0
        %6805 = vmatpush1.bf16.msra.mxu0 %v6788
        %6806 = vmatprep.subr.bf16.mxu0 0
        %6807 = vmatpush1.bf16.msra.mxu0 %v6789
        %6808 = vmatprep.subr.bf16.mxu0 0
        %6809 = vmatpush1.bf16.msra.mxu0 %v6790
        %6810 = vmatprep.subr.bf16.mxu0 0
        %6811 = vmatpush1.bf16.msra.mxu0 %v6791
        %6812 = vmatprep.subr.bf16.mxu0 0
        %6813 = vmatpush1.bf16.msra.mxu0 %v6792
        %6814 = vmatprep.subr.bf16.mxu0 0
        %6815 = vmatpush1.bf16.msra.mxu0 %v6793
        %6816 = vmatprep.subr.bf16.mxu0 0
        %6817 = vmatpush1.bf16.msra.mxu0 %v6794
        %6818 = vmatprep.subr.bf16.mxu0 0
        %6819 = vmatpush1.bf16.msra.mxu0 %v6795
        %6820 = vmatprep.subr.bf16.mxu0 0
        %6821 = vmatpush1.bf16.msra.mxu0 0
        %6822 = vmatprep.subr.bf16.mxu0 0
        %6823 = vmatpush1.bf16.msra.mxu0 0
        %6824 = vmatprep.subr.bf16.mxu0 0
        %6825 = vmatpush1.bf16.msra.mxu0 0
        %6826 = vmatprep.subr.bf16.mxu0 0
        %6827 = vmatpush1.bf16.msra.mxu0 0
        %6828 = vmatprep.subr.bf16.mxu0 0
        %6829 = vmatpush1.bf16.msra.mxu0 0
        %6830 = vmatprep.subr.bf16.mxu0 0
        %6831 = vmatpush1.bf16.msra.mxu0 0
        %6832 = vmatprep.subr.bf16.mxu0 0
        %6833 = vmatpush1.bf16.msra.mxu0 0
        %6834 = vmatprep.subr.bf16.mxu0 0
        %6835 = vmatpush1.bf16.msra.mxu0 0
        %6836 = vmatprep.mubr.bf16.mxu0 0
        %6837 = vmatmul.mubr.bf16.gmra.mrb[0].mxu0 %v6732
        %v6838 = vpop.f32.mrb[0].mxu0
        %v6839 = vadd.f32 %v6754, %v6838
        %v6840 = vpop.f32.mrb[0].mxu0
        %v6841 = vpop.f32.mrb[0].mxu0
        %v6842 = vpop.f32.mrb[0].mxu0
        %6843 = vdwg.mxu0
        %v6844 = vsel %vm582, %v6839, -inf
        %6845 = vmax.xlane.f32.xlu0 %v6844
        %v6846 = vpop.xlane.xlu0 %6845
        %v6847 = vsub.f32 %v6839, %v6846
        %v6848 = vmul.f32 %v6847, 1.442695
        %v6849 = vpow.pop %v6848
        %v6850 = vsel %vm582, %v6849, 0.0
        %6851 = vadd.xlane.f32.xlu0 %v6850
        %v6852 = vpop.xlane.xlu0 %6851
        %v6853 = vrcp.pop %v6852
        %v6854 = vmul.f32 %v6849, %v6853
        %6855 = vst [vmem:[%s478] sm:$0x3] %v6854
        %s6856 = sand.u32 %s275, 1
        %s6857 = scalar_lea.sflag [#allocation4], %s6856
        %s6858 = sand.u32 %s275, 1
        %s6859 = smul.addr %s6858, 2
        %s6860 = scalar_lea.vmem [#allocation13], %s6859
        // Predicated region
        $region89: #{tpu_custom_call.1} parent=63 // pred_check
          %p6861 = pneg %p285
        $region90: #{tpu_custom_call.1} parent=63 // pred_check_branch
          %6863 = sbr.rel (%p6861) target = $region92
        $region91: #{tpu_custom_call.1} parent=63 // pred_region
          %s6865 = ssub.s32 32, 32
          %6866 = vsyncadd %s6857, %s6865
          %s6867 = smul.addr %s31, 32
          %s6868 = scalar_lea.hbm %s11, %s6867
          %s6870 = sshll.u32 %s6860, 4
          %s6871 = int_to_ptr.vmem [resolvable:$true] %s6870
          %6873 = dma.vmem_to_hbm [thread:$0]  %s6871, 32, %s6868, %s6857
        $region92: #{tpu_custom_call.1} parent=63 // pred_fallthru
          _
      $region64: #{tpu_custom_call.1} parent=5 // pred_fallthru
        _
      %p6874 = scmp.le.s32.totalorder 2, %s26
      // Predicated region
      $region93: #{tpu_custom_call.1} parent=5 // pred_check
        %p6875 = pneg %p6874
      $region94: #{tpu_custom_call.1} parent=5 // pred_check_branch
        %6877 = sbr.rel (%p6875) target = $region96
      $region95: #{tpu_custom_call.1} parent=5 // pred_region
        %s6878 = ssub.s32 %s26, 2
        // Predicated region
        $region97: #{tpu_custom_call.1} parent=95 // pred_check
          %p6879 = pneg %p291
        $region98: #{tpu_custom_call.1} parent=95 // pred_check_branch
          %6881 = sbr.rel (%p6879) target = $region100
        $region99: #{tpu_custom_call.1} parent=95 // pred_region
          %s6882 = sand.u32 %s276, 1
          %s6883 = scalar_lea.sflag [#allocation4], %s6882
          %s6884 = sand.u32 %s276, 1
          %s6885 = smul.addr %s6884, 2
          %s6886 = scalar_lea.vmem [#allocation13], %s6885
          %6887 = dma.done %s6883, 32
        $region100: #{tpu_custom_call.1} parent=95 // pred_fallthru
          _
      $region96: #{tpu_custom_call.1} parent=5 // pred_fallthru
        _
    $region6: #{tpu_custom_call.1} parent=1 // loop_footer
      %s30 = sadd.s32 1, %s26
    $region7: #{tpu_custom_call.1} parent=1 // loop_footer_branch
      %25 = sbr.rel target = $region3
    $region8: #{tpu_custom_call.1} parent=1 // loop_exit
      _
    %6888 = vsyncpa [#allocation3], 1
    %s6889 = scalar_lea.sflag [#allocation3], 1
    %6890 = vsyncpa %s6889, 1
    %6891 = vsyncpa [#allocation6], 1
    %6892 = vsyncpa [#allocation9], 1
    %6893 = vsyncpa [#allocation12], 1
    %6894 = vsyncpa [#allocation4], 1
    %s6895 = scalar_lea.sflag [#allocation4], 1
    %6896 = vsyncpa %s6895, 1

</llo_original>
